<compile_context>
chip_gen: v5e
topology: v5e:2x2
jax: 0.10.0
libtpu: 0.0.40
codegen_flags: <defaults>
</compile_context>

<pallas_src>
import jax
import jax.numpy as jnp
from jax.experimental import pallas as pl
from jax.experimental.pallas import tpu as pltpu

LATENT_DIMS = 8
_VMEM = pltpu.MemorySpace.VMEM
_SMEM = pltpu.MemorySpace.SMEM


# ----------------------------------------------------------------------------
# Parameters (PyTorch layouts, same convention as the reference module)
# ----------------------------------------------------------------------------
def init_params(key, latent_dims=LATENT_DIMS, scale=0.05):
    ks = jax.random.split(key, 16)
    n = lambda k, s: (scale * jax.random.normal(k, s)).astype(jnp.float32)
    p = {}
    # Encoder
    p["conv1_w"] = n(ks[0], (8, 1, 3, 3));    p["conv1_b"] = n(ks[1], (8,))
    p["conv2_w"] = n(ks[2], (16, 8, 3, 3))                       # bias=False
    p["bn2_g"] = jnp.ones((16,), jnp.float32); p["bn2_b"] = jnp.zeros((16,), jnp.float32)
    p["conv3_w"] = n(ks[3], (32, 16, 3, 3));  p["conv3_b"] = n(ks[4], (32,))
    p["lin1_w"] = n(ks[5], (288, 128));       p["lin1_b"] = n(ks[6], (128,))
    p["lin2_w"] = n(ks[7], (128, latent_dims)); p["lin2_b"] = n(ks[8], (latent_dims,))
    p["lin3_w"] = n(ks[9], (128, latent_dims)); p["lin3_b"] = n(ks[10], (latent_dims,))
    # Decoder
    p["dlin1_w"] = n(ks[11], (latent_dims, 128)); p["dlin1_b"] = n(ks[12], (128,))
    p["dlin2_w"] = n(ks[13], (128, 288));         p["dlin2_b"] = n(ks[14], (288,))
    kd = jax.random.split(ks[15], 4)
    p["ct1_w"] = n(kd[0], (32, 16, 3, 3))                        # bias=False
    p["dbn1_g"] = jnp.ones((16,), jnp.float32); p["dbn1_b"] = jnp.zeros((16,), jnp.float32)
    p["ct2_w"] = n(kd[1], (16, 8, 3, 3))                         # bias=False
    p["dbn2_g"] = jnp.ones((8,), jnp.float32);  p["dbn2_b"] = jnp.zeros((8,), jnp.float32)
    p["ct3_w"] = n(kd[2], (8, 1, 3, 3));        p["ct3_b"] = n(kd[3], (1,))
    return p


# ----------------------------------------------------------------------------
# One-off parameter re-layout (outside the per-step jit)
# ----------------------------------------------------------------------------
def prepare_params(p, B):
    """Build the constant selection / scatter / folded-weight matrices the kernel uses.

    Activation layout inside the kernel: 2D (B*H, W*C), element [b*H+h, w*C+c]
    (conv3's output uses h-major rows [h*B+b] so the flatten is 3 block stores).
    """
    f32 = jnp.float32
    L = p["lin2_w"].shape[1]

    def enc_sel(Ho, Hin, di, pad, out_hmajor=False):
        # (B*Ho, B*Hin): picks input row  hi = 2*ho + di - pad  of the same image.
        r = jnp.arange(B * Ho)
        b, ho = (r % B, r // B) if out_hmajor else (r // Ho, r % Ho)
        hi = 2 * ho + di - pad
        col = b * Hin + hi
        valid = (hi >= 0) & (hi < Hin)
        return ((jnp.arange(B * Hin)[None, :] == col[:, None]) & valid[:, None]).astype(f32)

    def dec_scat(Ho, Hin, kh, pad, in_hmajor=False):
        # (B*Ho, B*Hin): scatters input row hi to output row ho = 2*hi - pad + kh.
        q = jnp.arange(B * Hin)
        b, hi = (q % B, q // B) if in_hmajor else (q // Hin, q % Hin)
        ho = 2 * hi - pad + kh
        row = b * Ho + ho
        valid = (ho >= 0) & (ho < Ho)
        return ((jnp.arange(B * Ho)[:, None] == row[None, :]) & valid[None, :]).astype(f32)

    def enc_wmat(w, di, Win, Wo, pad):
        # Conv2d weight (Cout,Cin,3,3) -> (Win*Cin, Wo*Cout) for kernel-row di
        # (stride-2 W subsample + zero padding + channel mix folded in).
        Cout, Cin = w.shape[0], w.shape[1]
        dj = jnp.arange(Win)[:, None] - 2 * jnp.arange(Wo)[None, :] + pad
        sel = ((dj >= 0) & (dj < 3)).astype(f32)
        blk = w[:, :, di, :][:, :, jnp.clip(dj, 0, 2)] * sel[None, None]   # (Cout,Cin,Win,Wo)
        return blk.transpose(2, 1, 3, 0).reshape(Win * Cin, Wo * Cout)

    def dec_wmat(w, kh, Win, Wo, pad):
        # ConvTranspose2d weight (Cin,Cout,3,3) -> (Win*Cin, Wo*Cout) for kernel-row kh
        # (stride-2 dilation + padding/output_padding + channel mix folded in).
        Cin, Cout = w.shape[0], w.shape[1]
        kw = jnp.arange(Wo)[None, :] + pad - 2 * jnp.arange(Win)[:, None]
        sel = ((kw >= 0) & (kw < 3)).astype(f32)
        blk = w[:, :, kh, :][:, :, jnp.clip(kw, 0, 2)] * sel[None, None]   # (Cin,Cout,Win,Wo)
        return blk.transpose(2, 0, 3, 1).reshape(Win * Cin, Wo * Cout)

    def chan_gather(W, C):     # (W*C, C): one-hot mapping column w*C+c -> channel c
        return (jnp.arange(W * C)[:, None] % C == jnp.arange(C)[None, :]).astype(f32)

    g716 = chan_gather(7, 16)
    g148 = chan_gather(14, 8)

    return dict(
        # encoder conv1: 1->8, k3 s2 p1 (28 -> 14)
        s1=jnp.stack([enc_sel(14, 28, d, 1) for d in range(3)]),
        w1=jnp.stack([enc_wmat(p["conv1_w"], d, 28, 14, 1) for d in range(3)]),
        b1=jnp.tile(p["conv1_b"], 14).reshape(1, 112),
        # encoder conv2: 8->16, k3 s2 p1 (14 -> 7), BN(16)
        s2=jnp.stack([enc_sel(7, 14, d, 1) for d in range(3)]),
        w2=jnp.stack([enc_wmat(p["conv2_w"], d, 14, 7, 1) for d in range(3)]),
        g2=p["bn2_g"].reshape(1, 16),
        bb2=jnp.tile(p["bn2_b"], 7).reshape(1, 112),
        g716=g716, g716t=g716.T,
        # encoder conv3: 16->32, k3 s2 p0 (7 -> 3), h-major output rows
        s3=jnp.stack([enc_sel(3, 7, d, 0, out_hmajor=True) for d in range(3)]),
        w3=jnp.stack([enc_wmat(p["conv3_w"], d, 7, 3, 0) for d in range(3)]),
        b3=jnp.tile(p["conv3_b"], 3).reshape(1, 96),
        # linear1 (flatten regrouped from torch (c,h,w) order to h*96+w*32+c)
        wl1=p["lin1_w"].reshape(32, 3, 3, 128).transpose(1, 2, 0, 3).reshape(288, 128),
        bl1=p["lin1_b"].reshape(1, 128),
        # fused mu / log_sigma head
        wml=jnp.concatenate([p["lin2_w"], p["lin3_w"]], axis=1),
        bml=jnp.concatenate([p["lin2_b"], p["lin3_b"]]).reshape(1, 2 * L),
        # decoder linears
        wd1=p["dlin1_w"], bd1=p["dlin1_b"].reshape(1, 128),
        wd2=p["dlin2_w"].reshape(128, 32, 3, 3).transpose(0, 2, 3, 1).reshape(128, 288),
        bd2=p["dlin2_b"].reshape(32, 3, 3).transpose(1, 2, 0).reshape(1, 288),
        # ct1: 32->16, k3 s2 p0 op0 (3 -> 7), BN(16); input rows are h-major
        t1=jnp.stack([dec_scat(7, 3, k, 0, in_hmajor=True) for k in range(3)]),
        wt1=jnp.stack([dec_wmat(p["ct1_w"], k, 3, 7, 0) for k in range(3)]),
        gd1=p["dbn1_g"].reshape(1, 16),
        bbd1=jnp.tile(p["dbn1_b"], 7).reshape(1, 112),
        # ct2: 16->8, k3 s2 p1 op1 (7 -> 14), BN(8)
        t2=jnp.stack([dec_scat(14, 7, k, 1) for k in range(3)]),
        wt2=jnp.stack([dec_wmat(p["ct2_w"], k, 7, 14, 1) for k in range(3)]),
        gd2=p["dbn2_g"].reshape(1, 8),
        bbd2=jnp.tile(p["dbn2_b"], 14).reshape(1, 112),
        g148=g148, g148t=g148.T,
        # ct3: 8->1, k3 s2 p1 op1 (14 -> 28), bias + sigmoid
        t3=jnp.stack([dec_scat(28, 14, k, 1) for k in range(3)]),
        wt3=jnp.stack([dec_wmat(p["ct3_w"], k, 14, 28, 1) for k in range(3)]),
        bct3=jnp.tile(p["ct3_b"], 28).reshape(1, 28),
    )


# ----------------------------------------------------------------------------
# The fused VAE kernel
# ----------------------------------------------------------------------------
def _make_kernel(B, L):
    f32 = jnp.float32

    def bn_relu(y, n, gamma, beta_cols, g, gt):
        # Training-mode BatchNorm2d on a (B*H, W*C) value; two-pass biased variance.
        mean = jnp.dot(jnp.sum(y, axis=0, keepdims=True), g,
                       preferred_element_type=f32) * (1.0 / n)              # (1, C)
        d = y - jnp.dot(mean, gt, preferred_element_type=f32)
        var = jnp.dot(jnp.sum(d * d, axis=0, keepdims=True), g,
                      preferred_element_type=f32) * (1.0 / n)               # (1, C)
        scale = gamma * jax.lax.rsqrt(var + 1e-5)
        return jnp.maximum(d * jnp.dot(scale, gt, preferred_element_type=f32) + beta_cols, 0.0)

    def conv3taps(x, a_ref, b_ref, left_first):
        # encoder:  out = sum_i (A_i @ x) @ B_i   (row select, then W/channel mix)
        # decoder:  out = sum_i  A_i @ (x @ B_i)  (W/channel mix, then row scatter)
        acc = None
        for i in range(3):
            if left_first:
                t = jnp.dot(jnp.dot(a_ref[i], x, preferred_element_type=f32),
                            b_ref[i], preferred_element_type=f32)
            else:
                t = jnp.dot(a_ref[i], jnp.dot(x, b_ref[i], preferred_element_type=f32),
                            preferred_element_type=f32)
            acc = t if acc is None else acc + t
        return acc

    def kernel(x_ref, noise_ref,
               s1_ref, w1_ref, b1_ref,
               s2_ref, w2_ref, g2_ref, bb2_ref, g716_ref, g716t_ref,
               s3_ref, w3_ref, b3_ref,
               wl1_ref, bl1_ref, wml_ref, bml_ref,
               wd1_ref, bd1_ref, wd2_ref, bd2_ref,
               t1_ref, wt1_ref, gd1_ref, bbd1_ref,
               t2_ref, wt2_ref, gd2_ref, bbd2_ref, g148_ref, g148t_ref,
               t3_ref, wt3_ref, bct3_ref,
               img_ref, kl_ref,
               j3_ref, din_ref):
        # ------------------------------ encoder ------------------------------
        a1 = jnp.maximum(conv3taps(x_ref[...], s1_ref, w1_ref, True) + b1_ref[...], 0.0)   # (B*14,112)
        a2 = bn_relu(conv3taps(a1, s2_ref, w2_ref, True), float(B * 49),
                     g2_ref[...], bb2_ref[...], g716_ref[...], g716t_ref[...])             # (B*7,112)
        a3 = jnp.maximum(conv3taps(a2, s3_ref, w3_ref, True) + b3_ref[...], 0.0)           # (3*B,96) h-major

        # flatten to (B, 288) (PyTorch (c,h,w) order absorbed into wl1 regrouping)
        for h in range(3):
            j3_ref[:, pl.ds(96 * h, 96)] = a3[h * B:(h + 1) * B, :]

        h1 = jnp.maximum(jnp.dot(j3_ref[...], wl1_ref[...], preferred_element_type=f32)
                         + bl1_ref[...], 0.0)                                              # (B,128)
        ml = jnp.dot(h1, wml_ref[...], preferred_element_type=f32) + bml_ref[...]          # (B,2L)
        mu, log_sigma = ml[:, :L], ml[:, L:]
        sigma = jnp.exp(log_sigma)
        z = mu + sigma * noise_ref[...]
        kl_ref[0, 0] = jnp.sum(sigma * sigma + mu * mu - log_sigma - 0.5)

        # ------------------------------ decoder ------------------------------
        d1 = jnp.maximum(jnp.dot(z, wd1_ref[...], preferred_element_type=f32)
                         + bd1_ref[...], 0.0)                                              # (B,128)
        d2 = jnp.maximum(jnp.dot(d1, wd2_ref[...], preferred_element_type=f32)
                         + bd2_ref[...], 0.0)                                              # (B,288)
        for h in range(3):
            din_ref[pl.ds(h * B, B), :] = d2[:, 96 * h:96 * (h + 1)]                       # (3*B,96) h-major

        c1 = bn_relu(conv3taps(din_ref[...], t1_ref, wt1_ref, False), float(B * 49),
                     gd1_ref[...], bbd1_ref[...], g716_ref[...], g716t_ref[...])           # (B*7,112)
        c2 = bn_relu(conv3taps(c1, t2_ref, wt2_ref, False), float(B * 196),
                     gd2_ref[...], bbd2_ref[...], g148_ref[...], g148t_ref[...])           # (B*14,112)
        c3 = conv3taps(c2, t3_ref, wt3_ref, False)                                         # (B*28,28)
        img_ref[...] = jax.nn.sigmoid(c3 + bct3_ref[...])

    return kernel


# ----------------------------------------------------------------------------
# Wrapper: single fused pallas_call
# ----------------------------------------------------------------------------
def vae_forward(prep, x, noise):
    """x: (B, 1, 28, 28) float32 NCHW; noise: (B, latent) ~ N(0,1). Returns (recon, kl)."""
    B = x.shape[0]
    L = noise.shape[1]
    f32 = jnp.float32
    x2d = x.reshape(B * 28, 28)     # lane-major image rows

    order = ["s1", "w1", "b1", "s2", "w2", "g2", "bb2", "g716", "g716t",
             "s3", "w3", "b3", "wl1", "bl1", "wml", "bml", "wd1", "bd1",
             "wd2", "bd2", "t1", "wt1", "gd1", "bbd1", "t2", "wt2",
             "gd2", "bbd2", "g148", "g148t", "t3", "wt3", "bct3"]
    args = (x2d, noise) + tuple(prep[k] for k in order)

    img, kl = pl.pallas_call(
        _make_kernel(B, L),
        out_shape=(jax.ShapeDtypeStruct((B * 28, 28), f32),   # reconstruction rows
                   jax.ShapeDtypeStruct((1, 1), f32)),        # KL scalar (SMEM)
        in_specs=[pl.BlockSpec(memory_space=_VMEM)] * len(args),
        out_specs=(pl.BlockSpec(memory_space=_VMEM),
                   pl.BlockSpec(memory_space=_SMEM)),
        scratch_shapes=[pltpu.VMEM((B, 288), f32),        # j3: encoder flatten junction
                        pltpu.VMEM((3 * B, 96), f32)],    # din: decoder unflatten junction
    )(*args)

    return img.reshape(B, 1, 28, 28), kl[0, 0]


if __name__ == "__main__":
    key = jax.random.PRNGKey(0)
    k_param, k_x, k_noise = jax.random.split(key, 3)
    params = init_params(k_param)
    batch = 2
    x = jax.random.normal(k_x, (batch, 1, 28, 28), dtype=jnp.float32)   # NCHW like PyTorch
    noise = jax.random.normal(k_noise, (batch, LATENT_DIMS), dtype=jnp.float32)

    prep = prepare_params(params, batch)     # one-off weight re-layout, outside the step jit
    fwd = jax.jit(vae_forward)
    out, kl = fwd(prep, x, noise)
    jax.block_until_ready(out)
    jax.block_until_ready(kl)
    assert out.shape == (batch, 1, 28, 28) and out.dtype == jnp.float32
    assert bool(jnp.all(jnp.isfinite(out))) and bool(jnp.isfinite(kl))
    print("KERNEL_OK")
</pallas_src>

<mosaic_0001>
module attributes {stable_mosaic.version = 11 : i64} {
  func.func @kernel(%arg0: memref<56x28xf32, #tpu.memory_space<vmem>>, %arg1: memref<2x8xf32, #tpu.memory_space<vmem>>, %arg2: memref<3x28x56xf32, #tpu.memory_space<vmem>>, %arg3: memref<3x28x112xf32, #tpu.memory_space<vmem>>, %arg4: memref<1x112xf32, #tpu.memory_space<vmem>>, %arg5: memref<3x14x28xf32, #tpu.memory_space<vmem>>, %arg6: memref<3x112x112xf32, #tpu.memory_space<vmem>>, %arg7: memref<1x16xf32, #tpu.memory_space<vmem>>, %arg8: memref<1x112xf32, #tpu.memory_space<vmem>>, %arg9: memref<112x16xf32, #tpu.memory_space<vmem>>, %arg10: memref<16x112xf32, #tpu.memory_space<vmem>>, %arg11: memref<3x6x14xf32, #tpu.memory_space<vmem>>, %arg12: memref<3x112x96xf32, #tpu.memory_space<vmem>>, %arg13: memref<1x96xf32, #tpu.memory_space<vmem>>, %arg14: memref<288x128xf32, #tpu.memory_space<vmem>>, %arg15: memref<1x128xf32, #tpu.memory_space<vmem>>, %arg16: memref<128x16xf32, #tpu.memory_space<vmem>>, %arg17: memref<1x16xf32, #tpu.memory_space<vmem>>, %arg18: memref<8x128xf32, #tpu.memory_space<vmem>>, %arg19: memref<1x128xf32, #tpu.memory_space<vmem>>, %arg20: memref<128x288xf32, #tpu.memory_space<vmem>>, %arg21: memref<1x288xf32, #tpu.memory_space<vmem>>, %arg22: memref<3x14x6xf32, #tpu.memory_space<vmem>>, %arg23: memref<3x96x112xf32, #tpu.memory_space<vmem>>, %arg24: memref<1x16xf32, #tpu.memory_space<vmem>>, %arg25: memref<1x112xf32, #tpu.memory_space<vmem>>, %arg26: memref<3x28x14xf32, #tpu.memory_space<vmem>>, %arg27: memref<3x112x112xf32, #tpu.memory_space<vmem>>, %arg28: memref<1x8xf32, #tpu.memory_space<vmem>>, %arg29: memref<1x112xf32, #tpu.memory_space<vmem>>, %arg30: memref<112x8xf32, #tpu.memory_space<vmem>>, %arg31: memref<8x112xf32, #tpu.memory_space<vmem>>, %arg32: memref<3x56x28xf32, #tpu.memory_space<vmem>>, %arg33: memref<3x112x28xf32, #tpu.memory_space<vmem>>, %arg34: memref<1x28xf32, #tpu.memory_space<vmem>>, %arg35: memref<56x28xf32, #tpu.memory_space<vmem>>, %arg36: memref<1x1xf32, #tpu.memory_space<smem>>, %arg37: memref<2x288xf32, #tpu.memory_space<vmem>>, %arg38: memref<6x96xf32, #tpu.memory_space<vmem>>) attributes {dimension_semantics = [], scalar_prefetch = 0 : i64, scratch_operands = 2 : i64, tpu.core_type = #tpu.core_type<tc>} {
    %c0 = arith.constant 0 : index
    %c0_0 = arith.constant 0 : index
    %0 = vector.load %arg0[%c0, %c0_0] : memref<56x28xf32, #tpu.memory_space<vmem>>, vector<56x28xf32>
    %c0_1 = arith.constant 0 : index
    %c0_2 = arith.constant 0 : index
    %c0_3 = arith.constant 0 : index
    %1 = vector.load %arg2[%c0_1, %c0_2, %c0_3] : memref<3x28x56xf32, #tpu.memory_space<vmem>>, vector<1x28x56xf32>
    %2 = vector.shape_cast %1 : vector<1x28x56xf32> to vector<28x56xf32>
    %cst = arith.constant dense<0.000000e+00> : vector<28x28xf32>
    %3 = tpu.matmul %2, %0, %cst {dimension_numbers = #tpu.dot_dimension_numbers<[1], [0], [0], [1], [0, 0, 1, 1], [], []>} : vector<28x56xf32>, vector<56x28xf32>, vector<28x28xf32> -> vector<28x28xf32>
    %c0_4 = arith.constant 0 : index
    %c0_5 = arith.constant 0 : index
    %c0_6 = arith.constant 0 : index
    %4 = vector.load %arg3[%c0_4, %c0_5, %c0_6] : memref<3x28x112xf32, #tpu.memory_space<vmem>>, vector<1x28x112xf32>
    %5 = vector.shape_cast %4 : vector<1x28x112xf32> to vector<28x112xf32>
    %cst_7 = arith.constant dense<0.000000e+00> : vector<28x112xf32>
    %6 = tpu.matmul %3, %5, %cst_7 {dimension_numbers = #tpu.dot_dimension_numbers<[1], [0], [0], [1], [0, 0, 1, 1], [], []>} : vector<28x28xf32>, vector<28x112xf32>, vector<28x112xf32> -> vector<28x112xf32>
    %c1 = arith.constant 1 : index
    %c0_8 = arith.constant 0 : index
    %c0_9 = arith.constant 0 : index
    %7 = vector.load %arg2[%c1, %c0_8, %c0_9] : memref<3x28x56xf32, #tpu.memory_space<vmem>>, vector<1x28x56xf32>
    %8 = vector.shape_cast %7 : vector<1x28x56xf32> to vector<28x56xf32>
    %cst_10 = arith.constant dense<0.000000e+00> : vector<28x28xf32>
    %9 = tpu.matmul %8, %0, %cst_10 {dimension_numbers = #tpu.dot_dimension_numbers<[1], [0], [0], [1], [0, 0, 1, 1], [], []>} : vector<28x56xf32>, vector<56x28xf32>, vector<28x28xf32> -> vector<28x28xf32>
    %c1_11 = arith.constant 1 : index
    %c0_12 = arith.constant 0 : index
    %c0_13 = arith.constant 0 : index
    %10 = vector.load %arg3[%c1_11, %c0_12, %c0_13] : memref<3x28x112xf32, #tpu.memory_space<vmem>>, vector<1x28x112xf32>
    %11 = vector.shape_cast %10 : vector<1x28x112xf32> to vector<28x112xf32>
    %cst_14 = arith.constant dense<0.000000e+00> : vector<28x112xf32>
    %12 = tpu.matmul %9, %11, %cst_14 {dimension_numbers = #tpu.dot_dimension_numbers<[1], [0], [0], [1], [0, 0, 1, 1], [], []>} : vector<28x28xf32>, vector<28x112xf32>, vector<28x112xf32> -> vector<28x112xf32>
    %13 = arith.addf %6, %12 : vector<28x112xf32>
    %c2 = arith.constant 2 : index
    %c0_15 = arith.constant 0 : index
    %c0_16 = arith.constant 0 : index
    %14 = vector.load %arg2[%c2, %c0_15, %c0_16] : memref<3x28x56xf32, #tpu.memory_space<vmem>>, vector<1x28x56xf32>
    %15 = vector.shape_cast %14 : vector<1x28x56xf32> to vector<28x56xf32>
    %cst_17 = arith.constant dense<0.000000e+00> : vector<28x28xf32>
    %16 = tpu.matmul %15, %0, %cst_17 {dimension_numbers = #tpu.dot_dimension_numbers<[1], [0], [0], [1], [0, 0, 1, 1], [], []>} : vector<28x56xf32>, vector<56x28xf32>, vector<28x28xf32> -> vector<28x28xf32>
    %c2_18 = arith.constant 2 : index
    %c0_19 = arith.constant 0 : index
    %c0_20 = arith.constant 0 : index
    %17 = vector.load %arg3[%c2_18, %c0_19, %c0_20] : memref<3x28x112xf32, #tpu.memory_space<vmem>>, vector<1x28x112xf32>
    %18 = vector.shape_cast %17 : vector<1x28x112xf32> to vector<28x112xf32>
    %cst_21 = arith.constant dense<0.000000e+00> : vector<28x112xf32>
    %19 = tpu.matmul %16, %18, %cst_21 {dimension_numbers = #tpu.dot_dimension_numbers<[1], [0], [0], [1], [0, 0, 1, 1], [], []>} : vector<28x28xf32>, vector<28x112xf32>, vector<28x112xf32> -> vector<28x112xf32>
    %20 = arith.addf %13, %19 : vector<28x112xf32>
    %c0_22 = arith.constant 0 : index
    %c0_23 = arith.constant 0 : index
    %21 = vector.load %arg4[%c0_22, %c0_23] : memref<1x112xf32, #tpu.memory_space<vmem>>, vector<1x112xf32>
    %22 = vector.broadcast %21 : vector<1x112xf32> to vector<28x112xf32>
    %23 = arith.addf %20, %22 : vector<28x112xf32>
    %cst_24 = arith.constant 0.000000e+00 : f32
    %24 = vector.broadcast %cst_24 : f32 to vector<28x112xf32>
    %25 = arith.maximumf %23, %24 : vector<28x112xf32>
    %c0_25 = arith.constant 0 : index
    %c0_26 = arith.constant 0 : index
    %c0_27 = arith.constant 0 : index
    %26 = vector.load %arg5[%c0_25, %c0_26, %c0_27] : memref<3x14x28xf32, #tpu.memory_space<vmem>>, vector<1x14x28xf32>
    %27 = vector.shape_cast %26 : vector<1x14x28xf32> to vector<14x28xf32>
    %cst_28 = arith.constant dense<0.000000e+00> : vector<14x112xf32>
    %28 = tpu.matmul %27, %25, %cst_28 {dimension_numbers = #tpu.dot_dimension_numbers<[1], [0], [0], [1], [0, 0, 1, 1], [], []>} : vector<14x28xf32>, vector<28x112xf32>, vector<14x112xf32> -> vector<14x112xf32>
    %c0_29 = arith.constant 0 : index
    %c0_30 = arith.constant 0 : index
    %c0_31 = arith.constant 0 : index
    %29 = vector.load %arg6[%c0_29, %c0_30, %c0_31] : memref<3x112x112xf32, #tpu.memory_space<vmem>>, vector<1x112x112xf32>
    %30 = vector.shape_cast %29 : vector<1x112x112xf32> to vector<112x112xf32>
    %cst_32 = arith.constant dense<0.000000e+00> : vector<14x112xf32>
    %31 = tpu.matmul %28, %30, %cst_32 {dimension_numbers = #tpu.dot_dimension_numbers<[1], [0], [0], [1], [0, 0, 1, 1], [], []>} : vector<14x112xf32>, vector<112x112xf32>, vector<14x112xf32> -> vector<14x112xf32>
    %c1_33 = arith.constant 1 : index
    %c0_34 = arith.constant 0 : index
    %c0_35 = arith.constant 0 : index
    %32 = vector.load %arg5[%c1_33, %c0_34, %c0_35] : memref<3x14x28xf32, #tpu.memory_space<vmem>>, vector<1x14x28xf32>
    %33 = vector.shape_cast %32 : vector<1x14x28xf32> to vector<14x28xf32>
    %cst_36 = arith.constant dense<0.000000e+00> : vector<14x112xf32>
    %34 = tpu.matmul %33, %25, %cst_36 {dimension_numbers = #tpu.dot_dimension_numbers<[1], [0], [0], [1], [0, 0, 1, 1], [], []>} : vector<14x28xf32>, vector<28x112xf32>, vector<14x112xf32> -> vector<14x112xf32>
    %c1_37 = arith.constant 1 : index
    %c0_38 = arith.constant 0 : index
    %c0_39 = arith.constant 0 : index
    %35 = vector.load %arg6[%c1_37, %c0_38, %c0_39] : memref<3x112x112xf32, #tpu.memory_space<vmem>>, vector<1x112x112xf32>
    %36 = vector.shape_cast %35 : vector<1x112x112xf32> to vector<112x112xf32>
    %cst_40 = arith.constant dense<0.000000e+00> : vector<14x112xf32>
    %37 = tpu.matmul %34, %36, %cst_40 {dimension_numbers = #tpu.dot_dimension_numbers<[1], [0], [0], [1], [0, 0, 1, 1], [], []>} : vector<14x112xf32>, vector<112x112xf32>, vector<14x112xf32> -> vector<14x112xf32>
    %38 = arith.addf %31, %37 : vector<14x112xf32>
    %c2_41 = arith.constant 2 : index
    %c0_42 = arith.constant 0 : index
    %c0_43 = arith.constant 0 : index
    %39 = vector.load %arg5[%c2_41, %c0_42, %c0_43] : memref<3x14x28xf32, #tpu.memory_space<vmem>>, vector<1x14x28xf32>
    %40 = vector.shape_cast %39 : vector<1x14x28xf32> to vector<14x28xf32>
    %cst_44 = arith.constant dense<0.000000e+00> : vector<14x112xf32>
    %41 = tpu.matmul %40, %25, %cst_44 {dimension_numbers = #tpu.dot_dimension_numbers<[1], [0], [0], [1], [0, 0, 1, 1], [], []>} : vector<14x28xf32>, vector<28x112xf32>, vector<14x112xf32> -> vector<14x112xf32>
    %c2_45 = arith.constant 2 : index
    %c0_46 = arith.constant 0 : index
    %c0_47 = arith.constant 0 : index
    %42 = vector.load %arg6[%c2_45, %c0_46, %c0_47] : memref<3x112x112xf32, #tpu.memory_space<vmem>>, vector<1x112x112xf32>
    %43 = vector.shape_cast %42 : vector<1x112x112xf32> to vector<112x112xf32>
    %cst_48 = arith.constant dense<0.000000e+00> : vector<14x112xf32>
    %44 = tpu.matmul %41, %43, %cst_48 {dimension_numbers = #tpu.dot_dimension_numbers<[1], [0], [0], [1], [0, 0, 1, 1], [], []>} : vector<14x112xf32>, vector<112x112xf32>, vector<14x112xf32> -> vector<14x112xf32>
    %45 = arith.addf %38, %44 : vector<14x112xf32>
    %c0_49 = arith.constant 0 : index
    %c0_50 = arith.constant 0 : index
    %46 = vector.load %arg7[%c0_49, %c0_50] : memref<1x16xf32, #tpu.memory_space<vmem>>, vector<1x16xf32>
    %c0_51 = arith.constant 0 : index
    %c0_52 = arith.constant 0 : index
    %47 = vector.load %arg8[%c0_51, %c0_52] : memref<1x112xf32, #tpu.memory_space<vmem>>, vector<1x112xf32>
    %c0_53 = arith.constant 0 : index
    %c0_54 = arith.constant 0 : index
    %48 = vector.load %arg9[%c0_53, %c0_54] : memref<112x16xf32, #tpu.memory_space<vmem>>, vector<112x16xf32>
    %c0_55 = arith.constant 0 : index
    %c0_56 = arith.constant 0 : index
    %49 = vector.load %arg10[%c0_55, %c0_56] : memref<16x112xf32, #tpu.memory_space<vmem>>, vector<16x112xf32>
    %cst_57 = arith.constant dense<0.000000e+00> : vector<112xf32>
    %50 = vector.multi_reduction <add>, %45, %cst_57 [0] : vector<14x112xf32> to vector<112xf32>
    %51 = vector.shape_cast %50 : vector<112xf32> to vector<1x112xf32>
    %cst_58 = arith.constant dense<0.000000e+00> : vector<1x16xf32>
    %52 = tpu.matmul %51, %48, %cst_58 {dimension_numbers = #tpu.dot_dimension_numbers<[1], [0], [0], [1], [0, 0, 1, 1], [], []>} : vector<1x112xf32>, vector<112x16xf32>, vector<1x16xf32> -> vector<1x16xf32>
    %cst_59 = arith.constant 0.0102040814 : f32
    %53 = vector.broadcast %cst_59 : f32 to vector<1x16xf32>
    %54 = arith.mulf %52, %53 : vector<1x16xf32>
    %cst_60 = arith.constant dense<0.000000e+00> : vector<1x112xf32>
    %55 = tpu.matmul %54, %49, %cst_60 {dimension_numbers = #tpu.dot_dimension_numbers<[1], [0], [0], [1], [0, 0, 1, 1], [], []>} : vector<1x16xf32>, vector<16x112xf32>, vector<1x112xf32> -> vector<1x112xf32>
    %56 = vector.broadcast %55 : vector<1x112xf32> to vector<14x112xf32>
    %57 = arith.subf %45, %56 : vector<14x112xf32>
    %58 = arith.mulf %57, %57 : vector<14x112xf32>
    %cst_61 = arith.constant dense<0.000000e+00> : vector<112xf32>
    %59 = vector.multi_reduction <add>, %58, %cst_61 [0] : vector<14x112xf32> to vector<112xf32>
    %60 = vector.shape_cast %59 : vector<112xf32> to vector<1x112xf32>
    %cst_62 = arith.constant dense<0.000000e+00> : vector<1x16xf32>
    %61 = tpu.matmul %60, %48, %cst_62 {dimension_numbers = #tpu.dot_dimension_numbers<[1], [0], [0], [1], [0, 0, 1, 1], [], []>} : vector<1x112xf32>, vector<112x16xf32>, vector<1x16xf32> -> vector<1x16xf32>
    %cst_63 = arith.constant 0.0102040814 : f32
    %62 = vector.broadcast %cst_63 : f32 to vector<1x16xf32>
    %63 = arith.mulf %61, %62 : vector<1x16xf32>
    %cst_64 = arith.constant 9.99999974E-6 : f32
    %64 = vector.broadcast %cst_64 : f32 to vector<1x16xf32>
    %65 = arith.addf %63, %64 : vector<1x16xf32>
    %66 = math.rsqrt %65 : vector<1x16xf32>
    %67 = arith.mulf %46, %66 : vector<1x16xf32>
    %cst_65 = arith.constant dense<0.000000e+00> : vector<1x112xf32>
    %68 = tpu.matmul %67, %49, %cst_65 {dimension_numbers = #tpu.dot_dimension_numbers<[1], [0], [0], [1], [0, 0, 1, 1], [], []>} : vector<1x16xf32>, vector<16x112xf32>, vector<1x112xf32> -> vector<1x112xf32>
    %69 = vector.broadcast %68 : vector<1x112xf32> to vector<14x112xf32>
    %70 = arith.mulf %57, %69 : vector<14x112xf32>
    %71 = vector.broadcast %47 : vector<1x112xf32> to vector<14x112xf32>
    %72 = arith.addf %70, %71 : vector<14x112xf32>
    %cst_66 = arith.constant 0.000000e+00 : f32
    %73 = vector.broadcast %cst_66 : f32 to vector<14x112xf32>
    %74 = arith.maximumf %72, %73 : vector<14x112xf32>
    %c0_67 = arith.constant 0 : index
    %c0_68 = arith.constant 0 : index
    %c0_69 = arith.constant 0 : index
    %75 = vector.load %arg11[%c0_67, %c0_68, %c0_69] : memref<3x6x14xf32, #tpu.memory_space<vmem>>, vector<1x6x14xf32>
    %76 = vector.shape_cast %75 : vector<1x6x14xf32> to vector<6x14xf32>
    %cst_70 = arith.constant dense<0.000000e+00> : vector<6x112xf32>
    %77 = tpu.matmul %76, %74, %cst_70 {dimension_numbers = #tpu.dot_dimension_numbers<[1], [0], [0], [1], [0, 0, 1, 1], [], []>} : vector<6x14xf32>, vector<14x112xf32>, vector<6x112xf32> -> vector<6x112xf32>
    %c0_71 = arith.constant 0 : index
    %c0_72 = arith.constant 0 : index
    %c0_73 = arith.constant 0 : index
    %78 = vector.load %arg12[%c0_71, %c0_72, %c0_73] : memref<3x112x96xf32, #tpu.memory_space<vmem>>, vector<1x112x96xf32>
    %79 = vector.shape_cast %78 : vector<1x112x96xf32> to vector<112x96xf32>
    %cst_74 = arith.constant dense<0.000000e+00> : vector<6x96xf32>
    %80 = tpu.matmul %77, %79, %cst_74 {dimension_numbers = #tpu.dot_dimension_numbers<[1], [0], [0], [1], [0, 0, 1, 1], [], []>} : vector<6x112xf32>, vector<112x96xf32>, vector<6x96xf32> -> vector<6x96xf32>
    %c1_75 = arith.constant 1 : index
    %c0_76 = arith.constant 0 : index
    %c0_77 = arith.constant 0 : index
    %81 = vector.load %arg11[%c1_75, %c0_76, %c0_77] : memref<3x6x14xf32, #tpu.memory_space<vmem>>, vector<1x6x14xf32>
    %82 = vector.shape_cast %81 : vector<1x6x14xf32> to vector<6x14xf32>
    %cst_78 = arith.constant dense<0.000000e+00> : vector<6x112xf32>
    %83 = tpu.matmul %82, %74, %cst_78 {dimension_numbers = #tpu.dot_dimension_numbers<[1], [0], [0], [1], [0, 0, 1, 1], [], []>} : vector<6x14xf32>, vector<14x112xf32>, vector<6x112xf32> -> vector<6x112xf32>
    %c1_79 = arith.constant 1 : index
    %c0_80 = arith.constant 0 : index
    %c0_81 = arith.constant 0 : index
    %84 = vector.load %arg12[%c1_79, %c0_80, %c0_81] : memref<3x112x96xf32, #tpu.memory_space<vmem>>, vector<1x112x96xf32>
    %85 = vector.shape_cast %84 : vector<1x112x96xf32> to vector<112x96xf32>
    %cst_82 = arith.constant dense<0.000000e+00> : vector<6x96xf32>
    %86 = tpu.matmul %83, %85, %cst_82 {dimension_numbers = #tpu.dot_dimension_numbers<[1], [0], [0], [1], [0, 0, 1, 1], [], []>} : vector<6x112xf32>, vector<112x96xf32>, vector<6x96xf32> -> vector<6x96xf32>
    %87 = arith.addf %80, %86 : vector<6x96xf32>
    %c2_83 = arith.constant 2 : index
    %c0_84 = arith.constant 0 : index
    %c0_85 = arith.constant 0 : index
    %88 = vector.load %arg11[%c2_83, %c0_84, %c0_85] : memref<3x6x14xf32, #tpu.memory_space<vmem>>, vector<1x6x14xf32>
    %89 = vector.shape_cast %88 : vector<1x6x14xf32> to vector<6x14xf32>
    %cst_86 = arith.constant dense<0.000000e+00> : vector<6x112xf32>
    %90 = tpu.matmul %89, %74, %cst_86 {dimension_numbers = #tpu.dot_dimension_numbers<[1], [0], [0], [1], [0, 0, 1, 1], [], []>} : vector<6x14xf32>, vector<14x112xf32>, vector<6x112xf32> -> vector<6x112xf32>
    %c2_87 = arith.constant 2 : index
    %c0_88 = arith.constant 0 : index
    %c0_89 = arith.constant 0 : index
    %91 = vector.load %arg12[%c2_87, %c0_88, %c0_89] : memref<3x112x96xf32, #tpu.memory_space<vmem>>, vector<1x112x96xf32>
    %92 = vector.shape_cast %91 : vector<1x112x96xf32> to vector<112x96xf32>
    %cst_90 = arith.constant dense<0.000000e+00> : vector<6x96xf32>
    %93 = tpu.matmul %90, %92, %cst_90 {dimension_numbers = #tpu.dot_dimension_numbers<[1], [0], [0], [1], [0, 0, 1, 1], [], []>} : vector<6x112xf32>, vector<112x96xf32>, vector<6x96xf32> -> vector<6x96xf32>
    %94 = arith.addf %87, %93 : vector<6x96xf32>
    %c0_91 = arith.constant 0 : index
    %c0_92 = arith.constant 0 : index
    %95 = vector.load %arg13[%c0_91, %c0_92] : memref<1x96xf32, #tpu.memory_space<vmem>>, vector<1x96xf32>
    %96 = vector.broadcast %95 : vector<1x96xf32> to vector<6x96xf32>
    %97 = arith.addf %94, %96 : vector<6x96xf32>
    %cst_93 = arith.constant 0.000000e+00 : f32
    %98 = vector.broadcast %cst_93 : f32 to vector<6x96xf32>
    %99 = arith.maximumf %97, %98 : vector<6x96xf32>
    %100 = vector.extract_strided_slice %99 {offsets = [0, 0], sizes = [2, 96], strides = [1, 1]} : vector<6x96xf32> to vector<2x96xf32>
    %c0_94 = arith.constant 0 : index
    %c0_95 = arith.constant 0 : index
    %101 = vector.load %arg37[%c0_94, %c0_95] : memref<2x288xf32, #tpu.memory_space<vmem>>, vector<2x96xf32>
    tpu.vector_store %arg37[%c0_94, %c0_95], %100 {strides = array<i32>} : memref<2x288xf32, #tpu.memory_space<vmem>>, vector<2x96xf32>,
    %102 = vector.extract_strided_slice %99 {offsets = [2, 0], sizes = [2, 96], strides = [1, 1]} : vector<6x96xf32> to vector<2x96xf32>
    %c0_96 = arith.constant 0 : index
    %c96 = arith.constant 96 : index
    %103 = vector.load %arg37[%c0_96, %c96] : memref<2x288xf32, #tpu.memory_space<vmem>>, vector<2x96xf32>
    tpu.vector_store %arg37[%c0_96, %c96], %102 {strides = array<i32>} : memref<2x288xf32, #tpu.memory_space<vmem>>, vector<2x96xf32>,
    %104 = vector.extract_strided_slice %99 {offsets = [4, 0], sizes = [2, 96], strides = [1, 1]} : vector<6x96xf32> to vector<2x96xf32>
    %c0_97 = arith.constant 0 : index
    %c192 = arith.constant 192 : index
    %105 = vector.load %arg37[%c0_97, %c192] : memref<2x288xf32, #tpu.memory_space<vmem>>, vector<2x96xf32>
    tpu.vector_store %arg37[%c0_97, %c192], %104 {strides = array<i32>} : memref<2x288xf32, #tpu.memory_space<vmem>>, vector<2x96xf32>,
    %c0_98 = arith.constant 0 : index
    %c0_99 = arith.constant 0 : index
    %106 = vector.load %arg37[%c0_98, %c0_99] : memref<2x288xf32, #tpu.memory_space<vmem>>, vector<2x288xf32>
    %c0_100 = arith.constant 0 : index
    %c0_101 = arith.constant 0 : index
    %107 = vector.load %arg14[%c0_100, %c0_101] : memref<288x128xf32, #tpu.memory_space<vmem>>, vector<288x128xf32>
    %cst_102 = arith.constant dense<0.000000e+00> : vector<2x128xf32>
    %108 = tpu.matmul %106, %107, %cst_102 {dimension_numbers = #tpu.dot_dimension_numbers<[1], [0], [0], [1], [0, 0, 1, 1], [], []>} : vector<2x288xf32>, vector<288x128xf32>, vector<2x128xf32> -> vector<2x128xf32>
    %c0_103 = arith.constant 0 : index
    %c0_104 = arith.constant 0 : index
    %109 = vector.load %arg15[%c0_103, %c0_104] : memref<1x128xf32, #tpu.memory_space<vmem>>, vector<1x128xf32>
    %110 = vector.broadcast %109 : vector<1x128xf32> to vector<2x128xf32>
    %111 = arith.addf %108, %110 : vector<2x128xf32>
    %cst_105 = arith.constant 0.000000e+00 : f32
    %112 = vector.broadcast %cst_105 : f32 to vector<2x128xf32>
    %113 = arith.maximumf %111, %112 : vector<2x128xf32>
    %c0_106 = arith.constant 0 : index
    %c0_107 = arith.constant 0 : index
    %114 = vector.load %arg16[%c0_106, %c0_107] : memref<128x16xf32, #tpu.memory_space<vmem>>, vector<128x16xf32>
    %cst_108 = arith.constant dense<0.000000e+00> : vector<2x16xf32>
    %115 = tpu.matmul %113, %114, %cst_108 {dimension_numbers = #tpu.dot_dimension_numbers<[1], [0], [0], [1], [0, 0, 1, 1], [], []>} : vector<2x128xf32>, vector<128x16xf32>, vector<2x16xf32> -> vector<2x16xf32>
    %c0_109 = arith.constant 0 : index
    %c0_110 = arith.constant 0 : index
    %116 = vector.load %arg17[%c0_109, %c0_110] : memref<1x16xf32, #tpu.memory_space<vmem>>, vector<1x16xf32>
    %117 = vector.broadcast %116 : vector<1x16xf32> to vector<2x16xf32>
    %118 = arith.addf %115, %117 : vector<2x16xf32>
    %119 = vector.extract_strided_slice %118 {offsets = [0, 0], sizes = [2, 8], strides = [1, 1]} : vector<2x16xf32> to vector<2x8xf32>
    %120 = vector.extract_strided_slice %118 {offsets = [0, 8], sizes = [2, 8], strides = [1, 1]} : vector<2x16xf32> to vector<2x8xf32>
    %121 = math.exp %120 : vector<2x8xf32>
    %c0_111 = arith.constant 0 : index
    %c0_112 = arith.constant 0 : index
    %122 = vector.load %arg1[%c0_111, %c0_112] : memref<2x8xf32, #tpu.memory_space<vmem>>, vector<2x8xf32>
    %123 = arith.mulf %121, %122 : vector<2x8xf32>
    %124 = arith.addf %119, %123 : vector<2x8xf32>
    %125 = arith.mulf %121, %121 : vector<2x8xf32>
    %126 = arith.mulf %119, %119 : vector<2x8xf32>
    %127 = arith.addf %125, %126 : vector<2x8xf32>
    %128 = arith.subf %127, %120 : vector<2x8xf32>
    %cst_113 = arith.constant 5.000000e-01 : f32
    %129 = vector.broadcast %cst_113 : f32 to vector<2x8xf32>
    %130 = arith.subf %128, %129 : vector<2x8xf32>
    %131 = vector.shape_cast %130 : vector<2x8xf32> to vector<1x2x8xf32>
    %cst_114 = arith.constant dense<0.000000e+00> : vector<1xf32>
    %132 = vector.multi_reduction <add>, %131, %cst_114 [1, 2] : vector<1x2x8xf32> to vector<1xf32>
    %133 = vector.shape_cast %132 : vector<1xf32> to vector<1x1x1xf32>
    %134 = vector.extract %133[0, 0, 0] : f32 from vector<1x1x1xf32>
    %c0_115 = arith.constant 0 : index
    %c0_116 = arith.constant 0 : index
    %135 = memref.load %arg36[%c0_115, %c0_116] : memref<1x1xf32, #tpu.memory_space<smem>>
    memref.store %134, %arg36[%c0_115, %c0_116] : memref<1x1xf32, #tpu.memory_space<smem>>
    %c0_117 = arith.constant 0 : index
    %c0_118 = arith.constant 0 : index
    %136 = vector.load %arg18[%c0_117, %c0_118] : memref<8x128xf32, #tpu.memory_space<vmem>>, vector<8x128xf32>
    %cst_119 = arith.constant dense<0.000000e+00> : vector<2x128xf32>
    %137 = tpu.matmul %124, %136, %cst_119 {dimension_numbers = #tpu.dot_dimension_numbers<[1], [0], [0], [1], [0, 0, 1, 1], [], []>} : vector<2x8xf32>, vector<8x128xf32>, vector<2x128xf32> -> vector<2x128xf32>
    %c0_120 = arith.constant 0 : index
    %c0_121 = arith.constant 0 : index
    %138 = vector.load %arg19[%c0_120, %c0_121] : memref<1x128xf32, #tpu.memory_space<vmem>>, vector<1x128xf32>
    %139 = vector.broadcast %138 : vector<1x128xf32> to vector<2x128xf32>
    %140 = arith.addf %137, %139 : vector<2x128xf32>
    %cst_122 = arith.constant 0.000000e+00 : f32
    %141 = vector.broadcast %cst_122 : f32 to vector<2x128xf32>
    %142 = arith.maximumf %140, %141 : vector<2x128xf32>
    %c0_123 = arith.constant 0 : index
    %c0_124 = arith.constant 0 : index
    %143 = vector.load %arg20[%c0_123, %c0_124] : memref<128x288xf32, #tpu.memory_space<vmem>>, vector<128x288xf32>
    %cst_125 = arith.constant dense<0.000000e+00> : vector<2x288xf32>
    %144 = tpu.matmul %142, %143, %cst_125 {dimension_numbers = #tpu.dot_dimension_numbers<[1], [0], [0], [1], [0, 0, 1, 1], [], []>} : vector<2x128xf32>, vector<128x288xf32>, vector<2x288xf32> -> vector<2x288xf32>
    %c0_126 = arith.constant 0 : index
    %c0_127 = arith.constant 0 : index
    %145 = vector.load %arg21[%c0_126, %c0_127] : memref<1x288xf32, #tpu.memory_space<vmem>>, vector<1x288xf32>
    %146 = vector.broadcast %145 : vector<1x288xf32> to vector<2x288xf32>
    %147 = arith.addf %144, %146 : vector<2x288xf32>
    %cst_128 = arith.constant 0.000000e+00 : f32
    %148 = vector.broadcast %cst_128 : f32 to vector<2x288xf32>
    %149 = arith.maximumf %147, %148 : vector<2x288xf32>
    %150 = vector.extract_strided_slice %149 {offsets = [0, 0], sizes = [2, 96], strides = [1, 1]} : vector<2x288xf32> to vector<2x96xf32>
    %c0_129 = arith.constant 0 : index
    %c0_130 = arith.constant 0 : index
    %151 = vector.load %arg38[%c0_129, %c0_130] : memref<6x96xf32, #tpu.memory_space<vmem>>, vector<2x96xf32>
    tpu.vector_store %arg38[%c0_129, %c0_130], %150 {strides = array<i32>} : memref<6x96xf32, #tpu.memory_space<vmem>>, vector<2x96xf32>,
    %152 = vector.extract_strided_slice %149 {offsets = [0, 96], sizes = [2, 96], strides = [1, 1]} : vector<2x288xf32> to vector<2x96xf32>
    %c2_131 = arith.constant 2 : index
    %c0_132 = arith.constant 0 : index
    %153 = vector.load %arg38[%c2_131, %c0_132] : memref<6x96xf32, #tpu.memory_space<vmem>>, vector<2x96xf32>
    tpu.vector_store %arg38[%c2_131, %c0_132], %152 {strides = array<i32>} : memref<6x96xf32, #tpu.memory_space<vmem>>, vector<2x96xf32>,
    %154 = vector.extract_strided_slice %149 {offsets = [0, 192], sizes = [2, 96], strides = [1, 1]} : vector<2x288xf32> to vector<2x96xf32>
    %c4 = arith.constant 4 : index
    %c0_133 = arith.constant 0 : index
    %155 = vector.load %arg38[%c4, %c0_133] : memref<6x96xf32, #tpu.memory_space<vmem>>, vector<2x96xf32>
    tpu.vector_store %arg38[%c4, %c0_133], %154 {strides = array<i32>} : memref<6x96xf32, #tpu.memory_space<vmem>>, vector<2x96xf32>,
    %c0_134 = arith.constant 0 : index
    %c0_135 = arith.constant 0 : index
    %156 = vector.load %arg38[%c0_134, %c0_135] : memref<6x96xf32, #tpu.memory_space<vmem>>, vector<6x96xf32>
    %c0_136 = arith.constant 0 : index
    %c0_137 = arith.constant 0 : index
    %c0_138 = arith.constant 0 : index
    %157 = vector.load %arg22[%c0_136, %c0_137, %c0_138] : memref<3x14x6xf32, #tpu.memory_space<vmem>>, vector<1x14x6xf32>
    %158 = vector.shape_cast %157 : vector<1x14x6xf32> to vector<14x6xf32>
    %c0_139 = arith.constant 0 : index
    %c0_140 = arith.constant 0 : index
    %c0_141 = arith.constant 0 : index
    %159 = vector.load %arg23[%c0_139, %c0_140, %c0_141] : memref<3x96x112xf32, #tpu.memory_space<vmem>>, vector<1x96x112xf32>
    %160 = vector.shape_cast %159 : vector<1x96x112xf32> to vector<96x112xf32>
    %cst_142 = arith.constant dense<0.000000e+00> : vector<6x112xf32>
    %161 = tpu.matmul %156, %160, %cst_142 {dimension_numbers = #tpu.dot_dimension_numbers<[1], [0], [0], [1], [0, 0, 1, 1], [], []>} : vector<6x96xf32>, vector<96x112xf32>, vector<6x112xf32> -> vector<6x112xf32>
    %cst_143 = arith.constant dense<0.000000e+00> : vector<14x112xf32>
    %162 = tpu.matmul %158, %161, %cst_143 {dimension_numbers = #tpu.dot_dimension_numbers<[1], [0], [0], [1], [0, 0, 1, 1], [], []>} : vector<14x6xf32>, vector<6x112xf32>, vector<14x112xf32> -> vector<14x112xf32>
    %c1_144 = arith.constant 1 : index
    %c0_145 = arith.constant 0 : index
    %c0_146 = arith.constant 0 : index
    %163 = vector.load %arg22[%c1_144, %c0_145, %c0_146] : memref<3x14x6xf32, #tpu.memory_space<vmem>>, vector<1x14x6xf32>
    %164 = vector.shape_cast %163 : vector<1x14x6xf32> to vector<14x6xf32>
    %c1_147 = arith.constant 1 : index
    %c0_148 = arith.constant 0 : index
    %c0_149 = arith.constant 0 : index
    %165 = vector.load %arg23[%c1_147, %c0_148, %c0_149] : memref<3x96x112xf32, #tpu.memory_space<vmem>>, vector<1x96x112xf32>
    %166 = vector.shape_cast %165 : vector<1x96x112xf32> to vector<96x112xf32>
    %cst_150 = arith.constant dense<0.000000e+00> : vector<6x112xf32>
    %167 = tpu.matmul %156, %166, %cst_150 {dimension_numbers = #tpu.dot_dimension_numbers<[1], [0], [0], [1], [0, 0, 1, 1], [], []>} : vector<6x96xf32>, vector<96x112xf32>, vector<6x112xf32> -> vector<6x112xf32>
    %cst_151 = arith.constant dense<0.000000e+00> : vector<14x112xf32>
    %168 = tpu.matmul %164, %167, %cst_151 {dimension_numbers = #tpu.dot_dimension_numbers<[1], [0], [0], [1], [0, 0, 1, 1], [], []>} : vector<14x6xf32>, vector<6x112xf32>, vector<14x112xf32> -> vector<14x112xf32>
    %169 = arith.addf %162, %168 : vector<14x112xf32>
    %c2_152 = arith.constant 2 : index
    %c0_153 = arith.constant 0 : index
    %c0_154 = arith.constant 0 : index
    %170 = vector.load %arg22[%c2_152, %c0_153, %c0_154] : memref<3x14x6xf32, #tpu.memory_space<vmem>>, vector<1x14x6xf32>
    %171 = vector.shape_cast %170 : vector<1x14x6xf32> to vector<14x6xf32>
    %c2_155 = arith.constant 2 : index
    %c0_156 = arith.constant 0 : index
    %c0_157 = arith.constant 0 : index
    %172 = vector.load %arg23[%c2_155, %c0_156, %c0_157] : memref<3x96x112xf32, #tpu.memory_space<vmem>>, vector<1x96x112xf32>
    %173 = vector.shape_cast %172 : vector<1x96x112xf32> to vector<96x112xf32>
    %cst_158 = arith.constant dense<0.000000e+00> : vector<6x112xf32>
    %174 = tpu.matmul %156, %173, %cst_158 {dimension_numbers = #tpu.dot_dimension_numbers<[1], [0], [0], [1], [0, 0, 1, 1], [], []>} : vector<6x96xf32>, vector<96x112xf32>, vector<6x112xf32> -> vector<6x112xf32>
    %cst_159 = arith.constant dense<0.000000e+00> : vector<14x112xf32>
    %175 = tpu.matmul %171, %174, %cst_159 {dimension_numbers = #tpu.dot_dimension_numbers<[1], [0], [0], [1], [0, 0, 1, 1], [], []>} : vector<14x6xf32>, vector<6x112xf32>, vector<14x112xf32> -> vector<14x112xf32>
    %176 = arith.addf %169, %175 : vector<14x112xf32>
    %c0_160 = arith.constant 0 : index
    %c0_161 = arith.constant 0 : index
    %177 = vector.load %arg24[%c0_160, %c0_161] : memref<1x16xf32, #tpu.memory_space<vmem>>, vector<1x16xf32>
    %c0_162 = arith.constant 0 : index
    %c0_163 = arith.constant 0 : index
    %178 = vector.load %arg25[%c0_162, %c0_163] : memref<1x112xf32, #tpu.memory_space<vmem>>, vector<1x112xf32>
    %c0_164 = arith.constant 0 : index
    %c0_165 = arith.constant 0 : index
    %179 = vector.load %arg9[%c0_164, %c0_165] : memref<112x16xf32, #tpu.memory_space<vmem>>, vector<112x16xf32>
    %c0_166 = arith.constant 0 : index
    %c0_167 = arith.constant 0 : index
    %180 = vector.load %arg10[%c0_166, %c0_167] : memref<16x112xf32, #tpu.memory_space<vmem>>, vector<16x112xf32>
    %cst_168 = arith.constant dense<0.000000e+00> : vector<112xf32>
    %181 = vector.multi_reduction <add>, %176, %cst_168 [0] : vector<14x112xf32> to vector<112xf32>
    %182 = vector.shape_cast %181 : vector<112xf32> to vector<1x112xf32>
    %cst_169 = arith.constant dense<0.000000e+00> : vector<1x16xf32>
    %183 = tpu.matmul %182, %179, %cst_169 {dimension_numbers = #tpu.dot_dimension_numbers<[1], [0], [0], [1], [0, 0, 1, 1], [], []>} : vector<1x112xf32>, vector<112x16xf32>, vector<1x16xf32> -> vector<1x16xf32>
    %cst_170 = arith.constant 0.0102040814 : f32
    %184 = vector.broadcast %cst_170 : f32 to vector<1x16xf32>
    %185 = arith.mulf %183, %184 : vector<1x16xf32>
    %cst_171 = arith.constant dense<0.000000e+00> : vector<1x112xf32>
    %186 = tpu.matmul %185, %180, %cst_171 {dimension_numbers = #tpu.dot_dimension_numbers<[1], [0], [0], [1], [0, 0, 1, 1], [], []>} : vector<1x16xf32>, vector<16x112xf32>, vector<1x112xf32> -> vector<1x112xf32>
    %187 = vector.broadcast %186 : vector<1x112xf32> to vector<14x112xf32>
    %188 = arith.subf %176, %187 : vector<14x112xf32>
    %189 = arith.mulf %188, %188 : vector<14x112xf32>
    %cst_172 = arith.constant dense<0.000000e+00> : vector<112xf32>
    %190 = vector.multi_reduction <add>, %189, %cst_172 [0] : vector<14x112xf32> to vector<112xf32>
    %191 = vector.shape_cast %190 : vector<112xf32> to vector<1x112xf32>
    %cst_173 = arith.constant dense<0.000000e+00> : vector<1x16xf32>
    %192 = tpu.matmul %191, %179, %cst_173 {dimension_numbers = #tpu.dot_dimension_numbers<[1], [0], [0], [1], [0, 0, 1, 1], [], []>} : vector<1x112xf32>, vector<112x16xf32>, vector<1x16xf32> -> vector<1x16xf32>
    %cst_174 = arith.constant 0.0102040814 : f32
    %193 = vector.broadcast %cst_174 : f32 to vector<1x16xf32>
    %194 = arith.mulf %192, %193 : vector<1x16xf32>
    %cst_175 = arith.constant 9.99999974E-6 : f32
    %195 = vector.broadcast %cst_175 : f32 to vector<1x16xf32>
    %196 = arith.addf %194, %195 : vector<1x16xf32>
    %197 = math.rsqrt %196 : vector<1x16xf32>
    %198 = arith.mulf %177, %197 : vector<1x16xf32>
    %cst_176 = arith.constant dense<0.000000e+00> : vector<1x112xf32>
    %199 = tpu.matmul %198, %180, %cst_176 {dimension_numbers = #tpu.dot_dimension_numbers<[1], [0], [0], [1], [0, 0, 1, 1], [], []>} : vector<1x16xf32>, vector<16x112xf32>, vector<1x112xf32> -> vector<1x112xf32>
    %200 = vector.broadcast %199 : vector<1x112xf32> to vector<14x112xf32>
    %201 = arith.mulf %188, %200 : vector<14x112xf32>
    %202 = vector.broadcast %178 : vector<1x112xf32> to vector<14x112xf32>
    %203 = arith.addf %201, %202 : vector<14x112xf32>
    %cst_177 = arith.constant 0.000000e+00 : f32
    %204 = vector.broadcast %cst_177 : f32 to vector<14x112xf32>
    %205 = arith.maximumf %203, %204 : vector<14x112xf32>
    %c0_178 = arith.constant 0 : index
    %c0_179 = arith.constant 0 : index
    %c0_180 = arith.constant 0 : index
    %206 = vector.load %arg26[%c0_178, %c0_179, %c0_180] : memref<3x28x14xf32, #tpu.memory_space<vmem>>, vector<1x28x14xf32>
    %207 = vector.shape_cast %206 : vector<1x28x14xf32> to vector<28x14xf32>
    %c0_181 = arith.constant 0 : index
    %c0_182 = arith.constant 0 : index
    %c0_183 = arith.constant 0 : index
    %208 = vector.load %arg27[%c0_181, %c0_182, %c0_183] : memref<3x112x112xf32, #tpu.memory_space<vmem>>, vector<1x112x112xf32>
    %209 = vector.shape_cast %208 : vector<1x112x112xf32> to vector<112x112xf32>
    %cst_184 = arith.constant dense<0.000000e+00> : vector<14x112xf32>
    %210 = tpu.matmul %205, %209, %cst_184 {dimension_numbers = #tpu.dot_dimension_numbers<[1], [0], [0], [1], [0, 0, 1, 1], [], []>} : vector<14x112xf32>, vector<112x112xf32>, vector<14x112xf32> -> vector<14x112xf32>
    %cst_185 = arith.constant dense<0.000000e+00> : vector<28x112xf32>
    %211 = tpu.matmul %207, %210, %cst_185 {dimension_numbers = #tpu.dot_dimension_numbers<[1], [0], [0], [1], [0, 0, 1, 1], [], []>} : vector<28x14xf32>, vector<14x112xf32>, vector<28x112xf32> -> vector<28x112xf32>
    %c1_186 = arith.constant 1 : index
    %c0_187 = arith.constant 0 : index
    %c0_188 = arith.constant 0 : index
    %212 = vector.load %arg26[%c1_186, %c0_187, %c0_188] : memref<3x28x14xf32, #tpu.memory_space<vmem>>, vector<1x28x14xf32>
    %213 = vector.shape_cast %212 : vector<1x28x14xf32> to vector<28x14xf32>
    %c1_189 = arith.constant 1 : index
    %c0_190 = arith.constant 0 : index
    %c0_191 = arith.constant 0 : index
    %214 = vector.load %arg27[%c1_189, %c0_190, %c0_191] : memref<3x112x112xf32, #tpu.memory_space<vmem>>, vector<1x112x112xf32>
    %215 = vector.shape_cast %214 : vector<1x112x112xf32> to vector<112x112xf32>
    %cst_192 = arith.constant dense<0.000000e+00> : vector<14x112xf32>
    %216 = tpu.matmul %205, %215, %cst_192 {dimension_numbers = #tpu.dot_dimension_numbers<[1], [0], [0], [1], [0, 0, 1, 1], [], []>} : vector<14x112xf32>, vector<112x112xf32>, vector<14x112xf32> -> vector<14x112xf32>
    %cst_193 = arith.constant dense<0.000000e+00> : vector<28x112xf32>
    %217 = tpu.matmul %213, %216, %cst_193 {dimension_numbers = #tpu.dot_dimension_numbers<[1], [0], [0], [1], [0, 0, 1, 1], [], []>} : vector<28x14xf32>, vector<14x112xf32>, vector<28x112xf32> -> vector<28x112xf32>
    %218 = arith.addf %211, %217 : vector<28x112xf32>
    %c2_194 = arith.constant 2 : index
    %c0_195 = arith.constant 0 : index
    %c0_196 = arith.constant 0 : index
    %219 = vector.load %arg26[%c2_194, %c0_195, %c0_196] : memref<3x28x14xf32, #tpu.memory_space<vmem>>, vector<1x28x14xf32>
    %220 = vector.shape_cast %219 : vector<1x28x14xf32> to vector<28x14xf32>
    %c2_197 = arith.constant 2 : index
    %c0_198 = arith.constant 0 : index
    %c0_199 = arith.constant 0 : index
    %221 = vector.load %arg27[%c2_197, %c0_198, %c0_199] : memref<3x112x112xf32, #tpu.memory_space<vmem>>, vector<1x112x112xf32>
    %222 = vector.shape_cast %221 : vector<1x112x112xf32> to vector<112x112xf32>
    %cst_200 = arith.constant dense<0.000000e+00> : vector<14x112xf32>
    %223 = tpu.matmul %205, %222, %cst_200 {dimension_numbers = #tpu.dot_dimension_numbers<[1], [0], [0], [1], [0, 0, 1, 1], [], []>} : vector<14x112xf32>, vector<112x112xf32>, vector<14x112xf32> -> vector<14x112xf32>
    %cst_201 = arith.constant dense<0.000000e+00> : vector<28x112xf32>
    %224 = tpu.matmul %220, %223, %cst_201 {dimension_numbers = #tpu.dot_dimension_numbers<[1], [0], [0], [1], [0, 0, 1, 1], [], []>} : vector<28x14xf32>, vector<14x112xf32>, vector<28x112xf32> -> vector<28x112xf32>
    %225 = arith.addf %218, %224 : vector<28x112xf32>
    %c0_202 = arith.constant 0 : index
    %c0_203 = arith.constant 0 : index
    %226 = vector.load %arg28[%c0_202, %c0_203] : memref<1x8xf32, #tpu.memory_space<vmem>>, vector<1x8xf32>
    %c0_204 = arith.constant 0 : index
    %c0_205 = arith.constant 0 : index
    %227 = vector.load %arg29[%c0_204, %c0_205] : memref<1x112xf32, #tpu.memory_space<vmem>>, vector<1x112xf32>
    %c0_206 = arith.constant 0 : index
    %c0_207 = arith.constant 0 : index
    %228 = vector.load %arg30[%c0_206, %c0_207] : memref<112x8xf32, #tpu.memory_space<vmem>>, vector<112x8xf32>
    %c0_208 = arith.constant 0 : index
    %c0_209 = arith.constant 0 : index
    %229 = vector.load %arg31[%c0_208, %c0_209] : memref<8x112xf32, #tpu.memory_space<vmem>>, vector<8x112xf32>
    %cst_210 = arith.constant dense<0.000000e+00> : vector<112xf32>
    %230 = vector.multi_reduction <add>, %225, %cst_210 [0] : vector<28x112xf32> to vector<112xf32>
    %231 = vector.shape_cast %230 : vector<112xf32> to vector<1x112xf32>
    %cst_211 = arith.constant dense<0.000000e+00> : vector<1x8xf32>
    %232 = tpu.matmul %231, %228, %cst_211 {dimension_numbers = #tpu.dot_dimension_numbers<[1], [0], [0], [1], [0, 0, 1, 1], [], []>} : vector<1x112xf32>, vector<112x8xf32>, vector<1x8xf32> -> vector<1x8xf32>
    %cst_212 = arith.constant 0.00255102036 : f32
    %233 = vector.broadcast %cst_212 : f32 to vector<1x8xf32>
    %234 = arith.mulf %232, %233 : vector<1x8xf32>
    %cst_213 = arith.constant dense<0.000000e+00> : vector<1x112xf32>
    %235 = tpu.matmul %234, %229, %cst_213 {dimension_numbers = #tpu.dot_dimension_numbers<[1], [0], [0], [1], [0, 0, 1, 1], [], []>} : vector<1x8xf32>, vector<8x112xf32>, vector<1x112xf32> -> vector<1x112xf32>
    %236 = vector.broadcast %235 : vector<1x112xf32> to vector<28x112xf32>
    %237 = arith.subf %225, %236 : vector<28x112xf32>
    %238 = arith.mulf %237, %237 : vector<28x112xf32>
    %cst_214 = arith.constant dense<0.000000e+00> : vector<112xf32>
    %239 = vector.multi_reduction <add>, %238, %cst_214 [0] : vector<28x112xf32> to vector<112xf32>
    %240 = vector.shape_cast %239 : vector<112xf32> to vector<1x112xf32>
    %cst_215 = arith.constant dense<0.000000e+00> : vector<1x8xf32>
    %241 = tpu.matmul %240, %228, %cst_215 {dimension_numbers = #tpu.dot_dimension_numbers<[1], [0], [0], [1], [0, 0, 1, 1], [], []>} : vector<1x112xf32>, vector<112x8xf32>, vector<1x8xf32> -> vector<1x8xf32>
    %cst_216 = arith.constant 0.00255102036 : f32
    %242 = vector.broadcast %cst_216 : f32 to vector<1x8xf32>
    %243 = arith.mulf %241, %242 : vector<1x8xf32>
    %cst_217 = arith.constant 9.99999974E-6 : f32
    %244 = vector.broadcast %cst_217 : f32 to vector<1x8xf32>
    %245 = arith.addf %243, %244 : vector<1x8xf32>
    %246 = math.rsqrt %245 : vector<1x8xf32>
    %247 = arith.mulf %226, %246 : vector<1x8xf32>
    %cst_218 = arith.constant dense<0.000000e+00> : vector<1x112xf32>
    %248 = tpu.matmul %247, %229, %cst_218 {dimension_numbers = #tpu.dot_dimension_numbers<[1], [0], [0], [1], [0, 0, 1, 1], [], []>} : vector<1x8xf32>, vector<8x112xf32>, vector<1x112xf32> -> vector<1x112xf32>
    %249 = vector.broadcast %248 : vector<1x112xf32> to vector<28x112xf32>
    %250 = arith.mulf %237, %249 : vector<28x112xf32>
    %251 = vector.broadcast %227 : vector<1x112xf32> to vector<28x112xf32>
    %252 = arith.addf %250, %251 : vector<28x112xf32>
    %cst_219 = arith.constant 0.000000e+00 : f32
    %253 = vector.broadcast %cst_219 : f32 to vector<28x112xf32>
    %254 = arith.maximumf %252, %253 : vector<28x112xf32>
    %c0_220 = arith.constant 0 : index
    %c0_221 = arith.constant 0 : index
    %c0_222 = arith.constant 0 : index
    %255 = vector.load %arg32[%c0_220, %c0_221, %c0_222] : memref<3x56x28xf32, #tpu.memory_space<vmem>>, vector<1x56x28xf32>
    %256 = vector.shape_cast %255 : vector<1x56x28xf32> to vector<56x28xf32>
    %c0_223 = arith.constant 0 : index
    %c0_224 = arith.constant 0 : index
    %c0_225 = arith.constant 0 : index
    %257 = vector.load %arg33[%c0_223, %c0_224, %c0_225] : memref<3x112x28xf32, #tpu.memory_space<vmem>>, vector<1x112x28xf32>
    %258 = vector.shape_cast %257 : vector<1x112x28xf32> to vector<112x28xf32>
    %cst_226 = arith.constant dense<0.000000e+00> : vector<28x28xf32>
    %259 = tpu.matmul %254, %258, %cst_226 {dimension_numbers = #tpu.dot_dimension_numbers<[1], [0], [0], [1], [0, 0, 1, 1], [], []>} : vector<28x112xf32>, vector<112x28xf32>, vector<28x28xf32> -> vector<28x28xf32>
    %cst_227 = arith.constant dense<0.000000e+00> : vector<56x28xf32>
    %260 = tpu.matmul %256, %259, %cst_227 {dimension_numbers = #tpu.dot_dimension_numbers<[1], [0], [0], [1], [0, 0, 1, 1], [], []>} : vector<56x28xf32>, vector<28x28xf32>, vector<56x28xf32> -> vector<56x28xf32>
    %c1_228 = arith.constant 1 : index
    %c0_229 = arith.constant 0 : index
    %c0_230 = arith.constant 0 : index
    %261 = vector.load %arg32[%c1_228, %c0_229, %c0_230] : memref<3x56x28xf32, #tpu.memory_space<vmem>>, vector<1x56x28xf32>
    %262 = vector.shape_cast %261 : vector<1x56x28xf32> to vector<56x28xf32>
    %c1_231 = arith.constant 1 : index
    %c0_232 = arith.constant 0 : index
    %c0_233 = arith.constant 0 : index
    %263 = vector.load %arg33[%c1_231, %c0_232, %c0_233] : memref<3x112x28xf32, #tpu.memory_space<vmem>>, vector<1x112x28xf32>
    %264 = vector.shape_cast %263 : vector<1x112x28xf32> to vector<112x28xf32>
    %cst_234 = arith.constant dense<0.000000e+00> : vector<28x28xf32>
    %265 = tpu.matmul %254, %264, %cst_234 {dimension_numbers = #tpu.dot_dimension_numbers<[1], [0], [0], [1], [0, 0, 1, 1], [], []>} : vector<28x112xf32>, vector<112x28xf32>, vector<28x28xf32> -> vector<28x28xf32>
    %cst_235 = arith.constant dense<0.000000e+00> : vector<56x28xf32>
    %266 = tpu.matmul %262, %265, %cst_235 {dimension_numbers = #tpu.dot_dimension_numbers<[1], [0], [0], [1], [0, 0, 1, 1], [], []>} : vector<56x28xf32>, vector<28x28xf32>, vector<56x28xf32> -> vector<56x28xf32>
    %267 = arith.addf %260, %266 : vector<56x28xf32>
    %c2_236 = arith.constant 2 : index
    %c0_237 = arith.constant 0 : index
    %c0_238 = arith.constant 0 : index
    %268 = vector.load %arg32[%c2_236, %c0_237, %c0_238] : memref<3x56x28xf32, #tpu.memory_space<vmem>>, vector<1x56x28xf32>
    %269 = vector.shape_cast %268 : vector<1x56x28xf32> to vector<56x28xf32>
    %c2_239 = arith.constant 2 : index
    %c0_240 = arith.constant 0 : index
    %c0_241 = arith.constant 0 : index
    %270 = vector.load %arg33[%c2_239, %c0_240, %c0_241] : memref<3x112x28xf32, #tpu.memory_space<vmem>>, vector<1x112x28xf32>
    %271 = vector.shape_cast %270 : vector<1x112x28xf32> to vector<112x28xf32>
    %cst_242 = arith.constant dense<0.000000e+00> : vector<28x28xf32>
    %272 = tpu.matmul %254, %271, %cst_242 {dimension_numbers = #tpu.dot_dimension_numbers<[1], [0], [0], [1], [0, 0, 1, 1], [], []>} : vector<28x112xf32>, vector<112x28xf32>, vector<28x28xf32> -> vector<28x28xf32>
    %cst_243 = arith.constant dense<0.000000e+00> : vector<56x28xf32>
    %273 = tpu.matmul %269, %272, %cst_243 {dimension_numbers = #tpu.dot_dimension_numbers<[1], [0], [0], [1], [0, 0, 1, 1], [], []>} : vector<56x28xf32>, vector<28x28xf32>, vector<56x28xf32> -> vector<56x28xf32>
    %274 = arith.addf %267, %273 : vector<56x28xf32>
    %c0_244 = arith.constant 0 : index
    %c0_245 = arith.constant 0 : index
    %275 = vector.load %arg34[%c0_244, %c0_245] : memref<1x28xf32, #tpu.memory_space<vmem>>, vector<1x28xf32>
    %276 = vector.broadcast %275 : vector<1x28xf32> to vector<56x28xf32>
    %277 = arith.addf %274, %276 : vector<56x28xf32>
    %278 = arith.negf %277 : vector<56x28xf32>
    %279 = math.exp %278 : vector<56x28xf32>
    %cst_246 = arith.constant 1.000000e+00 : f32
    %280 = vector.broadcast %cst_246 : f32 to vector<56x28xf32>
    %281 = arith.addf %280, %279 : vector<56x28xf32>
    %282 = arith.divf %280, %281 : vector<56x28xf32>
    %c0_247 = arith.constant 0 : index
    %c0_248 = arith.constant 0 : index
    %283 = vector.load %arg35[%c0_247, %c0_248] : memref<56x28xf32, #tpu.memory_space<vmem>>, vector<56x28xf32>
    tpu.vector_store %arg35[%c0_247, %c0_248], %282 {strides = array<i32>} : memref<56x28xf32, #tpu.memory_space<vmem>>, vector<56x28xf32>,
    return
  }
}

</mosaic_0001>

<llo_original>
// kernel: vae_forward.1
$region0: #{vae_forward.1}
  #allocation0 [shape = 'u32[]', space=smem, size = 0x4, offset = 0x4, fixed_abs, tag = 'smem constant byte address 0x4 - core index']
  #allocation1 [shape = 'u32[72,128]{1,0:T(1,128)}', space=vmem, size = 0x9000, scoped, tag = 'internal scratch']
  #allocation2 [shape = 'f32[2,288]{1,0:T(2,128)}', space=vmem, size = 0xc00, scoped, tag = 'scratch operand']
  #allocation3 [shape = 'f32[6,96]{1,0:T(8,128)}', space=vmem, size = 0x1000, scoped, tag = 'scratch operand']
  %s0 = inlined_call_operand.smem [shape: u32[37], index: -1, kind: input, shape index: {}]
  %s1 = sld [smem:[%s0]]
  %s2 = scalar_lea.smem %s0, 1
  %s3 = sld [smem:[%s2]]
  %s4 = scalar_lea.smem %s0, 2
  %s5 = sld [smem:[%s4]]
  %s6 = scalar_lea.smem %s0, 3
  %s7 = sld [smem:[%s6]]
  %s8 = scalar_lea.smem %s0, 4
  %s9 = sld [smem:[%s8]]
  %s10 = scalar_lea.smem %s0, 5
  %s11 = sld [smem:[%s10]]
  %s12 = scalar_lea.smem %s0, 6
  %s13 = sld [smem:[%s12]]
  %s14 = scalar_lea.smem %s0, 7
  %s15 = sld [smem:[%s14]]
  %s16 = scalar_lea.smem %s0, 8
  %s17 = sld [smem:[%s16]]
  %s18 = scalar_lea.smem %s0, 9
  %s19 = sld [smem:[%s18]]
  %s20 = scalar_lea.smem %s0, 10
  %s21 = sld [smem:[%s20]]
  %s22 = scalar_lea.smem %s0, 11
  %s23 = sld [smem:[%s22]]
  %s24 = scalar_lea.smem %s0, 12
  %s25 = sld [smem:[%s24]]
  %s26 = scalar_lea.smem %s0, 13
  %s27 = sld [smem:[%s26]]
  %s28 = scalar_lea.smem %s0, 14
  %s29 = sld [smem:[%s28]]
  %s30 = scalar_lea.smem %s0, 15
  %s31 = sld [smem:[%s30]]
  %s32 = scalar_lea.smem %s0, 16
  %s33 = sld [smem:[%s32]]
  %s34 = scalar_lea.smem %s0, 17
  %s35 = sld [smem:[%s34]]
  %s36 = scalar_lea.smem %s0, 18
  %s37 = sld [smem:[%s36]]
  %s38 = scalar_lea.smem %s0, 19
  %s39 = sld [smem:[%s38]]
  %s40 = scalar_lea.smem %s0, 20
  %s41 = sld [smem:[%s40]]
  %s42 = scalar_lea.smem %s0, 21
  %s43 = sld [smem:[%s42]]
  %s44 = scalar_lea.smem %s0, 22
  %s45 = sld [smem:[%s44]]
  %s46 = scalar_lea.smem %s0, 23
  %s47 = sld [smem:[%s46]]
  %s48 = scalar_lea.smem %s0, 24
  %s49 = sld [smem:[%s48]]
  %s50 = scalar_lea.smem %s0, 25
  %s51 = sld [smem:[%s50]]
  %s52 = scalar_lea.smem %s0, 26
  %s53 = sld [smem:[%s52]]
  %s54 = scalar_lea.smem %s0, 27
  %s55 = sld [smem:[%s54]]
  %s56 = scalar_lea.smem %s0, 28
  %s57 = sld [smem:[%s56]]
  %s58 = scalar_lea.smem %s0, 29
  %s59 = sld [smem:[%s58]]
  %s60 = scalar_lea.smem %s0, 30
  %s61 = sld [smem:[%s60]]
  %s62 = scalar_lea.smem %s0, 31
  %s63 = sld [smem:[%s62]]
  %s64 = scalar_lea.smem %s0, 32
  %s65 = sld [smem:[%s64]]
  %s66 = scalar_lea.smem %s0, 33
  %s67 = sld [smem:[%s66]]
  %s68 = scalar_lea.smem %s0, 34
  %s69 = sld [smem:[%s68]]
  %s70 = scalar_lea.smem %s0, 35
  %s71 = sld [smem:[%s70]]
  %s72 = scalar_lea.smem %s0, 36
  %s73 = sld [smem:[%s72]]
  %74 = xla_tuple %s71, %s73
  %s75 = sld [smem:[#allocation0]]
  $region158: #{vae_forward.1} parent=0
    _
  %s77 = ssub.s32 1, %s75
  %s78 = scalar_select 0, %s77, %s75
  $region1: #{vae_forward.1} parent=0
    #allocation4 [shape = 'u8[28672]{0}', space=vmem, size = 0x7000, scoped, tag = 'output window, operand 0, single buffered']
    #allocation5 [shape = 's32[1]{0}', space=sflag, size = 0x4, scoped, tag = 'scoped memory for vae_forward.1']
    #allocation6 [shape = 's32[1]{0}', space=sflag, size = 0x4, scoped, tag = 'scoped memory for vae_forward.1']
    #allocation7 [shape = 'u8[512]{0}', space=smem, size = 0x200, scoped, tag = 'output window, operand 1, single buffered']
    %79 = vsyncpa [#allocation5], 0
    %80 = vsyncpa [#allocation6], 0
    // Predicated region
    $region2: #{vae_forward.1} parent=1 // pred_check
      _
    $region3: #{vae_forward.1} parent=1 // pred_check_branch
      %82 = sbr.rel (0) target = $region5
    $region4: #{vae_forward.1} parent=1 // pred_region
      _
    $region5: #{vae_forward.1} parent=1 // pred_fallthru
      _
    // Predicated region
    $region6: #{vae_forward.1} parent=1 // pred_check
      _
    $region7: #{vae_forward.1} parent=1 // pred_check_branch
      %84 = sbr.rel (0) target = $region9
    $region8: #{vae_forward.1} parent=1 // pred_region
      _
    $region9: #{vae_forward.1} parent=1 // pred_fallthru
      _
    // Predicated region
    $region10: #{vae_forward.1} parent=1 // pred_check
      _
    $region11: #{vae_forward.1} parent=1 // pred_check_branch
      %86 = sbr.rel (0) target = $region13
    $region12: #{vae_forward.1} parent=1 // pred_region
      _
    $region13: #{vae_forward.1} parent=1 // pred_fallthru
      _
    // Predicated region
    $region14: #{vae_forward.1} parent=1 // pred_check
      _
    $region15: #{vae_forward.1} parent=1 // pred_check_branch
      %88 = sbr.rel (0) target = $region17
    $region16: #{vae_forward.1} parent=1 // pred_region
      _
    $region17: #{vae_forward.1} parent=1 // pred_fallthru
      _
    // Predicated region
    $region18: #{vae_forward.1} parent=1 // pred_check
      _
    $region19: #{vae_forward.1} parent=1 // pred_check_branch
      %90 = sbr.rel (0) target = $region21
    $region20: #{vae_forward.1} parent=1 // pred_region
      _
    $region21: #{vae_forward.1} parent=1 // pred_fallthru
      _
    // Predicated region
    $region22: #{vae_forward.1} parent=1 // pred_check
      _
    $region23: #{vae_forward.1} parent=1 // pred_check_branch
      %92 = sbr.rel (0) target = $region25
    $region24: #{vae_forward.1} parent=1 // pred_region
      _
    $region25: #{vae_forward.1} parent=1 // pred_fallthru
      _
    // Predicated region
    $region26: #{vae_forward.1} parent=1 // pred_check
      _
    $region27: #{vae_forward.1} parent=1 // pred_check_branch
      %94 = sbr.rel (0) target = $region29
    $region28: #{vae_forward.1} parent=1 // pred_region
      _
    $region29: #{vae_forward.1} parent=1 // pred_fallthru
      _
    // Predicated region
    $region30: #{vae_forward.1} parent=1 // pred_check
      _
    $region31: #{vae_forward.1} parent=1 // pred_check_branch
      %96 = sbr.rel (0) target = $region33
    $region32: #{vae_forward.1} parent=1 // pred_region
      _
    $region33: #{vae_forward.1} parent=1 // pred_fallthru
      _
    // Predicated region
    $region34: #{vae_forward.1} parent=1 // pred_check
      _
    $region35: #{vae_forward.1} parent=1 // pred_check_branch
      %98 = sbr.rel (0) target = $region37
    $region36: #{vae_forward.1} parent=1 // pred_region
      _
    $region37: #{vae_forward.1} parent=1 // pred_fallthru
      _
    // Predicated region
    $region38: #{vae_forward.1} parent=1 // pred_check
      _
    $region39: #{vae_forward.1} parent=1 // pred_check_branch
      %100 = sbr.rel (0) target = $region41
    $region40: #{vae_forward.1} parent=1 // pred_region
      _
    $region41: #{vae_forward.1} parent=1 // pred_fallthru
      _
    // Predicated region
    $region42: #{vae_forward.1} parent=1 // pred_check
      _
    $region43: #{vae_forward.1} parent=1 // pred_check_branch
      %102 = sbr.rel (0) target = $region45
    $region44: #{vae_forward.1} parent=1 // pred_region
      _
    $region45: #{vae_forward.1} parent=1 // pred_fallthru
      _
    // Predicated region
    $region46: #{vae_forward.1} parent=1 // pred_check
      _
    $region47: #{vae_forward.1} parent=1 // pred_check_branch
      %104 = sbr.rel (0) target = $region49
    $region48: #{vae_forward.1} parent=1 // pred_region
      _
    $region49: #{vae_forward.1} parent=1 // pred_fallthru
      _
    // Predicated region
    $region50: #{vae_forward.1} parent=1 // pred_check
      _
    $region51: #{vae_forward.1} parent=1 // pred_check_branch
      %106 = sbr.rel (0) target = $region53
    $region52: #{vae_forward.1} parent=1 // pred_region
      _
    $region53: #{vae_forward.1} parent=1 // pred_fallthru
      _
    // Predicated region
    $region54: #{vae_forward.1} parent=1 // pred_check
      _
    $region55: #{vae_forward.1} parent=1 // pred_check_branch
      %108 = sbr.rel (0) target = $region57
    $region56: #{vae_forward.1} parent=1 // pred_region
      _
    $region57: #{vae_forward.1} parent=1 // pred_fallthru
      _
    // Predicated region
    $region58: #{vae_forward.1} parent=1 // pred_check
      _
    $region59: #{vae_forward.1} parent=1 // pred_check_branch
      %110 = sbr.rel (0) target = $region61
    $region60: #{vae_forward.1} parent=1 // pred_region
      _
    $region61: #{vae_forward.1} parent=1 // pred_fallthru
      _
    // Predicated region
    $region62: #{vae_forward.1} parent=1 // pred_check
      _
    $region63: #{vae_forward.1} parent=1 // pred_check_branch
      %112 = sbr.rel (0) target = $region65
    $region64: #{vae_forward.1} parent=1 // pred_region
      _
    $region65: #{vae_forward.1} parent=1 // pred_fallthru
      _
    // Predicated region
    $region66: #{vae_forward.1} parent=1 // pred_check
      _
    $region67: #{vae_forward.1} parent=1 // pred_check_branch
      %114 = sbr.rel (0) target = $region69
    $region68: #{vae_forward.1} parent=1 // pred_region
      _
    $region69: #{vae_forward.1} parent=1 // pred_fallthru
      _
    // Predicated region
    $region70: #{vae_forward.1} parent=1 // pred_check
      _
    $region71: #{vae_forward.1} parent=1 // pred_check_branch
      %116 = sbr.rel (0) target = $region73
    $region72: #{vae_forward.1} parent=1 // pred_region
      _
    $region73: #{vae_forward.1} parent=1 // pred_fallthru
      _
    // Predicated region
    $region74: #{vae_forward.1} parent=1 // pred_check
      _
    $region75: #{vae_forward.1} parent=1 // pred_check_branch
      %118 = sbr.rel (0) target = $region77
    $region76: #{vae_forward.1} parent=1 // pred_region
      _
    $region77: #{vae_forward.1} parent=1 // pred_fallthru
      _
    // Predicated region
    $region78: #{vae_forward.1} parent=1 // pred_check
      _
    $region79: #{vae_forward.1} parent=1 // pred_check_branch
      %120 = sbr.rel (0) target = $region81
    $region80: #{vae_forward.1} parent=1 // pred_region
      _
    $region81: #{vae_forward.1} parent=1 // pred_fallthru
      _
    // Predicated region
    $region82: #{vae_forward.1} parent=1 // pred_check
      _
    $region83: #{vae_forward.1} parent=1 // pred_check_branch
      %122 = sbr.rel (0) target = $region85
    $region84: #{vae_forward.1} parent=1 // pred_region
      _
    $region85: #{vae_forward.1} parent=1 // pred_fallthru
      _
    // Predicated region
    $region86: #{vae_forward.1} parent=1 // pred_check
      _
    $region87: #{vae_forward.1} parent=1 // pred_check_branch
      %124 = sbr.rel (0) target = $region89
    $region88: #{vae_forward.1} parent=1 // pred_region
      _
    $region89: #{vae_forward.1} parent=1 // pred_fallthru
      _
    // Predicated region
    $region90: #{vae_forward.1} parent=1 // pred_check
      _
    $region91: #{vae_forward.1} parent=1 // pred_check_branch
      %126 = sbr.rel (0) target = $region93
    $region92: #{vae_forward.1} parent=1 // pred_region
      _
    $region93: #{vae_forward.1} parent=1 // pred_fallthru
      _
    // Predicated region
    $region94: #{vae_forward.1} parent=1 // pred_check
      _
    $region95: #{vae_forward.1} parent=1 // pred_check_branch
      %128 = sbr.rel (0) target = $region97
    $region96: #{vae_forward.1} parent=1 // pred_region
      _
    $region97: #{vae_forward.1} parent=1 // pred_fallthru
      _
    // Predicated region
    $region98: #{vae_forward.1} parent=1 // pred_check
      _
    $region99: #{vae_forward.1} parent=1 // pred_check_branch
      %130 = sbr.rel (0) target = $region101
    $region100: #{vae_forward.1} parent=1 // pred_region
      _
    $region101: #{vae_forward.1} parent=1 // pred_fallthru
      _
    // Predicated region
    $region102: #{vae_forward.1} parent=1 // pred_check
      _
    $region103: #{vae_forward.1} parent=1 // pred_check_branch
      %132 = sbr.rel (0) target = $region105
    $region104: #{vae_forward.1} parent=1 // pred_region
      _
    $region105: #{vae_forward.1} parent=1 // pred_fallthru
      _
    // Predicated region
    $region106: #{vae_forward.1} parent=1 // pred_check
      _
    $region107: #{vae_forward.1} parent=1 // pred_check_branch
      %134 = sbr.rel (0) target = $region109
    $region108: #{vae_forward.1} parent=1 // pred_region
      _
    $region109: #{vae_forward.1} parent=1 // pred_fallthru
      _
    // Predicated region
    $region110: #{vae_forward.1} parent=1 // pred_check
      _
    $region111: #{vae_forward.1} parent=1 // pred_check_branch
      %136 = sbr.rel (0) target = $region113
    $region112: #{vae_forward.1} parent=1 // pred_region
      _
    $region113: #{vae_forward.1} parent=1 // pred_fallthru
      _
    // Predicated region
    $region114: #{vae_forward.1} parent=1 // pred_check
      _
    $region115: #{vae_forward.1} parent=1 // pred_check_branch
      %138 = sbr.rel (0) target = $region117
    $region116: #{vae_forward.1} parent=1 // pred_region
      _
    $region117: #{vae_forward.1} parent=1 // pred_fallthru
      _
    // Predicated region
    $region118: #{vae_forward.1} parent=1 // pred_check
      _
    $region119: #{vae_forward.1} parent=1 // pred_check_branch
      %140 = sbr.rel (0) target = $region121
    $region120: #{vae_forward.1} parent=1 // pred_region
      _
    $region121: #{vae_forward.1} parent=1 // pred_fallthru
      _
    // Predicated region
    $region122: #{vae_forward.1} parent=1 // pred_check
      _
    $region123: #{vae_forward.1} parent=1 // pred_check_branch
      %142 = sbr.rel (0) target = $region125
    $region124: #{vae_forward.1} parent=1 // pred_region
      _
    $region125: #{vae_forward.1} parent=1 // pred_fallthru
      _
    // Predicated region
    $region126: #{vae_forward.1} parent=1 // pred_check
      _
    $region127: #{vae_forward.1} parent=1 // pred_check_branch
      %144 = sbr.rel (0) target = $region129
    $region128: #{vae_forward.1} parent=1 // pred_region
      _
    $region129: #{vae_forward.1} parent=1 // pred_fallthru
      _
    // Predicated region
    $region130: #{vae_forward.1} parent=1 // pred_check
      _
    $region131: #{vae_forward.1} parent=1 // pred_check_branch
      %146 = sbr.rel (0) target = $region133
    $region132: #{vae_forward.1} parent=1 // pred_region
      _
    $region133: #{vae_forward.1} parent=1 // pred_fallthru
      _
    // Predicated region
    $region134: #{vae_forward.1} parent=1 // pred_check
      _
    $region135: #{vae_forward.1} parent=1 // pred_check_branch
      %148 = sbr.rel (0) target = $region137
    $region136: #{vae_forward.1} parent=1 // pred_region
      _
    $region137: #{vae_forward.1} parent=1 // pred_fallthru
      _
    // Predicated region
    $region138: #{vae_forward.1} parent=1 // pred_check
      _
    $region139: #{vae_forward.1} parent=1 // pred_check_branch
      %150 = sbr.rel (0) target = $region141
    $region140: #{vae_forward.1} parent=1 // pred_region
      _
    $region141: #{vae_forward.1} parent=1 // pred_fallthru
      _
    %v151 = vld [vmem:[%s1] sm:$0xff]
    %v152 = vld [vmem:[%s1 + $0x8] sm:$0xff]
    %v153 = vld [vmem:[%s1 + $0x10] sm:$0xff]
    %v154 = vld [vmem:[%s1 + $0x18] sm:$0xff]
    %v155 = vld [vmem:[%s1 + $0x20] sm:$0xff]
    %v156 = vld [vmem:[%s1 + $0x28] sm:$0xff]
    %v157 = vld [vmem:[%s1 + $0x30] sm:$0xff]
    %v158 = vld [vmem:[%s5] sm:$0xff]
    %v159 = vld [vmem:[%s5 + $0x8] sm:$0xff]
    %v160 = vld [vmem:[%s5 + $0x10] sm:$0xff]
    %v161 = vld [vmem:[%s5 + $0x18] sm:$0xf]
    %vm162 = vcmask 457728
    %v164 = vsel %vm162, %v158, 0
    %v167 = vsel %vm162, %v159, 0
    %v170 = vsel %vm162, %v160, 0
    %v173 = vsel %vm162, %v161, 0
    %175 = vmatpush.msra.mxu0 0.0
    %176 = vmatpush.msra.mxu0 0.0
    %177 = vmatpush.msra.mxu0 0.0
    %178 = vmatpush.msra.mxu0 0.0
    %179 = vmatpush.msra.mxu0 0.0
    %180 = vmatpush.msra.mxu0 0.0
    %181 = vmatpush.msra.mxu0 0.0
    %182 = vmatpush.msra.mxu0 0.0
    %183 = vmatpush.msra.mxu0 0.0
    %184 = vmatpush.msra.mxu0 %v157
    %185 = vmatpush.msra.mxu0 %v156
    %186 = vmatpush.msra.mxu0 %v155
    %187 = vmatpush.msra.mxu0 %v154
    %188 = vmatpush.msra.mxu0 %v153
    %189 = vmatpush.msra.mxu0 %v152
    %190 = vmatpush.msra.mxu0 %v151
    %191 = vmatmul.f32.gmra.mxu0 %v164
    %v192 = vpop.f32.mrf.mxu0
    %v193 = vadd.f32 0.0, %v192
    %194 = vmatmul.f32.gmra.mxu0 %v167
    %v195 = vpop.f32.mrf.mxu0
    %v196 = vadd.f32 0.0, %v195
    %197 = vmatmul.f32.gmra.mxu0 %v170
    %v198 = vpop.f32.mrf.mxu0
    %v199 = vadd.f32 0.0, %v198
    %200 = vmatmul.f32.gmra.mxu0 %v173
    %v201 = vpop.f32.mrf.mxu0
    %v202 = vadd.f32 0.0, %v201
    %203 = vdwg.mxu0
    %v204 = vld [vmem:[%s7] sm:$0xff]
    %v205 = vld [vmem:[%s7 + $0x8] sm:$0xff]
    %v206 = vld [vmem:[%s7 + $0x10] sm:$0xff]
    %v207 = vld [vmem:[%s7 + $0x18] sm:$0xf]
    %s208 = scalar_lea.vmem %s5, 32
    %v209 = vld [vmem:[%s208] sm:$0xff]
    %v210 = vld [vmem:[%s208 + $0x8] sm:$0xff]
    %v211 = vld [vmem:[%s208 + $0x10] sm:$0xff]
    %v212 = vld [vmem:[%s208 + $0x18] sm:$0xf]
    %v214 = vsel %vm162, %v209, 0
    %v217 = vsel %vm162, %v210, 0
    %v220 = vsel %vm162, %v211, 0
    %v223 = vsel %vm162, %v212, 0
    %225 = vmatpush.msra.mxu0 0.0
    %226 = vmatpush.msra.mxu0 0.0
    %227 = vmatpush.msra.mxu0 0.0
    %228 = vmatpush.msra.mxu0 0.0
    %229 = vmatpush.msra.mxu0 0.0
    %230 = vmatpush.msra.mxu0 0.0
    %231 = vmatpush.msra.mxu0 0.0
    %232 = vmatpush.msra.mxu0 0.0
    %233 = vmatpush.msra.mxu0 0.0
    %234 = vmatpush.msra.mxu0 %v157
    %235 = vmatpush.msra.mxu0 %v156
    %236 = vmatpush.msra.mxu0 %v155
    %237 = vmatpush.msra.mxu0 %v154
    %238 = vmatpush.msra.mxu0 %v153
    %239 = vmatpush.msra.mxu0 %v152
    %240 = vmatpush.msra.mxu0 %v151
    %241 = vmatmul.f32.gmra.mxu0 %v214
    %v242 = vpop.f32.mrf.mxu0
    %v243 = vadd.f32 0.0, %v242
    %244 = vmatmul.f32.gmra.mxu0 %v217
    %v245 = vpop.f32.mrf.mxu0
    %v246 = vadd.f32 0.0, %v245
    %247 = vmatmul.f32.gmra.mxu0 %v220
    %v248 = vpop.f32.mrf.mxu0
    %v249 = vadd.f32 0.0, %v248
    %250 = vmatmul.f32.gmra.mxu0 %v223
    %v251 = vpop.f32.mrf.mxu0
    %v252 = vadd.f32 0.0, %v251
    %253 = vdwg.mxu0
    %s254 = scalar_lea.vmem %s7, 32
    %v255 = vld [vmem:[%s254] sm:$0xff]
    %v256 = vld [vmem:[%s254 + $0x8] sm:$0xff]
    %v257 = vld [vmem:[%s254 + $0x10] sm:$0xff]
    %v258 = vld [vmem:[%s254 + $0x18] sm:$0xf]
    %vm259 = vcmask 228352
    %v261 = vsel %vm259, %v243, 0
    %v264 = vsel %vm259, %v246, 0
    %v267 = vsel %vm259, %v249, 0
    %v270 = vsel %vm259, %v252, 0
    %vm272 = vcmask 1043456
    %v274 = vsel %vm272, %v258, 0
    %276 = vmatpush.msra.mxu0 0.0
    %277 = vmatpush.msra.mxu0 0.0
    %278 = vmatpush.msra.mxu0 0.0
    %279 = vmatpush.msra.mxu0 0.0
    %280 = vmatpush.msra.mxu0 0.0
    %281 = vmatpush.msra.mxu0 0.0
    %282 = vmatpush.msra.mxu0 0.0
    %283 = vmatpush.msra.mxu0 0.0
    %284 = vmatpush.msra.mxu0 0.0
    %285 = vmatpush.msra.mxu0 0.0
    %286 = vmatpush.msra.mxu0 0.0
    %287 = vmatpush.msra.mxu0 0.0
    %288 = vmatpush.msra.mxu0 %v274
    %289 = vmatpush.msra.mxu0 %v257
    %290 = vmatpush.msra.mxu0 %v256
    %291 = vmatpush.msra.mxu0 %v255
    %292 = vmatmul.f32.gmra.mxu0 %v261
    %v293 = vpop.f32.mrf.mxu0
    %v294 = vadd.f32 0.0, %v293
    %295 = vmatmul.f32.gmra.mxu0 %v264
    %v296 = vpop.f32.mrf.mxu0
    %v297 = vadd.f32 0.0, %v296
    %298 = vmatmul.f32.gmra.mxu0 %v267
    %v299 = vpop.f32.mrf.mxu0
    %v300 = vadd.f32 0.0, %v299
    %301 = vmatmul.f32.gmra.mxu0 %v270
    %v302 = vpop.f32.mrf.mxu0
    %v303 = vadd.f32 0.0, %v302
    %304 = vdwg.mxu0
    %v306 = vsel %vm259, %v193, 0
    %v309 = vsel %vm259, %v196, 0
    %v312 = vsel %vm259, %v199, 0
    %v315 = vsel %vm259, %v202, 0
    %v318 = vsel %vm272, %v207, 0
    %320 = vmatpush.msra.mxu0 0.0
    %321 = vmatpush.msra.mxu0 0.0
    %322 = vmatpush.msra.mxu0 0.0
    %323 = vmatpush.msra.mxu0 0.0
    %324 = vmatpush.msra.mxu0 0.0
    %325 = vmatpush.msra.mxu0 0.0
    %326 = vmatpush.msra.mxu0 0.0
    %327 = vmatpush.msra.mxu0 0.0
    %328 = vmatpush.msra.mxu0 0.0
    %329 = vmatpush.msra.mxu0 0.0
    %330 = vmatpush.msra.mxu0 0.0
    %331 = vmatpush.msra.mxu0 0.0
    %332 = vmatpush.msra.mxu0 %v318
    %333 = vmatpush.msra.mxu0 %v206
    %334 = vmatpush.msra.mxu0 %v205
    %335 = vmatpush.msra.mxu0 %v204
    %336 = vmatmul.f32.gmra.mxu0 %v306
    %v337 = vpop.f32.mrf.mxu0
    %v338 = vadd.f32 %v294, %v337
    %339 = vmatmul.f32.gmra.mxu0 %v309
    %v340 = vpop.f32.mrf.mxu0
    %v341 = vadd.f32 %v297, %v340
    %342 = vmatmul.f32.gmra.mxu0 %v312
    %v343 = vpop.f32.mrf.mxu0
    %v344 = vadd.f32 %v300, %v343
    %345 = vmatmul.f32.gmra.mxu0 %v315
    %v346 = vpop.f32.mrf.mxu0
    %v347 = vadd.f32 %v303, %v346
    %348 = vdwg.mxu0
    %s349 = scalar_lea.vmem %s5, 64
    %v350 = vld [vmem:[%s349] sm:$0xff]
    %v351 = vld [vmem:[%s349 + $0x8] sm:$0xff]
    %v352 = vld [vmem:[%s349 + $0x10] sm:$0xff]
    %v353 = vld [vmem:[%s349 + $0x18] sm:$0xf]
    %v355 = vsel %vm162, %v350, 0
    %v358 = vsel %vm162, %v351, 0
    %v361 = vsel %vm162, %v352, 0
    %v364 = vsel %vm162, %v353, 0
    %366 = vmatpush.msra.mxu0 0.0
    %367 = vmatpush.msra.mxu0 0.0
    %368 = vmatpush.msra.mxu0 0.0
    %369 = vmatpush.msra.mxu0 0.0
    %370 = vmatpush.msra.mxu0 0.0
    %371 = vmatpush.msra.mxu0 0.0
    %372 = vmatpush.msra.mxu0 0.0
    %373 = vmatpush.msra.mxu0 0.0
    %374 = vmatpush.msra.mxu0 0.0
    %375 = vmatpush.msra.mxu0 %v157
    %376 = vmatpush.msra.mxu0 %v156
    %377 = vmatpush.msra.mxu0 %v155
    %378 = vmatpush.msra.mxu0 %v154
    %379 = vmatpush.msra.mxu0 %v153
    %380 = vmatpush.msra.mxu0 %v152
    %381 = vmatpush.msra.mxu0 %v151
    %382 = vmatmul.f32.gmra.mxu0 %v355
    %v383 = vpop.f32.mrf.mxu0
    %v384 = vadd.f32 0.0, %v383
    %385 = vmatmul.f32.gmra.mxu0 %v358
    %v386 = vpop.f32.mrf.mxu0
    %v387 = vadd.f32 0.0, %v386
    %388 = vmatmul.f32.gmra.mxu0 %v361
    %v389 = vpop.f32.mrf.mxu0
    %v390 = vadd.f32 0.0, %v389
    %391 = vmatmul.f32.gmra.mxu0 %v364
    %v392 = vpop.f32.mrf.mxu0
    %v393 = vadd.f32 0.0, %v392
    %394 = vdwg.mxu0
    %s395 = scalar_lea.vmem %s7, 64
    %v396 = vld [vmem:[%s395] sm:$0xff]
    %v397 = vld [vmem:[%s395 + $0x8] sm:$0xff]
    %v398 = vld [vmem:[%s395 + $0x10] sm:$0xff]
    %v399 = vld [vmem:[%s395 + $0x18] sm:$0xf]
    %v401 = vsel %vm259, %v384, 0
    %v404 = vsel %vm259, %v387, 0
    %v407 = vsel %vm259, %v390, 0
    %v410 = vsel %vm259, %v393, 0
    %v413 = vsel %vm272, %v399, 0
    %415 = vmatpush.msra.mxu0 0.0
    %416 = vmatpush.msra.mxu0 0.0
    %417 = vmatpush.msra.mxu0 0.0
    %418 = vmatpush.msra.mxu0 0.0
    %419 = vmatpush.msra.mxu0 0.0
    %420 = vmatpush.msra.mxu0 0.0
    %421 = vmatpush.msra.mxu0 0.0
    %422 = vmatpush.msra.mxu0 0.0
    %423 = vmatpush.msra.mxu0 0.0
    %424 = vmatpush.msra.mxu0 0.0
    %425 = vmatpush.msra.mxu0 0.0
    %426 = vmatpush.msra.mxu0 0.0
    %427 = vmatpush.msra.mxu0 %v413
    %428 = vmatpush.msra.mxu0 %v398
    %429 = vmatpush.msra.mxu0 %v397
    %430 = vmatpush.msra.mxu0 %v396
    %431 = vmatmul.f32.gmra.mxu0 %v401
    %v432 = vpop.f32.mrf.mxu0
    %v433 = vadd.f32 0.0, %v432
    %434 = vmatmul.f32.gmra.mxu0 %v404
    %v435 = vpop.f32.mrf.mxu0
    %v436 = vadd.f32 0.0, %v435
    %437 = vmatmul.f32.gmra.mxu0 %v407
    %v438 = vpop.f32.mrf.mxu0
    %v439 = vadd.f32 0.0, %v438
    %440 = vmatmul.f32.gmra.mxu0 %v410
    %v441 = vpop.f32.mrf.mxu0
    %v442 = vadd.f32 0.0, %v441
    %443 = vdwg.mxu0
    %v444 = vadd.f32 %v338, %v433
    %v445 = vadd.f32 %v341, %v436
    %v446 = vadd.f32 %v344, %v439
    %v447 = vadd.f32 %v347, %v442
    %v448 = vld [vmem:[%s9] sm:$0x1]
    %v450 = vperm.slane %v448, 0
    %v452 = vadd.f32 %v444, %v450
    %v453 = vadd.f32 %v445, %v450
    %v454 = vadd.f32 %v446, %v450
    %v455 = vadd.f32 %v447, %v450
    %v456 = vmax.f32 %v452, 0.0
    %v457 = vmax.f32 %v453, 0.0
    %v458 = vmax.f32 %v454, 0.0
    %v459 = vmax.f32 %v455, 0.0
    %v460 = vld [vmem:[%s11] sm:$0xff]
    %v461 = vld [vmem:[%s11 + $0x8] sm:$0x3f]
    %v463 = vsel %vm259, %v460, 0
    %v466 = vsel %vm259, %v461, 0
    %v469 = vsel %vm272, %v459, 0
    %471 = vmatpush.msra.mxu0 0.0
    %472 = vmatpush.msra.mxu0 0.0
    %473 = vmatpush.msra.mxu0 0.0
    %474 = vmatpush.msra.mxu0 0.0
    %475 = vmatpush.msra.mxu0 0.0
    %476 = vmatpush.msra.mxu0 0.0
    %477 = vmatpush.msra.mxu0 0.0
    %478 = vmatpush.msra.mxu0 0.0
    %479 = vmatpush.msra.mxu0 0.0
    %480 = vmatpush.msra.mxu0 0.0
    %481 = vmatpush.msra.mxu0 0.0
    %482 = vmatpush.msra.mxu0 0.0
    %483 = vmatpush.msra.mxu0 %v469
    %484 = vmatpush.msra.mxu0 %v458
    %485 = vmatpush.msra.mxu0 %v457
    %486 = vmatpush.msra.mxu0 %v456
    %487 = vmatmul.f32.gmra.mxu0 %v463
    %v488 = vpop.f32.mrf.mxu0
    %v489 = vadd.f32 0.0, %v488
    %490 = vmatmul.f32.gmra.mxu0 %v466
    %v491 = vpop.f32.mrf.mxu0
    %v492 = vadd.f32 0.0, %v491
    %493 = vdwg.mxu0
    %v494 = vld [vmem:[%s13] sm:$0xff]
    %v495 = vld [vmem:[%s13 + $0x8] sm:$0xff]
    %v496 = vld [vmem:[%s13 + $0x10] sm:$0xff]
    %v497 = vld [vmem:[%s13 + $0x18] sm:$0xff]
    %v498 = vld [vmem:[%s13 + $0x20] sm:$0xff]
    %v499 = vld [vmem:[%s13 + $0x28] sm:$0xff]
    %v500 = vld [vmem:[%s13 + $0x30] sm:$0xff]
    %v501 = vld [vmem:[%s13 + $0x38] sm:$0xff]
    %v502 = vld [vmem:[%s13 + $0x40] sm:$0xff]
    %v503 = vld [vmem:[%s13 + $0x48] sm:$0xff]
    %v504 = vld [vmem:[%s13 + $0x50] sm:$0xff]
    %v505 = vld [vmem:[%s13 + $0x58] sm:$0xff]
    %v506 = vld [vmem:[%s13 + $0x60] sm:$0xff]
    %v507 = vld [vmem:[%s13 + $0x68] sm:$0xff]
    %s508 = scalar_lea.vmem %s11, 16
    %v509 = vld [vmem:[%s508] sm:$0xff]
    %v510 = vld [vmem:[%s508 + $0x8] sm:$0x3f]
    %v512 = vsel %vm259, %v509, 0
    %v515 = vsel %vm259, %v510, 0
    %517 = vmatpush.msra.mxu0 0.0
    %518 = vmatpush.msra.mxu0 0.0
    %519 = vmatpush.msra.mxu0 0.0
    %520 = vmatpush.msra.mxu0 0.0
    %521 = vmatpush.msra.mxu0 0.0
    %522 = vmatpush.msra.mxu0 0.0
    %523 = vmatpush.msra.mxu0 0.0
    %524 = vmatpush.msra.mxu0 0.0
    %525 = vmatpush.msra.mxu0 0.0
    %526 = vmatpush.msra.mxu0 0.0
    %527 = vmatpush.msra.mxu0 0.0
    %528 = vmatpush.msra.mxu0 0.0
    %529 = vmatpush.msra.mxu0 %v469
    %530 = vmatpush.msra.mxu0 %v458
    %531 = vmatpush.msra.mxu0 %v457
    %532 = vmatpush.msra.mxu0 %v456
    %533 = vmatmul.f32.gmra.mxu0 %v512
    %v534 = vpop.f32.mrf.mxu0
    %v535 = vadd.f32 0.0, %v534
    %536 = vmatmul.f32.gmra.mxu0 %v515
    %v537 = vpop.f32.mrf.mxu0
    %v538 = vadd.f32 0.0, %v537
    %539 = vdwg.mxu0
    %s540 = scalar_lea.vmem %s13, 112
    %v541 = vld [vmem:[%s540] sm:$0xff]
    %v542 = vld [vmem:[%s540 + $0x8] sm:$0xff]
    %v543 = vld [vmem:[%s540 + $0x10] sm:$0xff]
    %v544 = vld [vmem:[%s540 + $0x18] sm:$0xff]
    %v545 = vld [vmem:[%s540 + $0x20] sm:$0xff]
    %v546 = vld [vmem:[%s540 + $0x28] sm:$0xff]
    %v547 = vld [vmem:[%s540 + $0x30] sm:$0xff]
    %v548 = vld [vmem:[%s540 + $0x38] sm:$0xff]
    %v549 = vld [vmem:[%s540 + $0x40] sm:$0xff]
    %v550 = vld [vmem:[%s540 + $0x48] sm:$0xff]
    %v551 = vld [vmem:[%s540 + $0x50] sm:$0xff]
    %v552 = vld [vmem:[%s540 + $0x58] sm:$0xff]
    %v553 = vld [vmem:[%s540 + $0x60] sm:$0xff]
    %v554 = vld [vmem:[%s540 + $0x68] sm:$0xff]
    %vm555 = vcmask 916480
    %v557 = vsel %vm555, %v535, 0
    %v560 = vsel %vm555, %v538, 0
    %562 = vmatpush.msra.mxu0 0.0
    %563 = vmatpush.msra.mxu0 0.0
    %564 = vmatpush.msra.mxu0 %v554
    %565 = vmatpush.msra.mxu0 %v553
    %566 = vmatpush.msra.mxu0 %v552
    %567 = vmatpush.msra.mxu0 %v551
    %568 = vmatpush.msra.mxu0 %v550
    %569 = vmatpush.msra.mxu0 %v549
    %570 = vmatpush.msra.mxu0 %v548
    %571 = vmatpush.msra.mxu0 %v547
    %572 = vmatpush.msra.mxu0 %v546
    %573 = vmatpush.msra.mxu0 %v545
    %574 = vmatpush.msra.mxu0 %v544
    %575 = vmatpush.msra.mxu0 %v543
    %576 = vmatpush.msra.mxu0 %v542
    %577 = vmatpush.msra.mxu0 %v541
    %578 = vmatmul.f32.gmra.mxu0 %v557
    %v579 = vpop.f32.mrf.mxu0
    %v580 = vadd.f32 0.0, %v579
    %581 = vmatmul.f32.gmra.mxu0 %v560
    %v582 = vpop.f32.mrf.mxu0
    %v583 = vadd.f32 0.0, %v582
    %584 = vdwg.mxu0
    %v586 = vsel %vm555, %v489, 0
    %v589 = vsel %vm555, %v492, 0
    %591 = vmatpush.msra.mxu0 0.0
    %592 = vmatpush.msra.mxu0 0.0
    %593 = vmatpush.msra.mxu0 %v507
    %594 = vmatpush.msra.mxu0 %v506
    %595 = vmatpush.msra.mxu0 %v505
    %596 = vmatpush.msra.mxu0 %v504
    %597 = vmatpush.msra.mxu0 %v503
    %598 = vmatpush.msra.mxu0 %v502
    %599 = vmatpush.msra.mxu0 %v501
    %600 = vmatpush.msra.mxu0 %v500
    %601 = vmatpush.msra.mxu0 %v499
    %602 = vmatpush.msra.mxu0 %v498
    %603 = vmatpush.msra.mxu0 %v497
    %604 = vmatpush.msra.mxu0 %v496
    %605 = vmatpush.msra.mxu0 %v495
    %606 = vmatpush.msra.mxu0 %v494
    %607 = vmatmul.f32.gmra.mxu0 %v586
    %v608 = vpop.f32.mrf.mxu0
    %v609 = vadd.f32 %v580, %v608
    %610 = vmatmul.f32.gmra.mxu0 %v589
    %v611 = vpop.f32.mrf.mxu0
    %v612 = vadd.f32 %v583, %v611
    %613 = vdwg.mxu0
    %s614 = scalar_lea.vmem %s11, 32
    %v615 = vld [vmem:[%s614] sm:$0xff]
    %v616 = vld [vmem:[%s614 + $0x8] sm:$0x3f]
    %v618 = vsel %vm259, %v615, 0
    %v621 = vsel %vm259, %v616, 0
    %623 = vmatpush.msra.mxu0 0.0
    %624 = vmatpush.msra.mxu0 0.0
    %625 = vmatpush.msra.mxu0 0.0
    %626 = vmatpush.msra.mxu0 0.0
    %627 = vmatpush.msra.mxu0 0.0
    %628 = vmatpush.msra.mxu0 0.0
    %629 = vmatpush.msra.mxu0 0.0
    %630 = vmatpush.msra.mxu0 0.0
    %631 = vmatpush.msra.mxu0 0.0
    %632 = vmatpush.msra.mxu0 0.0
    %633 = vmatpush.msra.mxu0 0.0
    %634 = vmatpush.msra.mxu0 0.0
    %635 = vmatpush.msra.mxu0 %v469
    %636 = vmatpush.msra.mxu0 %v458
    %637 = vmatpush.msra.mxu0 %v457
    %638 = vmatpush.msra.mxu0 %v456
    %639 = vmatmul.f32.gmra.mxu0 %v618
    %v640 = vpop.f32.mrf.mxu0
    %v641 = vadd.f32 0.0, %v640
    %642 = vmatmul.f32.gmra.mxu0 %v621
    %v643 = vpop.f32.mrf.mxu0
    %v644 = vadd.f32 0.0, %v643
    %645 = vdwg.mxu0
    %s646 = scalar_lea.vmem %s13, 224
    %v647 = vld [vmem:[%s646] sm:$0xff]
    %v648 = vld [vmem:[%s646 + $0x8] sm:$0xff]
    %v649 = vld [vmem:[%s646 + $0x10] sm:$0xff]
    %v650 = vld [vmem:[%s646 + $0x18] sm:$0xff]
    %v651 = vld [vmem:[%s646 + $0x20] sm:$0xff]
    %v652 = vld [vmem:[%s646 + $0x28] sm:$0xff]
    %v653 = vld [vmem:[%s646 + $0x30] sm:$0xff]
    %v654 = vld [vmem:[%s646 + $0x38] sm:$0xff]
    %v655 = vld [vmem:[%s646 + $0x40] sm:$0xff]
    %v656 = vld [vmem:[%s646 + $0x48] sm:$0xff]
    %v657 = vld [vmem:[%s646 + $0x50] sm:$0xff]
    %v658 = vld [vmem:[%s646 + $0x58] sm:$0xff]
    %v659 = vld [vmem:[%s646 + $0x60] sm:$0xff]
    %v660 = vld [vmem:[%s646 + $0x68] sm:$0xff]
    %v662 = vsel %vm555, %v641, 0
    %v665 = vsel %vm555, %v644, 0
    %667 = vmatpush.msra.mxu0 0.0
    %668 = vmatpush.msra.mxu0 0.0
    %669 = vmatpush.msra.mxu0 %v660
    %670 = vmatpush.msra.mxu0 %v659
    %671 = vmatpush.msra.mxu0 %v658
    %672 = vmatpush.msra.mxu0 %v657
    %673 = vmatpush.msra.mxu0 %v656
    %674 = vmatpush.msra.mxu0 %v655
    %675 = vmatpush.msra.mxu0 %v654
    %676 = vmatpush.msra.mxu0 %v653
    %677 = vmatpush.msra.mxu0 %v652
    %678 = vmatpush.msra.mxu0 %v651
    %679 = vmatpush.msra.mxu0 %v650
    %680 = vmatpush.msra.mxu0 %v649
    %681 = vmatpush.msra.mxu0 %v648
    %682 = vmatpush.msra.mxu0 %v647
    %683 = vmatmul.f32.gmra.mxu0 %v662
    %v684 = vpop.f32.mrf.mxu0
    %v685 = vadd.f32 0.0, %v684
    %686 = vmatmul.f32.gmra.mxu0 %v665
    %v687 = vpop.f32.mrf.mxu0
    %v688 = vadd.f32 0.0, %v687
    %689 = vdwg.mxu0
    %v690 = vadd.f32 %v609, %v685
    %v691 = vadd.f32 %v612, %v688
    %v692 = vld [vmem:[%s15] sm:$0x1]
    %v693 = vld [vmem:[%s17] sm:$0x1]
    %v694 = vld [vmem:[%s19] sm:$0xff]
    %v695 = vld [vmem:[%s19 + $0x8] sm:$0xff]
    %v696 = vld [vmem:[%s19 + $0x10] sm:$0xff]
    %v697 = vld [vmem:[%s19 + $0x18] sm:$0xff]
    %v698 = vld [vmem:[%s19 + $0x20] sm:$0xff]
    %v699 = vld [vmem:[%s19 + $0x28] sm:$0xff]
    %v700 = vld [vmem:[%s19 + $0x30] sm:$0xff]
    %v701 = vld [vmem:[%s19 + $0x38] sm:$0xff]
    %v702 = vld [vmem:[%s19 + $0x40] sm:$0xff]
    %v703 = vld [vmem:[%s19 + $0x48] sm:$0xff]
    %v704 = vld [vmem:[%s19 + $0x50] sm:$0xff]
    %v705 = vld [vmem:[%s19 + $0x58] sm:$0xff]
    %v706 = vld [vmem:[%s19 + $0x60] sm:$0xff]
    %v707 = vld [vmem:[%s19 + $0x68] sm:$0xff]
    %v708 = vld [vmem:[%s21] sm:$0xff]
    %v709 = vld [vmem:[%s21 + $0x8] sm:$0xff]
    %v710 = vsel %vm555, %v690, 0.0
    %vm711 = vcmask 914432
    %v712 = vsel %vm711, %v691, 0.0
    %v713 = vadd.f32 %v710, %v712
    %v714 = vrot.slane %v713, 4
    %v715 = vadd.f32 %v713, %v714
    %v716 = vrot.slane %v715, 2
    %v717 = vadd.f32 %v715, %v716
    %v718 = vrot.slane %v717, 1
    %v719 = vadd.f32 %v717, %v718
    %v721 = vsel %vm555, %v719, 0
    %723 = vmatpush.msra.mxu0 0.0
    %724 = vmatpush.msra.mxu0 0.0
    %725 = vmatpush.msra.mxu0 %v707
    %726 = vmatpush.msra.mxu0 %v706
    %727 = vmatpush.msra.mxu0 %v705
    %728 = vmatpush.msra.mxu0 %v704
    %729 = vmatpush.msra.mxu0 %v703
    %730 = vmatpush.msra.mxu0 %v702
    %731 = vmatpush.msra.mxu0 %v701
    %732 = vmatpush.msra.mxu0 %v700
    %733 = vmatpush.msra.mxu0 %v699
    %734 = vmatpush.msra.mxu0 %v698
    %735 = vmatpush.msra.mxu0 %v697
    %736 = vmatpush.msra.mxu0 %v696
    %737 = vmatpush.msra.mxu0 %v695
    %738 = vmatpush.msra.mxu0 %v694
    %739 = vmatmul.f32.gmra.mxu0 %v721
    %v740 = vpop.f32.mrf.mxu0
    %v741 = vadd.f32 0.0, %v740
    %742 = vdwg.mxu0
    %v743 = vmul.f32 %v741, 0.010204081
    %vm744 = vcmask 130048
    %v746 = vsel %vm744, %v743, 0
    %748 = vmatpush.msra.mxu0 0.0
    %749 = vmatpush.msra.mxu0 0.0
    %750 = vmatpush.msra.mxu0 0.0
    %751 = vmatpush.msra.mxu0 0.0
    %752 = vmatpush.msra.mxu0 0.0
    %753 = vmatpush.msra.mxu0 0.0
    %754 = vmatpush.msra.mxu0 0.0
    %755 = vmatpush.msra.mxu0 0.0
    %756 = vmatpush.msra.mxu0 0.0
    %757 = vmatpush.msra.mxu0 0.0
    %758 = vmatpush.msra.mxu0 0.0
    %759 = vmatpush.msra.mxu0 0.0
    %760 = vmatpush.msra.mxu0 0.0
    %761 = vmatpush.msra.mxu0 0.0
    %762 = vmatpush.msra.mxu0 %v709
    %763 = vmatpush.msra.mxu0 %v708
    %764 = vmatmul.f32.gmra.mxu0 %v746
    %v765 = vpop.f32.mrf.mxu0
    %v766 = vadd.f32 0.0, %v765
    %767 = vdwg.mxu0
    %v768 = vperm.slane %v766, 0
    %v769 = vsub.f32 %v690, %v768
    %v770 = vsub.f32 %v691, %v768
    %v771 = vmul.f32 %v769, %v769
    %v772 = vmul.f32 %v770, %v770
    %v773 = vsel %vm555, %v771, 0.0
    %v774 = vsel %vm711, %v772, 0.0
    %v775 = vadd.f32 %v773, %v774
    %v776 = vrot.slane %v775, 4
    %v777 = vadd.f32 %v775, %v776
    %v778 = vrot.slane %v777, 2
    %v779 = vadd.f32 %v777, %v778
    %v780 = vrot.slane %v779, 1
    %v781 = vadd.f32 %v779, %v780
    %v783 = vsel %vm555, %v781, 0
    %785 = vmatpush.msra.mxu0 0.0
    %786 = vmatpush.msra.mxu0 0.0
    %787 = vmatpush.msra.mxu0 %v707
    %788 = vmatpush.msra.mxu0 %v706
    %789 = vmatpush.msra.mxu0 %v705
    %790 = vmatpush.msra.mxu0 %v704
    %791 = vmatpush.msra.mxu0 %v703
    %792 = vmatpush.msra.mxu0 %v702
    %793 = vmatpush.msra.mxu0 %v701
    %794 = vmatpush.msra.mxu0 %v700
    %795 = vmatpush.msra.mxu0 %v699
    %796 = vmatpush.msra.mxu0 %v698
    %797 = vmatpush.msra.mxu0 %v697
    %798 = vmatpush.msra.mxu0 %v696
    %799 = vmatpush.msra.mxu0 %v695
    %800 = vmatpush.msra.mxu0 %v694
    %801 = vmatmul.f32.gmra.mxu0 %v783
    %v802 = vpop.f32.mrf.mxu0
    %v803 = vadd.f32 0.0, %v802
    %804 = vdwg.mxu0
    %v805 = vmul.f32 %v803, 0.010204081
    %v806 = vadd.f32 %v805, 1e-05
    %v807 = vrsqrt.pop %v806
    %v808 = vmul.f32 %v807, %v806
    %v809 = vmul.f32 %v808, %v807
    %v810 = vmul.f32 0.5, %v809
    %v811 = vsub.f32 1.5, %v810
    %v812 = vmul.f32 %v807, %v811
    %vm813 = vweird.f32 %v806
    %vm814 = vweird.f32 %v807
    %vm815 = vmor %vm813, %vm814
    %v816 = vsel %vm815, %v807, %v812
    %v817 = vmul.f32 %v692, %v816
    %v819 = vsel %vm744, %v817, 0
    %821 = vmatpush.msra.mxu0 0.0
    %822 = vmatpush.msra.mxu0 0.0
    %823 = vmatpush.msra.mxu0 0.0
    %824 = vmatpush.msra.mxu0 0.0
    %825 = vmatpush.msra.mxu0 0.0
    %826 = vmatpush.msra.mxu0 0.0
    %827 = vmatpush.msra.mxu0 0.0
    %828 = vmatpush.msra.mxu0 0.0
    %829 = vmatpush.msra.mxu0 0.0
    %830 = vmatpush.msra.mxu0 0.0
    %831 = vmatpush.msra.mxu0 0.0
    %832 = vmatpush.msra.mxu0 0.0
    %833 = vmatpush.msra.mxu0 0.0
    %834 = vmatpush.msra.mxu0 0.0
    %835 = vmatpush.msra.mxu0 %v709
    %836 = vmatpush.msra.mxu0 %v708
    %837 = vmatmul.f32.gmra.mxu0 %v819
    %v838 = vpop.f32.mrf.mxu0
    %v839 = vadd.f32 0.0, %v838
    %840 = vdwg.mxu0
    %v841 = vperm.slane %v839, 0
    %v842 = vmul.f32 %v769, %v841
    %v843 = vmul.f32 %v770, %v841
    %v845 = vperm.slane %v693, 0
    %v847 = vadd.f32 %v842, %v845
    %v848 = vadd.f32 %v843, %v845
    %v849 = vmax.f32 %v847, 0.0
    %v850 = vmax.f32 %v848, 0.0
    %v851 = vld [vmem:[%s23] sm:$0x3f]
    %vm852 = vcmask 113664
    %v854 = vsel %vm852, %v851, 0
    %vm856 = vcmask 1045504
    %v858 = vsel %vm856, %v850, 0
    %860 = vmatpush.msra.mxu0 0.0
    %861 = vmatpush.msra.mxu0 0.0
    %862 = vmatpush.msra.mxu0 0.0
    %863 = vmatpush.msra.mxu0 0.0
    %864 = vmatpush.msra.mxu0 0.0
    %865 = vmatpush.msra.mxu0 0.0
    %866 = vmatpush.msra.mxu0 0.0
    %867 = vmatpush.msra.mxu0 0.0
    %868 = vmatpush.msra.mxu0 0.0
    %869 = vmatpush.msra.mxu0 0.0
    %870 = vmatpush.msra.mxu0 0.0
    %871 = vmatpush.msra.mxu0 0.0
    %872 = vmatpush.msra.mxu0 0.0
    %873 = vmatpush.msra.mxu0 0.0
    %874 = vmatpush.msra.mxu0 %v858
    %875 = vmatpush.msra.mxu0 %v849
    %876 = vmatmul.f32.gmra.mxu0 %v854
    %v877 = vpop.f32.mrf.mxu0
    %v878 = vadd.f32 0.0, %v877
    %879 = vdwg.mxu0
    %v880 = vld [vmem:[%s25] sm:$0xff]
    %v881 = vld [vmem:[%s25 + $0x8] sm:$0xff]
    %v882 = vld [vmem:[%s25 + $0x10] sm:$0xff]
    %v883 = vld [vmem:[%s25 + $0x18] sm:$0xff]
    %v884 = vld [vmem:[%s25 + $0x20] sm:$0xff]
    %v885 = vld [vmem:[%s25 + $0x28] sm:$0xff]
    %v886 = vld [vmem:[%s25 + $0x30] sm:$0xff]
    %v887 = vld [vmem:[%s25 + $0x38] sm:$0xff]
    %v888 = vld [vmem:[%s25 + $0x40] sm:$0xff]
    %v889 = vld [vmem:[%s25 + $0x48] sm:$0xff]
    %v890 = vld [vmem:[%s25 + $0x50] sm:$0xff]
    %v891 = vld [vmem:[%s25 + $0x58] sm:$0xff]
    %v892 = vld [vmem:[%s25 + $0x60] sm:$0xff]
    %v893 = vld [vmem:[%s25 + $0x68] sm:$0xff]
    %s894 = scalar_lea.vmem %s23, 8
    %v895 = vld [vmem:[%s894] sm:$0x3f]
    %v897 = vsel %vm852, %v895, 0
    %899 = vmatpush.msra.mxu0 0.0
    %900 = vmatpush.msra.mxu0 0.0
    %901 = vmatpush.msra.mxu0 0.0
    %902 = vmatpush.msra.mxu0 0.0
    %903 = vmatpush.msra.mxu0 0.0
    %904 = vmatpush.msra.mxu0 0.0
    %905 = vmatpush.msra.mxu0 0.0
    %906 = vmatpush.msra.mxu0 0.0
    %907 = vmatpush.msra.mxu0 0.0
    %908 = vmatpush.msra.mxu0 0.0
    %909 = vmatpush.msra.mxu0 0.0
    %910 = vmatpush.msra.mxu0 0.0
    %911 = vmatpush.msra.mxu0 0.0
    %912 = vmatpush.msra.mxu0 0.0
    %913 = vmatpush.msra.mxu0 %v858
    %914 = vmatpush.msra.mxu0 %v849
    %915 = vmatmul.f32.gmra.mxu0 %v897
    %v916 = vpop.f32.mrf.mxu0
    %v917 = vadd.f32 0.0, %v916
    %918 = vdwg.mxu0
    %s919 = scalar_lea.vmem %s25, 112
    %v920 = vld [vmem:[%s919] sm:$0xff]
    %v921 = vld [vmem:[%s919 + $0x8] sm:$0xff]
    %v922 = vld [vmem:[%s919 + $0x10] sm:$0xff]
    %v923 = vld [vmem:[%s919 + $0x18] sm:$0xff]
    %v924 = vld [vmem:[%s919 + $0x20] sm:$0xff]
    %v925 = vld [vmem:[%s919 + $0x28] sm:$0xff]
    %v926 = vld [vmem:[%s919 + $0x30] sm:$0xff]
    %v927 = vld [vmem:[%s919 + $0x38] sm:$0xff]
    %v928 = vld [vmem:[%s919 + $0x40] sm:$0xff]
    %v929 = vld [vmem:[%s919 + $0x48] sm:$0xff]
    %v930 = vld [vmem:[%s919 + $0x50] sm:$0xff]
    %v931 = vld [vmem:[%s919 + $0x58] sm:$0xff]
    %v932 = vld [vmem:[%s919 + $0x60] sm:$0xff]
    %v933 = vld [vmem:[%s919 + $0x68] sm:$0xff]
    %v935 = vsel %vm555, %v917, 0
    %937 = vmatpush.msra.mxu0 0.0
    %938 = vmatpush.msra.mxu0 0.0
    %939 = vmatpush.msra.mxu0 %v933
    %940 = vmatpush.msra.mxu0 %v932
    %941 = vmatpush.msra.mxu0 %v931
    %942 = vmatpush.msra.mxu0 %v930
    %943 = vmatpush.msra.mxu0 %v929
    %944 = vmatpush.msra.mxu0 %v928
    %945 = vmatpush.msra.mxu0 %v927
    %946 = vmatpush.msra.mxu0 %v926
    %947 = vmatpush.msra.mxu0 %v925
    %948 = vmatpush.msra.mxu0 %v924
    %949 = vmatpush.msra.mxu0 %v923
    %950 = vmatpush.msra.mxu0 %v922
    %951 = vmatpush.msra.mxu0 %v921
    %952 = vmatpush.msra.mxu0 %v920
    %953 = vmatmul.f32.gmra.mxu0 %v935
    %v954 = vpop.f32.mrf.mxu0
    %v955 = vadd.f32 0.0, %v954
    %956 = vdwg.mxu0
    %v958 = vsel %vm555, %v878, 0
    %960 = vmatpush.msra.mxu0 0.0
    %961 = vmatpush.msra.mxu0 0.0
    %962 = vmatpush.msra.mxu0 %v893
    %963 = vmatpush.msra.mxu0 %v892
    %964 = vmatpush.msra.mxu0 %v891
    %965 = vmatpush.msra.mxu0 %v890
    %966 = vmatpush.msra.mxu0 %v889
    %967 = vmatpush.msra.mxu0 %v888
    %968 = vmatpush.msra.mxu0 %v887
    %969 = vmatpush.msra.mxu0 %v886
    %970 = vmatpush.msra.mxu0 %v885
    %971 = vmatpush.msra.mxu0 %v884
    %972 = vmatpush.msra.mxu0 %v883
    %973 = vmatpush.msra.mxu0 %v882
    %974 = vmatpush.msra.mxu0 %v881
    %975 = vmatpush.msra.mxu0 %v880
    %976 = vmatmul.f32.gmra.mxu0 %v958
    %v977 = vpop.f32.mrf.mxu0
    %v978 = vadd.f32 %v955, %v977
    %979 = vdwg.mxu0
    %s980 = scalar_lea.vmem %s23, 16
    %v981 = vld [vmem:[%s980] sm:$0x3f]
    %v983 = vsel %vm852, %v981, 0
    %985 = vmatpush.msra.mxu0 0.0
    %986 = vmatpush.msra.mxu0 0.0
    %987 = vmatpush.msra.mxu0 0.0
    %988 = vmatpush.msra.mxu0 0.0
    %989 = vmatpush.msra.mxu0 0.0
    %990 = vmatpush.msra.mxu0 0.0
    %991 = vmatpush.msra.mxu0 0.0
    %992 = vmatpush.msra.mxu0 0.0
    %993 = vmatpush.msra.mxu0 0.0
    %994 = vmatpush.msra.mxu0 0.0
    %995 = vmatpush.msra.mxu0 0.0
    %996 = vmatpush.msra.mxu0 0.0
    %997 = vmatpush.msra.mxu0 0.0
    %998 = vmatpush.msra.mxu0 0.0
    %999 = vmatpush.msra.mxu0 %v858
    %1000 = vmatpush.msra.mxu0 %v849
    %1001 = vmatmul.f32.gmra.mxu0 %v983
    %v1002 = vpop.f32.mrf.mxu0
    %v1003 = vadd.f32 0.0, %v1002
    %1004 = vdwg.mxu0
    %s1005 = scalar_lea.vmem %s25, 224
    %v1006 = vld [vmem:[%s1005] sm:$0xff]
    %v1007 = vld [vmem:[%s1005 + $0x8] sm:$0xff]
    %v1008 = vld [vmem:[%s1005 + $0x10] sm:$0xff]
    %v1009 = vld [vmem:[%s1005 + $0x18] sm:$0xff]
    %v1010 = vld [vmem:[%s1005 + $0x20] sm:$0xff]
    %v1011 = vld [vmem:[%s1005 + $0x28] sm:$0xff]
    %v1012 = vld [vmem:[%s1005 + $0x30] sm:$0xff]
    %v1013 = vld [vmem:[%s1005 + $0x38] sm:$0xff]
    %v1014 = vld [vmem:[%s1005 + $0x40] sm:$0xff]
    %v1015 = vld [vmem:[%s1005 + $0x48] sm:$0xff]
    %v1016 = vld [vmem:[%s1005 + $0x50] sm:$0xff]
    %v1017 = vld [vmem:[%s1005 + $0x58] sm:$0xff]
    %v1018 = vld [vmem:[%s1005 + $0x60] sm:$0xff]
    %v1019 = vld [vmem:[%s1005 + $0x68] sm:$0xff]
    %v1021 = vsel %vm555, %v1003, 0
    %1023 = vmatpush.msra.mxu0 0.0
    %1024 = vmatpush.msra.mxu0 0.0
    %1025 = vmatpush.msra.mxu0 %v1019
    %1026 = vmatpush.msra.mxu0 %v1018
    %1027 = vmatpush.msra.mxu0 %v1017
    %1028 = vmatpush.msra.mxu0 %v1016
    %1029 = vmatpush.msra.mxu0 %v1015
    %1030 = vmatpush.msra.mxu0 %v1014
    %1031 = vmatpush.msra.mxu0 %v1013
    %1032 = vmatpush.msra.mxu0 %v1012
    %1033 = vmatpush.msra.mxu0 %v1011
    %1034 = vmatpush.msra.mxu0 %v1010
    %1035 = vmatpush.msra.mxu0 %v1009
    %1036 = vmatpush.msra.mxu0 %v1008
    %1037 = vmatpush.msra.mxu0 %v1007
    %1038 = vmatpush.msra.mxu0 %v1006
    %1039 = vmatmul.f32.gmra.mxu0 %v1021
    %v1040 = vpop.f32.mrf.mxu0
    %v1041 = vadd.f32 0.0, %v1040
    %1042 = vdwg.mxu0
    %v1043 = vadd.f32 %v978, %v1041
    %v1044 = vld [vmem:[%s27] sm:$0x1]
    %v1046 = vperm.slane %v1044, 0
    %v1048 = vadd.f32 %v1043, %v1046
    %v1049 = vmax.f32 %v1048, 0.0
    %vm1050 = vcmask 779264
    %1051 = vst.msk [vmem:[#allocation2] sm:$0x3] %vm1050, %v1049
    %1053 = vst.sshfl [vmem:[#allocation1] sm:$0xff pattern:$0x73625140] %v1049
    %s1054 = scalar_lea.vmem [#allocation1], 1
    %v1055 = vld [vmem:[%s1054] ss:$4 sm:$0xff]
    %1056 = vrot.lane.b32.xlu0 %v1055, 96
    %v1057 = vpop.permute.xlu0 %1056
    %v1058 = vrot.slane %v1057, 6
    %vm1059 = vcmask 785408
    %v1060 = vsel %vm1059, %v1058, %v1057
    %vm1062 = vcmask 1042176
    %vm1063 = vcmask 519170
    %vm1064 = vmor %vm1063, %vm1062
    %1065 = vst.msk [vmem:[#allocation2] sm:$0xf] %vm1064, %v1060
    %1066 = vst.sshfl [vmem:[#allocation1] sm:$0xff pattern:$0x73625140] %v1049
    %s1067 = scalar_lea.vmem [#allocation1], 2
    %v1068 = vld [vmem:[%s1067] ss:$4 sm:$0xff]
    %1069 = vrot.lane.b32.xlu0 %v1068, 64
    %v1070 = vpop.permute.xlu0 %1069
    %v1071 = vrot.slane %v1070, 6
    %vm1072 = vcmask 523264
    %v1073 = vsel %vm1072, %v1071, %v1070
    %vm1075 = vcmask 1041920
    %vm1076 = vcmask 257026
    %vm1077 = vmor %vm1076, %vm1075
    %1078 = vst.msk [vmem:[#allocation2 + $0x2] sm:$0xf] %vm1077, %v1073
    %v1079 = vld [vmem:[#allocation2] sm:$0x3f]
    %v1080 = vld [vmem:[%s29] sm:$0xff]
    %v1081 = vld [vmem:[%s29 + $0x8] sm:$0xff]
    %v1082 = vld [vmem:[%s29 + $0x10] sm:$0xff]
    %v1083 = vld [vmem:[%s29 + $0x18] sm:$0xff]
    %v1084 = vld [vmem:[%s29 + $0x20] sm:$0xff]
    %v1085 = vld [vmem:[%s29 + $0x28] sm:$0xff]
    %v1086 = vld [vmem:[%s29 + $0x30] sm:$0xff]
    %v1087 = vld [vmem:[%s29 + $0x38] sm:$0xff]
    %v1088 = vld [vmem:[%s29 + $0x40] sm:$0xff]
    %v1089 = vld [vmem:[%s29 + $0x48] sm:$0xff]
    %v1090 = vld [vmem:[%s29 + $0x50] sm:$0xff]
    %v1091 = vld [vmem:[%s29 + $0x58] sm:$0xff]
    %v1092 = vld [vmem:[%s29 + $0x60] sm:$0xff]
    %v1093 = vld [vmem:[%s29 + $0x68] sm:$0xff]
    %v1094 = vld [vmem:[%s29 + $0x70] sm:$0xff]
    %v1095 = vld [vmem:[%s29 + $0x78] sm:$0xff]
    %v1096 = vld [vmem:[%s29 + $0x80] sm:$0xff]
    %v1097 = vld [vmem:[%s29 + $0x88] sm:$0xff]
    %v1098 = vld [vmem:[%s29 + $0x90] sm:$0xff]
    %v1099 = vld [vmem:[%s29 + $0x98] sm:$0xff]
    %v1100 = vld [vmem:[%s29 + $0xa0] sm:$0xff]
    %v1101 = vld [vmem:[%s29 + $0xa8] sm:$0xff]
    %v1102 = vld [vmem:[%s29 + $0xb0] sm:$0xff]
    %v1103 = vld [vmem:[%s29 + $0xb8] sm:$0xff]
    %v1104 = vld [vmem:[%s29 + $0xc0] sm:$0xff]
    %v1105 = vld [vmem:[%s29 + $0xc8] sm:$0xff]
    %v1106 = vld [vmem:[%s29 + $0xd0] sm:$0xff]
    %v1107 = vld [vmem:[%s29 + $0xd8] sm:$0xff]
    %v1108 = vld [vmem:[%s29 + $0xe0] sm:$0xff]
    %v1109 = vld [vmem:[%s29 + $0xe8] sm:$0xff]
    %v1110 = vld [vmem:[%s29 + $0xf0] sm:$0xff]
    %v1111 = vld [vmem:[%s29 + $0xf8] sm:$0xff]
    %v1112 = vld [vmem:[%s29 + $0x100] sm:$0xff]
    %v1113 = vld [vmem:[%s29 + $0x108] sm:$0xff]
    %v1114 = vld [vmem:[%s29 + $0x110] sm:$0xff]
    %v1115 = vld [vmem:[%s29 + $0x118] sm:$0xff]
    %v1116 = vld [vmem:[%s31] sm:$0x1]
    %v1118 = vperm.slane %v1116, 0
    %1121 = vst [vmem:[#allocation1] ss:$4 sm:$0xff] %v1079
    %v1122 = vld.sshfl [vmem:[#allocation1] sm:$0xff pattern:$0x73625140]
    %v1123 = vld.sshfl [vmem:[#allocation1 + $0x8] sm:$0xff pattern:$0x73625140]
    %v1124 = vld.sshfl [vmem:[#allocation1 + $0x10] sm:$0xff pattern:$0x73625140]
    %vm1127 = vcmask 261120
    %v1128 = vsel %vm1127, %v1124, 0
    %1130 = vmatpush.msra.mxu0 %v1095
    %1131 = vmatpush.msra.mxu0 %v1094
    %1132 = vmatpush.msra.mxu0 %v1093
    %1133 = vmatpush.msra.mxu0 %v1092
    %1134 = vmatpush.msra.mxu0 %v1091
    %1135 = vmatpush.msra.mxu0 %v1090
    %1136 = vmatpush.msra.mxu0 %v1089
    %1137 = vmatpush.msra.mxu0 %v1088
    %1138 = vmatpush.msra.mxu0 %v1087
    %1139 = vmatpush.msra.mxu0 %v1086
    %1140 = vmatpush.msra.mxu0 %v1085
    %1141 = vmatpush.msra.mxu0 %v1084
    %1142 = vmatpush.msra.mxu0 %v1083
    %1143 = vmatpush.msra.mxu0 %v1082
    %1144 = vmatpush.msra.mxu0 %v1081
    %1145 = vmatpush.msra.mxu0 %v1080
    %1146 = vmatmul.f32.gmra.mxu0 %v1122
    %v1147 = vpop.f32.mrf.mxu0
    %v1148 = vadd.f32 %v1118, %v1147
    %1149 = vdwg.mxu0
    %1150 = vmatpush.msra.mxu0 %v1111
    %1151 = vmatpush.msra.mxu0 %v1110
    %1152 = vmatpush.msra.mxu0 %v1109
    %1153 = vmatpush.msra.mxu0 %v1108
    %1154 = vmatpush.msra.mxu0 %v1107
    %1155 = vmatpush.msra.mxu0 %v1106
    %1156 = vmatpush.msra.mxu0 %v1105
    %1157 = vmatpush.msra.mxu0 %v1104
    %1158 = vmatpush.msra.mxu0 %v1103
    %1159 = vmatpush.msra.mxu0 %v1102
    %1160 = vmatpush.msra.mxu0 %v1101
    %1161 = vmatpush.msra.mxu0 %v1100
    %1162 = vmatpush.msra.mxu0 %v1099
    %1163 = vmatpush.msra.mxu0 %v1098
    %1164 = vmatpush.msra.mxu0 %v1097
    %1165 = vmatpush.msra.mxu0 %v1096
    %1166 = vmatmul.f32.gmra.mxu0 %v1123
    %v1167 = vpop.f32.mrf.mxu0
    %v1168 = vadd.f32 %v1148, %v1167
    %1169 = vdwg.mxu0
    %1170 = vmatpush.msra.mxu0 0.0
    %1171 = vmatpush.msra.mxu0 0.0
    %1172 = vmatpush.msra.mxu0 0.0
    %1173 = vmatpush.msra.mxu0 0.0
    %1174 = vmatpush.msra.mxu0 0.0
    %1175 = vmatpush.msra.mxu0 0.0
    %1176 = vmatpush.msra.mxu0 0.0
    %1177 = vmatpush.msra.mxu0 0.0
    %1178 = vmatpush.msra.mxu0 0.0
    %1179 = vmatpush.msra.mxu0 0.0
    %1180 = vmatpush.msra.mxu0 0.0
    %1181 = vmatpush.msra.mxu0 0.0
    %1182 = vmatpush.msra.mxu0 %v1115
    %1183 = vmatpush.msra.mxu0 %v1114
    %1184 = vmatpush.msra.mxu0 %v1113
    %1185 = vmatpush.msra.mxu0 %v1112
    %1186 = vmatmul.f32.gmra.mxu0 %v1128
    %v1187 = vpop.f32.mrf.mxu0
    %v1188 = vadd.f32 %v1168, %v1187
    %1189 = vdwg.mxu0
    %v1190 = vmax.f32 %v1188, 0.0
    %v1191 = vld [vmem:[%s33] sm:$0xff]
    %v1192 = vld [vmem:[%s33 + $0x8] sm:$0xff]
    %v1193 = vld [vmem:[%s33 + $0x10] sm:$0xff]
    %v1194 = vld [vmem:[%s33 + $0x18] sm:$0xff]
    %v1195 = vld [vmem:[%s33 + $0x20] sm:$0xff]
    %v1196 = vld [vmem:[%s33 + $0x28] sm:$0xff]
    %v1197 = vld [vmem:[%s33 + $0x30] sm:$0xff]
    %v1198 = vld [vmem:[%s33 + $0x38] sm:$0xff]
    %v1199 = vld [vmem:[%s33 + $0x40] sm:$0xff]
    %v1200 = vld [vmem:[%s33 + $0x48] sm:$0xff]
    %v1201 = vld [vmem:[%s33 + $0x50] sm:$0xff]
    %v1202 = vld [vmem:[%s33 + $0x58] sm:$0xff]
    %v1203 = vld [vmem:[%s33 + $0x60] sm:$0xff]
    %v1204 = vld [vmem:[%s33 + $0x68] sm:$0xff]
    %v1205 = vld [vmem:[%s33 + $0x70] sm:$0xff]
    %v1206 = vld [vmem:[%s33 + $0x78] sm:$0xff]
    %v1207 = vld [vmem:[%s35] sm:$0x1]
    %v1209 = vperm.slane %v1207, 0
    %1211 = vmatpush.msra.mxu0 %v1206
    %1212 = vmatpush.msra.mxu0 %v1205
    %1213 = vmatpush.msra.mxu0 %v1204
    %1214 = vmatpush.msra.mxu0 %v1203
    %1215 = vmatpush.msra.mxu0 %v1202
    %1216 = vmatpush.msra.mxu0 %v1201
    %1217 = vmatpush.msra.mxu0 %v1200
    %1218 = vmatpush.msra.mxu0 %v1199
    %1219 = vmatpush.msra.mxu0 %v1198
    %1220 = vmatpush.msra.mxu0 %v1197
    %1221 = vmatpush.msra.mxu0 %v1196
    %1222 = vmatpush.msra.mxu0 %v1195
    %1223 = vmatpush.msra.mxu0 %v1194
    %1224 = vmatpush.msra.mxu0 %v1193
    %1225 = vmatpush.msra.mxu0 %v1192
    %1226 = vmatpush.msra.mxu0 %v1191
    %1227 = vmatmul.f32.gmra.mxu0 %v1190
    %v1228 = vpop.f32.mrf.mxu0
    %v1229 = vadd.f32 %v1209, %v1228
    %1230 = vdwg.mxu0
    %v1231 = vmul.f32 %v1229, 1.442695
    %v1232 = vpow.pop %v1231
    %v1233 = vld [vmem:[%s3] sm:$0x3]
    %1235 = vrot.lane.b32.xlu0 %v1233, 8
    %v1236 = vpop.permute.xlu0 %1235
    %v1238 = vmul.f32 %v1232, %v1236
    %1240 = vrot.lane.b32.xlu0 %v1238, 120
    %v1241 = vpop.permute.xlu0 %1240
    %v1243 = vadd.f32 %v1229, %v1241
    %v1244 = vmul.f32 %v1232, %v1232
    %v1245 = vmul.f32 %v1229, %v1229
    %1247 = vrot.lane.b32.xlu0 %v1245, 8
    %v1248 = vpop.permute.xlu0 %1247
    %v1250 = vadd.f32 %v1244, %v1248
    %v1251 = vsub.f32 %v1250, %v1229
    %v1252 = vsub.f32 %v1251, 0.5
    %1254 = vrot.lane.b32.xlu0 %v1252, 120
    %v1255 = vpop.permute.xlu0 %1254
    %vm1257 = vcmask 58368
    %v1258 = vsel %vm1257, %v1255, 0.0
    %1259 = vadd.xlane.f32.xlu0 %v1258
    %v1260 = vpop.xlane.xlu0 %1259
    %v1261 = vrot.slane %v1260, 4
    %v1262 = vadd.f32 %v1260, %v1261
    %v1263 = vrot.slane %v1262, 2
    %v1264 = vadd.f32 %v1262, %v1263
    %v1265 = vrot.slane %v1264, 1
    %v1266 = vadd.f32 %v1264, %v1265
    %s1267 = vtos %v1266
    %s1268 = scalar_lea.smem [#allocation7], 0
    %1269 = sst [smem:[%s1268]] %s1267
    %v1270 = vld [vmem:[%s37] sm:$0xff]
    %v1271 = vld [vmem:[%s39] sm:$0x1]
    %v1273 = vperm.slane %v1271, 0
    %vm1275 = vcmask 64512
    %v1277 = vsel %vm1275, %v1243, 0
    %1279 = vmatpush.msra.mxu0 0.0
    %1280 = vmatpush.msra.mxu0 0.0
    %1281 = vmatpush.msra.mxu0 0.0
    %1282 = vmatpush.msra.mxu0 0.0
    %1283 = vmatpush.msra.mxu0 0.0
    %1284 = vmatpush.msra.mxu0 0.0
    %1285 = vmatpush.msra.mxu0 0.0
    %1286 = vmatpush.msra.mxu0 0.0
    %1287 = vmatpush.msra.mxu0 0.0
    %1288 = vmatpush.msra.mxu0 0.0
    %1289 = vmatpush.msra.mxu0 0.0
    %1290 = vmatpush.msra.mxu0 0.0
    %1291 = vmatpush.msra.mxu0 0.0
    %1292 = vmatpush.msra.mxu0 0.0
    %1293 = vmatpush.msra.mxu0 0.0
    %1294 = vmatpush.msra.mxu0 %v1270
    %1295 = vmatmul.f32.gmra.mxu0 %v1277
    %v1296 = vpop.f32.mrf.mxu0
    %v1297 = vadd.f32 %v1273, %v1296
    %1298 = vdwg.mxu0
    %v1299 = vmax.f32 %v1297, 0.0
    %v1300 = vld [vmem:[%s41] sm:$0xff]
    %v1301 = vld [vmem:[%s41 + $0x8] sm:$0xff]
    %v1302 = vld [vmem:[%s41 + $0x10] sm:$0xff]
    %v1303 = vld [vmem:[%s41 + $0x18] sm:$0xff]
    %v1304 = vld [vmem:[%s41 + $0x20] sm:$0xff]
    %v1305 = vld [vmem:[%s41 + $0x28] sm:$0xff]
    %v1306 = vld [vmem:[%s41 + $0x30] sm:$0xff]
    %v1307 = vld [vmem:[%s41 + $0x38] sm:$0xff]
    %v1308 = vld [vmem:[%s41 + $0x40] sm:$0xff]
    %v1309 = vld [vmem:[%s41 + $0x48] sm:$0xff]
    %v1310 = vld [vmem:[%s41 + $0x50] sm:$0xff]
    %v1311 = vld [vmem:[%s41 + $0x58] sm:$0xff]
    %v1312 = vld [vmem:[%s41 + $0x60] sm:$0xff]
    %v1313 = vld [vmem:[%s41 + $0x68] sm:$0xff]
    %v1314 = vld [vmem:[%s41 + $0x70] sm:$0xff]
    %v1315 = vld [vmem:[%s41 + $0x78] sm:$0xff]
    %v1316 = vld [vmem:[%s41 + $0x80] sm:$0xff]
    %v1317 = vld [vmem:[%s41 + $0x88] sm:$0xff]
    %v1318 = vld [vmem:[%s41 + $0x90] sm:$0xff]
    %v1319 = vld [vmem:[%s41 + $0x98] sm:$0xff]
    %v1320 = vld [vmem:[%s41 + $0xa0] sm:$0xff]
    %v1321 = vld [vmem:[%s41 + $0xa8] sm:$0xff]
    %v1322 = vld [vmem:[%s41 + $0xb0] sm:$0xff]
    %v1323 = vld [vmem:[%s41 + $0xb8] sm:$0xff]
    %v1324 = vld [vmem:[%s41 + $0xc0] sm:$0xff]
    %v1325 = vld [vmem:[%s41 + $0xc8] sm:$0xff]
    %v1326 = vld [vmem:[%s41 + $0xd0] sm:$0xff]
    %v1327 = vld [vmem:[%s41 + $0xd8] sm:$0xff]
    %v1328 = vld [vmem:[%s41 + $0xe0] sm:$0xff]
    %v1329 = vld [vmem:[%s41 + $0xe8] sm:$0xff]
    %v1330 = vld [vmem:[%s41 + $0xf0] sm:$0xff]
    %v1331 = vld [vmem:[%s41 + $0xf8] sm:$0xff]
    %v1332 = vld [vmem:[%s41 + $0x100] sm:$0xff]
    %v1333 = vld [vmem:[%s41 + $0x108] sm:$0xff]
    %v1334 = vld [vmem:[%s41 + $0x110] sm:$0xff]
    %v1335 = vld [vmem:[%s41 + $0x118] sm:$0xff]
    %v1336 = vld [vmem:[%s41 + $0x120] sm:$0xff]
    %v1337 = vld [vmem:[%s41 + $0x128] sm:$0xff]
    %v1338 = vld [vmem:[%s41 + $0x130] sm:$0xff]
    %v1339 = vld [vmem:[%s41 + $0x138] sm:$0xff]
    %v1340 = vld [vmem:[%s41 + $0x140] sm:$0xff]
    %v1341 = vld [vmem:[%s41 + $0x148] sm:$0xff]
    %v1342 = vld [vmem:[%s41 + $0x150] sm:$0xff]
    %v1343 = vld [vmem:[%s41 + $0x158] sm:$0xff]
    %v1344 = vld [vmem:[%s41 + $0x160] sm:$0xff]
    %v1345 = vld [vmem:[%s41 + $0x168] sm:$0xff]
    %v1346 = vld [vmem:[%s41 + $0x170] sm:$0xff]
    %v1347 = vld [vmem:[%s41 + $0x178] sm:$0xff]
    %v1348 = vld [vmem:[%s43] sm:$0x7]
    %v1350 = vperm.slane %v1348, 0
    %v1351 = vperm.slane %v1348, 1
    %v1352 = vperm.slane %v1348, 2
    %1356 = vmatpush.msra.mxu0 %v1345
    %1357 = vmatpush.msra.mxu0 %v1342
    %1358 = vmatpush.msra.mxu0 %v1339
    %1359 = vmatpush.msra.mxu0 %v1336
    %1360 = vmatpush.msra.mxu0 %v1333
    %1361 = vmatpush.msra.mxu0 %v1330
    %1362 = vmatpush.msra.mxu0 %v1327
    %1363 = vmatpush.msra.mxu0 %v1324
    %1364 = vmatpush.msra.mxu0 %v1321
    %1365 = vmatpush.msra.mxu0 %v1318
    %1366 = vmatpush.msra.mxu0 %v1315
    %1367 = vmatpush.msra.mxu0 %v1312
    %1368 = vmatpush.msra.mxu0 %v1309
    %1369 = vmatpush.msra.mxu0 %v1306
    %1370 = vmatpush.msra.mxu0 %v1303
    %1371 = vmatpush.msra.mxu0 %v1300
    %1372 = vmatmul.f32.gmra.mxu0 %v1299
    %v1373 = vpop.f32.mrf.mxu0
    %v1374 = vadd.f32 %v1350, %v1373
    %1375 = vdwg.mxu0
    %1376 = vmatpush.msra.mxu0 %v1346
    %1377 = vmatpush.msra.mxu0 %v1343
    %1378 = vmatpush.msra.mxu0 %v1340
    %1379 = vmatpush.msra.mxu0 %v1337
    %1380 = vmatpush.msra.mxu0 %v1334
    %1381 = vmatpush.msra.mxu0 %v1331
    %1382 = vmatpush.msra.mxu0 %v1328
    %1383 = vmatpush.msra.mxu0 %v1325
    %1384 = vmatpush.msra.mxu0 %v1322
    %1385 = vmatpush.msra.mxu0 %v1319
    %1386 = vmatpush.msra.mxu0 %v1316
    %1387 = vmatpush.msra.mxu0 %v1313
    %1388 = vmatpush.msra.mxu0 %v1310
    %1389 = vmatpush.msra.mxu0 %v1307
    %1390 = vmatpush.msra.mxu0 %v1304
    %1391 = vmatpush.msra.mxu0 %v1301
    %1392 = vmatmul.f32.gmra.mxu0 %v1299
    %v1393 = vpop.f32.mrf.mxu0
    %v1394 = vadd.f32 %v1351, %v1393
    %1395 = vdwg.mxu0
    %1396 = vmatpush.msra.mxu0 %v1347
    %1397 = vmatpush.msra.mxu0 %v1344
    %1398 = vmatpush.msra.mxu0 %v1341
    %1399 = vmatpush.msra.mxu0 %v1338
    %1400 = vmatpush.msra.mxu0 %v1335
    %1401 = vmatpush.msra.mxu0 %v1332
    %1402 = vmatpush.msra.mxu0 %v1329
    %1403 = vmatpush.msra.mxu0 %v1326
    %1404 = vmatpush.msra.mxu0 %v1323
    %1405 = vmatpush.msra.mxu0 %v1320
    %1406 = vmatpush.msra.mxu0 %v1317
    %1407 = vmatpush.msra.mxu0 %v1314
    %1408 = vmatpush.msra.mxu0 %v1311
    %1409 = vmatpush.msra.mxu0 %v1308
    %1410 = vmatpush.msra.mxu0 %v1305
    %1411 = vmatpush.msra.mxu0 %v1302
    %1412 = vmatmul.f32.gmra.mxu0 %v1299
    %v1413 = vpop.f32.mrf.mxu0
    %v1414 = vadd.f32 %v1352, %v1413
    %1415 = vdwg.mxu0
    %v1416 = vmax.f32 %v1374, 0.0
    %v1417 = vmax.f32 %v1394, 0.0
    %v1418 = vmax.f32 %v1414, 0.0
    %1419 = vst.msk [vmem:[#allocation3] sm:$0x3] %vm1050, %v1416
    %1422 = vrot.lane.b32.xlu0 %v1416, 32
    %v1423 = vpop.permute.xlu0 %1422
    %1424 = vrot.lane.b32.xlu0 %v1417, 32
    %v1425 = vpop.permute.xlu0 %1424
    %v1426 = vsel %vm1127, %v1423, %v1425
    %1428 = vst.msk [vmem:[#allocation3 + $0x2] sm:$0x3] %vm1050, %v1426
    %1430 = vrot.lane.b32.xlu0 %v1417, 64
    %v1431 = vpop.permute.xlu0 %1430
    %1432 = vrot.lane.b32.xlu0 %v1418, 64
    %v1433 = vpop.permute.xlu0 %1432
    %v1434 = vsel %vm1072, %v1431, %v1433
    %1436 = vst.msk [vmem:[#allocation3 + $0x4] sm:$0x3] %vm1050, %v1434
    %v1437 = vld [vmem:[#allocation3] sm:$0x3f]
    %v1438 = vld [vmem:[%s45] sm:$0xff]
    %v1439 = vld [vmem:[%s45 + $0x8] sm:$0x3f]
    %v1440 = vld [vmem:[%s47] sm:$0xff]
    %v1441 = vld [vmem:[%s47 + $0x8] sm:$0xff]
    %v1442 = vld [vmem:[%s47 + $0x10] sm:$0xff]
    %v1443 = vld [vmem:[%s47 + $0x18] sm:$0xff]
    %v1444 = vld [vmem:[%s47 + $0x20] sm:$0xff]
    %v1445 = vld [vmem:[%s47 + $0x28] sm:$0xff]
    %v1446 = vld [vmem:[%s47 + $0x30] sm:$0xff]
    %v1447 = vld [vmem:[%s47 + $0x38] sm:$0xff]
    %v1448 = vld [vmem:[%s47 + $0x40] sm:$0xff]
    %v1449 = vld [vmem:[%s47 + $0x48] sm:$0xff]
    %v1450 = vld [vmem:[%s47 + $0x50] sm:$0xff]
    %v1451 = vld [vmem:[%s47 + $0x58] sm:$0xff]
    %v1453 = vsel %vm1059, %v1437, 0
    %1455 = vmatpush.msra.mxu0 0.0
    %1456 = vmatpush.msra.mxu0 0.0
    %1457 = vmatpush.msra.mxu0 0.0
    %1458 = vmatpush.msra.mxu0 0.0
    %1459 = vmatpush.msra.mxu0 %v1451
    %1460 = vmatpush.msra.mxu0 %v1450
    %1461 = vmatpush.msra.mxu0 %v1449
    %1462 = vmatpush.msra.mxu0 %v1448
    %1463 = vmatpush.msra.mxu0 %v1447
    %1464 = vmatpush.msra.mxu0 %v1446
    %1465 = vmatpush.msra.mxu0 %v1445
    %1466 = vmatpush.msra.mxu0 %v1444
    %1467 = vmatpush.msra.mxu0 %v1443
    %1468 = vmatpush.msra.mxu0 %v1442
    %1469 = vmatpush.msra.mxu0 %v1441
    %1470 = vmatpush.msra.mxu0 %v1440
    %1471 = vmatmul.f32.gmra.mxu0 %v1453
    %v1472 = vpop.f32.mrf.mxu0
    %v1473 = vadd.f32 0.0, %v1472
    %1474 = vdwg.mxu0
    %s1475 = scalar_lea.vmem %s45, 16
    %v1476 = vld [vmem:[%s1475] sm:$0xff]
    %v1477 = vld [vmem:[%s1475 + $0x8] sm:$0x3f]
    %s1478 = scalar_lea.vmem %s47, 96
    %v1479 = vld [vmem:[%s1478] sm:$0xff]
    %v1480 = vld [vmem:[%s1478 + $0x8] sm:$0xff]
    %v1481 = vld [vmem:[%s1478 + $0x10] sm:$0xff]
    %v1482 = vld [vmem:[%s1478 + $0x18] sm:$0xff]
    %v1483 = vld [vmem:[%s1478 + $0x20] sm:$0xff]
    %v1484 = vld [vmem:[%s1478 + $0x28] sm:$0xff]
    %v1485 = vld [vmem:[%s1478 + $0x30] sm:$0xff]
    %v1486 = vld [vmem:[%s1478 + $0x38] sm:$0xff]
    %v1487 = vld [vmem:[%s1478 + $0x40] sm:$0xff]
    %v1488 = vld [vmem:[%s1478 + $0x48] sm:$0xff]
    %v1489 = vld [vmem:[%s1478 + $0x50] sm:$0xff]
    %v1490 = vld [vmem:[%s1478 + $0x58] sm:$0xff]
    %1491 = vmatpush.msra.mxu0 0.0
    %1492 = vmatpush.msra.mxu0 0.0
    %1493 = vmatpush.msra.mxu0 0.0
    %1494 = vmatpush.msra.mxu0 0.0
    %1495 = vmatpush.msra.mxu0 %v1490
    %1496 = vmatpush.msra.mxu0 %v1489
    %1497 = vmatpush.msra.mxu0 %v1488
    %1498 = vmatpush.msra.mxu0 %v1487
    %1499 = vmatpush.msra.mxu0 %v1486
    %1500 = vmatpush.msra.mxu0 %v1485
    %1501 = vmatpush.msra.mxu0 %v1484
    %1502 = vmatpush.msra.mxu0 %v1483
    %1503 = vmatpush.msra.mxu0 %v1482
    %1504 = vmatpush.msra.mxu0 %v1481
    %1505 = vmatpush.msra.mxu0 %v1480
    %1506 = vmatpush.msra.mxu0 %v1479
    %1507 = vmatmul.f32.gmra.mxu0 %v1453
    %v1508 = vpop.f32.mrf.mxu0
    %v1509 = vadd.f32 0.0, %v1508
    %1510 = vdwg.mxu0
    %vm1511 = vcmask 48128
    %v1513 = vsel %vm1511, %v1476, 0
    %v1516 = vsel %vm1511, %v1477, 0
    %v1519 = vsel %vm856, %v1509, 0
    %1521 = vmatpush.msra.mxu0 0.0
    %1522 = vmatpush.msra.mxu0 0.0
    %1523 = vmatpush.msra.mxu0 0.0
    %1524 = vmatpush.msra.mxu0 0.0
    %1525 = vmatpush.msra.mxu0 0.0
    %1526 = vmatpush.msra.mxu0 0.0
    %1527 = vmatpush.msra.mxu0 0.0
    %1528 = vmatpush.msra.mxu0 0.0
    %1529 = vmatpush.msra.mxu0 0.0
    %1530 = vmatpush.msra.mxu0 0.0
    %1531 = vmatpush.msra.mxu0 0.0
    %1532 = vmatpush.msra.mxu0 0.0
    %1533 = vmatpush.msra.mxu0 0.0
    %1534 = vmatpush.msra.mxu0 0.0
    %1535 = vmatpush.msra.mxu0 0.0
    %1536 = vmatpush.msra.mxu0 %v1519
    %1537 = vmatmul.f32.gmra.mxu0 %v1513
    %v1538 = vpop.f32.mrf.mxu0
    %v1539 = vadd.f32 0.0, %v1538
    %1540 = vmatmul.f32.gmra.mxu0 %v1516
    %v1541 = vpop.f32.mrf.mxu0
    %v1542 = vadd.f32 0.0, %v1541
    %1543 = vdwg.mxu0
    %v1545 = vsel %vm1511, %v1438, 0
    %v1548 = vsel %vm1511, %v1439, 0
    %v1551 = vsel %vm856, %v1473, 0
    %1553 = vmatpush.msra.mxu0 0.0
    %1554 = vmatpush.msra.mxu0 0.0
    %1555 = vmatpush.msra.mxu0 0.0
    %1556 = vmatpush.msra.mxu0 0.0
    %1557 = vmatpush.msra.mxu0 0.0
    %1558 = vmatpush.msra.mxu0 0.0
    %1559 = vmatpush.msra.mxu0 0.0
    %1560 = vmatpush.msra.mxu0 0.0
    %1561 = vmatpush.msra.mxu0 0.0
    %1562 = vmatpush.msra.mxu0 0.0
    %1563 = vmatpush.msra.mxu0 0.0
    %1564 = vmatpush.msra.mxu0 0.0
    %1565 = vmatpush.msra.mxu0 0.0
    %1566 = vmatpush.msra.mxu0 0.0
    %1567 = vmatpush.msra.mxu0 0.0
    %1568 = vmatpush.msra.mxu0 %v1551
    %1569 = vmatmul.f32.gmra.mxu0 %v1545
    %v1570 = vpop.f32.mrf.mxu0
    %v1571 = vadd.f32 %v1539, %v1570
    %1572 = vmatmul.f32.gmra.mxu0 %v1548
    %v1573 = vpop.f32.mrf.mxu0
    %v1574 = vadd.f32 %v1542, %v1573
    %1575 = vdwg.mxu0
    %s1576 = scalar_lea.vmem %s45, 32
    %v1577 = vld [vmem:[%s1576] sm:$0xff]
    %v1578 = vld [vmem:[%s1576 + $0x8] sm:$0x3f]
    %s1579 = scalar_lea.vmem %s47, 192
    %v1580 = vld [vmem:[%s1579] sm:$0xff]
    %v1581 = vld [vmem:[%s1579 + $0x8] sm:$0xff]
    %v1582 = vld [vmem:[%s1579 + $0x10] sm:$0xff]
    %v1583 = vld [vmem:[%s1579 + $0x18] sm:$0xff]
    %v1584 = vld [vmem:[%s1579 + $0x20] sm:$0xff]
    %v1585 = vld [vmem:[%s1579 + $0x28] sm:$0xff]
    %v1586 = vld [vmem:[%s1579 + $0x30] sm:$0xff]
    %v1587 = vld [vmem:[%s1579 + $0x38] sm:$0xff]
    %v1588 = vld [vmem:[%s1579 + $0x40] sm:$0xff]
    %v1589 = vld [vmem:[%s1579 + $0x48] sm:$0xff]
    %v1590 = vld [vmem:[%s1579 + $0x50] sm:$0xff]
    %v1591 = vld [vmem:[%s1579 + $0x58] sm:$0xff]
    %1592 = vmatpush.msra.mxu0 0.0
    %1593 = vmatpush.msra.mxu0 0.0
    %1594 = vmatpush.msra.mxu0 0.0
    %1595 = vmatpush.msra.mxu0 0.0
    %1596 = vmatpush.msra.mxu0 %v1591
    %1597 = vmatpush.msra.mxu0 %v1590
    %1598 = vmatpush.msra.mxu0 %v1589
    %1599 = vmatpush.msra.mxu0 %v1588
    %1600 = vmatpush.msra.mxu0 %v1587
    %1601 = vmatpush.msra.mxu0 %v1586
    %1602 = vmatpush.msra.mxu0 %v1585
    %1603 = vmatpush.msra.mxu0 %v1584
    %1604 = vmatpush.msra.mxu0 %v1583
    %1605 = vmatpush.msra.mxu0 %v1582
    %1606 = vmatpush.msra.mxu0 %v1581
    %1607 = vmatpush.msra.mxu0 %v1580
    %1608 = vmatmul.f32.gmra.mxu0 %v1453
    %v1609 = vpop.f32.mrf.mxu0
    %v1610 = vadd.f32 0.0, %v1609
    %1611 = vdwg.mxu0
    %v1613 = vsel %vm1511, %v1577, 0
    %v1616 = vsel %vm1511, %v1578, 0
    %v1619 = vsel %vm856, %v1610, 0
    %1621 = vmatpush.msra.mxu0 0.0
    %1622 = vmatpush.msra.mxu0 0.0
    %1623 = vmatpush.msra.mxu0 0.0
    %1624 = vmatpush.msra.mxu0 0.0
    %1625 = vmatpush.msra.mxu0 0.0
    %1626 = vmatpush.msra.mxu0 0.0
    %1627 = vmatpush.msra.mxu0 0.0
    %1628 = vmatpush.msra.mxu0 0.0
    %1629 = vmatpush.msra.mxu0 0.0
    %1630 = vmatpush.msra.mxu0 0.0
    %1631 = vmatpush.msra.mxu0 0.0
    %1632 = vmatpush.msra.mxu0 0.0
    %1633 = vmatpush.msra.mxu0 0.0
    %1634 = vmatpush.msra.mxu0 0.0
    %1635 = vmatpush.msra.mxu0 0.0
    %1636 = vmatpush.msra.mxu0 %v1619
    %1637 = vmatmul.f32.gmra.mxu0 %v1613
    %v1638 = vpop.f32.mrf.mxu0
    %v1639 = vadd.f32 0.0, %v1638
    %1640 = vmatmul.f32.gmra.mxu0 %v1616
    %v1641 = vpop.f32.mrf.mxu0
    %v1642 = vadd.f32 0.0, %v1641
    %1643 = vdwg.mxu0
    %v1644 = vadd.f32 %v1571, %v1639
    %v1645 = vadd.f32 %v1574, %v1642
    %v1646 = vld [vmem:[%s49] sm:$0x1]
    %v1647 = vld [vmem:[%s51] sm:$0x1]
    %v1648 = vld [vmem:[%s19] sm:$0xff]
    %v1649 = vld [vmem:[%s19 + $0x8] sm:$0xff]
    %v1650 = vld [vmem:[%s19 + $0x10] sm:$0xff]
    %v1651 = vld [vmem:[%s19 + $0x18] sm:$0xff]
    %v1652 = vld [vmem:[%s19 + $0x20] sm:$0xff]
    %v1653 = vld [vmem:[%s19 + $0x28] sm:$0xff]
    %v1654 = vld [vmem:[%s19 + $0x30] sm:$0xff]
    %v1655 = vld [vmem:[%s19 + $0x38] sm:$0xff]
    %v1656 = vld [vmem:[%s19 + $0x40] sm:$0xff]
    %v1657 = vld [vmem:[%s19 + $0x48] sm:$0xff]
    %v1658 = vld [vmem:[%s19 + $0x50] sm:$0xff]
    %v1659 = vld [vmem:[%s19 + $0x58] sm:$0xff]
    %v1660 = vld [vmem:[%s19 + $0x60] sm:$0xff]
    %v1661 = vld [vmem:[%s19 + $0x68] sm:$0xff]
    %v1662 = vld [vmem:[%s21] sm:$0xff]
    %v1663 = vld [vmem:[%s21 + $0x8] sm:$0xff]
    %v1664 = vsel %vm555, %v1644, 0.0
    %v1665 = vsel %vm711, %v1645, 0.0
    %v1666 = vadd.f32 %v1664, %v1665
    %v1667 = vrot.slane %v1666, 4
    %v1668 = vadd.f32 %v1666, %v1667
    %v1669 = vrot.slane %v1668, 2
    %v1670 = vadd.f32 %v1668, %v1669
    %v1671 = vrot.slane %v1670, 1
    %v1672 = vadd.f32 %v1670, %v1671
    %v1674 = vsel %vm555, %v1672, 0
    %1676 = vmatpush.msra.mxu0 0.0
    %1677 = vmatpush.msra.mxu0 0.0
    %1678 = vmatpush.msra.mxu0 %v1661
    %1679 = vmatpush.msra.mxu0 %v1660
    %1680 = vmatpush.msra.mxu0 %v1659
    %1681 = vmatpush.msra.mxu0 %v1658
    %1682 = vmatpush.msra.mxu0 %v1657
    %1683 = vmatpush.msra.mxu0 %v1656
    %1684 = vmatpush.msra.mxu0 %v1655
    %1685 = vmatpush.msra.mxu0 %v1654
    %1686 = vmatpush.msra.mxu0 %v1653
    %1687 = vmatpush.msra.mxu0 %v1652
    %1688 = vmatpush.msra.mxu0 %v1651
    %1689 = vmatpush.msra.mxu0 %v1650
    %1690 = vmatpush.msra.mxu0 %v1649
    %1691 = vmatpush.msra.mxu0 %v1648
    %1692 = vmatmul.f32.gmra.mxu0 %v1674
    %v1693 = vpop.f32.mrf.mxu0
    %v1694 = vadd.f32 0.0, %v1693
    %1695 = vdwg.mxu0
    %v1696 = vmul.f32 %v1694, 0.010204081
    %v1698 = vsel %vm744, %v1696, 0
    %1700 = vmatpush.msra.mxu0 0.0
    %1701 = vmatpush.msra.mxu0 0.0
    %1702 = vmatpush.msra.mxu0 0.0
    %1703 = vmatpush.msra.mxu0 0.0
    %1704 = vmatpush.msra.mxu0 0.0
    %1705 = vmatpush.msra.mxu0 0.0
    %1706 = vmatpush.msra.mxu0 0.0
    %1707 = vmatpush.msra.mxu0 0.0
    %1708 = vmatpush.msra.mxu0 0.0
    %1709 = vmatpush.msra.mxu0 0.0
    %1710 = vmatpush.msra.mxu0 0.0
    %1711 = vmatpush.msra.mxu0 0.0
    %1712 = vmatpush.msra.mxu0 0.0
    %1713 = vmatpush.msra.mxu0 0.0
    %1714 = vmatpush.msra.mxu0 %v1663
    %1715 = vmatpush.msra.mxu0 %v1662
    %1716 = vmatmul.f32.gmra.mxu0 %v1698
    %v1717 = vpop.f32.mrf.mxu0
    %v1718 = vadd.f32 0.0, %v1717
    %1719 = vdwg.mxu0
    %v1720 = vperm.slane %v1718, 0
    %v1721 = vsub.f32 %v1644, %v1720
    %v1722 = vsub.f32 %v1645, %v1720
    %v1723 = vmul.f32 %v1721, %v1721
    %v1724 = vmul.f32 %v1722, %v1722
    %v1725 = vsel %vm555, %v1723, 0.0
    %v1726 = vsel %vm711, %v1724, 0.0
    %v1727 = vadd.f32 %v1725, %v1726
    %v1728 = vrot.slane %v1727, 4
    %v1729 = vadd.f32 %v1727, %v1728
    %v1730 = vrot.slane %v1729, 2
    %v1731 = vadd.f32 %v1729, %v1730
    %v1732 = vrot.slane %v1731, 1
    %v1733 = vadd.f32 %v1731, %v1732
    %v1735 = vsel %vm555, %v1733, 0
    %1737 = vmatpush.msra.mxu0 0.0
    %1738 = vmatpush.msra.mxu0 0.0
    %1739 = vmatpush.msra.mxu0 %v1661
    %1740 = vmatpush.msra.mxu0 %v1660
    %1741 = vmatpush.msra.mxu0 %v1659
    %1742 = vmatpush.msra.mxu0 %v1658
    %1743 = vmatpush.msra.mxu0 %v1657
    %1744 = vmatpush.msra.mxu0 %v1656
    %1745 = vmatpush.msra.mxu0 %v1655
    %1746 = vmatpush.msra.mxu0 %v1654
    %1747 = vmatpush.msra.mxu0 %v1653
    %1748 = vmatpush.msra.mxu0 %v1652
    %1749 = vmatpush.msra.mxu0 %v1651
    %1750 = vmatpush.msra.mxu0 %v1650
    %1751 = vmatpush.msra.mxu0 %v1649
    %1752 = vmatpush.msra.mxu0 %v1648
    %1753 = vmatmul.f32.gmra.mxu0 %v1735
    %v1754 = vpop.f32.mrf.mxu0
    %v1755 = vadd.f32 0.0, %v1754
    %1756 = vdwg.mxu0
    %v1757 = vmul.f32 %v1755, 0.010204081
    %v1758 = vadd.f32 %v1757, 1e-05
    %v1759 = vrsqrt.pop %v1758
    %v1760 = vmul.f32 %v1759, %v1758
    %v1761 = vmul.f32 %v1760, %v1759
    %v1762 = vmul.f32 0.5, %v1761
    %v1763 = vsub.f32 1.5, %v1762
    %v1764 = vmul.f32 %v1759, %v1763
    %vm1765 = vweird.f32 %v1758
    %vm1766 = vweird.f32 %v1759
    %vm1767 = vmor %vm1765, %vm1766
    %v1768 = vsel %vm1767, %v1759, %v1764
    %v1769 = vmul.f32 %v1646, %v1768
    %v1771 = vsel %vm744, %v1769, 0
    %1773 = vmatpush.msra.mxu0 0.0
    %1774 = vmatpush.msra.mxu0 0.0
    %1775 = vmatpush.msra.mxu0 0.0
    %1776 = vmatpush.msra.mxu0 0.0
    %1777 = vmatpush.msra.mxu0 0.0
    %1778 = vmatpush.msra.mxu0 0.0
    %1779 = vmatpush.msra.mxu0 0.0
    %1780 = vmatpush.msra.mxu0 0.0
    %1781 = vmatpush.msra.mxu0 0.0
    %1782 = vmatpush.msra.mxu0 0.0
    %1783 = vmatpush.msra.mxu0 0.0
    %1784 = vmatpush.msra.mxu0 0.0
    %1785 = vmatpush.msra.mxu0 0.0
    %1786 = vmatpush.msra.mxu0 0.0
    %1787 = vmatpush.msra.mxu0 %v1663
    %1788 = vmatpush.msra.mxu0 %v1662
    %1789 = vmatmul.f32.gmra.mxu0 %v1771
    %v1790 = vpop.f32.mrf.mxu0
    %v1791 = vadd.f32 0.0, %v1790
    %1792 = vdwg.mxu0
    %v1793 = vperm.slane %v1791, 0
    %v1794 = vmul.f32 %v1721, %v1793
    %v1795 = vmul.f32 %v1722, %v1793
    %v1797 = vperm.slane %v1647, 0
    %v1799 = vadd.f32 %v1794, %v1797
    %v1800 = vadd.f32 %v1795, %v1797
    %v1801 = vmax.f32 %v1799, 0.0
    %v1802 = vmax.f32 %v1800, 0.0
    %v1803 = vld [vmem:[%s53] sm:$0xff]
    %v1804 = vld [vmem:[%s53 + $0x8] sm:$0xff]
    %v1805 = vld [vmem:[%s53 + $0x10] sm:$0xff]
    %v1806 = vld [vmem:[%s53 + $0x18] sm:$0xf]
    %v1807 = vld [vmem:[%s55] sm:$0xff]
    %v1808 = vld [vmem:[%s55 + $0x8] sm:$0xff]
    %v1809 = vld [vmem:[%s55 + $0x10] sm:$0xff]
    %v1810 = vld [vmem:[%s55 + $0x18] sm:$0xff]
    %v1811 = vld [vmem:[%s55 + $0x20] sm:$0xff]
    %v1812 = vld [vmem:[%s55 + $0x28] sm:$0xff]
    %v1813 = vld [vmem:[%s55 + $0x30] sm:$0xff]
    %v1814 = vld [vmem:[%s55 + $0x38] sm:$0xff]
    %v1815 = vld [vmem:[%s55 + $0x40] sm:$0xff]
    %v1816 = vld [vmem:[%s55 + $0x48] sm:$0xff]
    %v1817 = vld [vmem:[%s55 + $0x50] sm:$0xff]
    %v1818 = vld [vmem:[%s55 + $0x58] sm:$0xff]
    %v1819 = vld [vmem:[%s55 + $0x60] sm:$0xff]
    %v1820 = vld [vmem:[%s55 + $0x68] sm:$0xff]
    %v1822 = vsel %vm555, %v1801, 0
    %v1825 = vsel %vm555, %v1802, 0
    %1827 = vmatpush.msra.mxu0 0.0
    %1828 = vmatpush.msra.mxu0 0.0
    %1829 = vmatpush.msra.mxu0 %v1820
    %1830 = vmatpush.msra.mxu0 %v1819
    %1831 = vmatpush.msra.mxu0 %v1818
    %1832 = vmatpush.msra.mxu0 %v1817
    %1833 = vmatpush.msra.mxu0 %v1816
    %1834 = vmatpush.msra.mxu0 %v1815
    %1835 = vmatpush.msra.mxu0 %v1814
    %1836 = vmatpush.msra.mxu0 %v1813
    %1837 = vmatpush.msra.mxu0 %v1812
    %1838 = vmatpush.msra.mxu0 %v1811
    %1839 = vmatpush.msra.mxu0 %v1810
    %1840 = vmatpush.msra.mxu0 %v1809
    %1841 = vmatpush.msra.mxu0 %v1808
    %1842 = vmatpush.msra.mxu0 %v1807
    %1843 = vmatmul.f32.gmra.mxu0 %v1822
    %v1844 = vpop.f32.mrf.mxu0
    %v1845 = vadd.f32 0.0, %v1844
    %1846 = vmatmul.f32.gmra.mxu0 %v1825
    %v1847 = vpop.f32.mrf.mxu0
    %v1848 = vadd.f32 0.0, %v1847
    %1849 = vdwg.mxu0
    %s1850 = scalar_lea.vmem %s53, 32
    %v1851 = vld [vmem:[%s1850] sm:$0xff]
    %v1852 = vld [vmem:[%s1850 + $0x8] sm:$0xff]
    %v1853 = vld [vmem:[%s1850 + $0x10] sm:$0xff]
    %v1854 = vld [vmem:[%s1850 + $0x18] sm:$0xf]
    %s1855 = scalar_lea.vmem %s55, 112
    %v1856 = vld [vmem:[%s1855] sm:$0xff]
    %v1857 = vld [vmem:[%s1855 + $0x8] sm:$0xff]
    %v1858 = vld [vmem:[%s1855 + $0x10] sm:$0xff]
    %v1859 = vld [vmem:[%s1855 + $0x18] sm:$0xff]
    %v1860 = vld [vmem:[%s1855 + $0x20] sm:$0xff]
    %v1861 = vld [vmem:[%s1855 + $0x28] sm:$0xff]
    %v1862 = vld [vmem:[%s1855 + $0x30] sm:$0xff]
    %v1863 = vld [vmem:[%s1855 + $0x38] sm:$0xff]
    %v1864 = vld [vmem:[%s1855 + $0x40] sm:$0xff]
    %v1865 = vld [vmem:[%s1855 + $0x48] sm:$0xff]
    %v1866 = vld [vmem:[%s1855 + $0x50] sm:$0xff]
    %v1867 = vld [vmem:[%s1855 + $0x58] sm:$0xff]
    %v1868 = vld [vmem:[%s1855 + $0x60] sm:$0xff]
    %v1869 = vld [vmem:[%s1855 + $0x68] sm:$0xff]
    %1870 = vmatpush.msra.mxu0 0.0
    %1871 = vmatpush.msra.mxu0 0.0
    %1872 = vmatpush.msra.mxu0 %v1869
    %1873 = vmatpush.msra.mxu0 %v1868
    %1874 = vmatpush.msra.mxu0 %v1867
    %1875 = vmatpush.msra.mxu0 %v1866
    %1876 = vmatpush.msra.mxu0 %v1865
    %1877 = vmatpush.msra.mxu0 %v1864
    %1878 = vmatpush.msra.mxu0 %v1863
    %1879 = vmatpush.msra.mxu0 %v1862
    %1880 = vmatpush.msra.mxu0 %v1861
    %1881 = vmatpush.msra.mxu0 %v1860
    %1882 = vmatpush.msra.mxu0 %v1859
    %1883 = vmatpush.msra.mxu0 %v1858
    %1884 = vmatpush.msra.mxu0 %v1857
    %1885 = vmatpush.msra.mxu0 %v1856
    %1886 = vmatmul.f32.gmra.mxu0 %v1822
    %v1887 = vpop.f32.mrf.mxu0
    %v1888 = vadd.f32 0.0, %v1887
    %1889 = vmatmul.f32.gmra.mxu0 %v1825
    %v1890 = vpop.f32.mrf.mxu0
    %v1891 = vadd.f32 0.0, %v1890
    %1892 = vdwg.mxu0
    %v1894 = vsel %vm852, %v1851, 0
    %v1897 = vsel %vm852, %v1852, 0
    %v1900 = vsel %vm852, %v1853, 0
    %v1903 = vsel %vm852, %v1854, 0
    %v1906 = vsel %vm856, %v1891, 0
    %1908 = vmatpush.msra.mxu0 0.0
    %1909 = vmatpush.msra.mxu0 0.0
    %1910 = vmatpush.msra.mxu0 0.0
    %1911 = vmatpush.msra.mxu0 0.0
    %1912 = vmatpush.msra.mxu0 0.0
    %1913 = vmatpush.msra.mxu0 0.0
    %1914 = vmatpush.msra.mxu0 0.0
    %1915 = vmatpush.msra.mxu0 0.0
    %1916 = vmatpush.msra.mxu0 0.0
    %1917 = vmatpush.msra.mxu0 0.0
    %1918 = vmatpush.msra.mxu0 0.0
    %1919 = vmatpush.msra.mxu0 0.0
    %1920 = vmatpush.msra.mxu0 0.0
    %1921 = vmatpush.msra.mxu0 0.0
    %1922 = vmatpush.msra.mxu0 %v1906
    %1923 = vmatpush.msra.mxu0 %v1888
    %1924 = vmatmul.f32.gmra.mxu0 %v1894
    %v1925 = vpop.f32.mrf.mxu0
    %v1926 = vadd.f32 0.0, %v1925
    %1927 = vmatmul.f32.gmra.mxu0 %v1897
    %v1928 = vpop.f32.mrf.mxu0
    %v1929 = vadd.f32 0.0, %v1928
    %1930 = vmatmul.f32.gmra.mxu0 %v1900
    %v1931 = vpop.f32.mrf.mxu0
    %v1932 = vadd.f32 0.0, %v1931
    %1933 = vmatmul.f32.gmra.mxu0 %v1903
    %v1934 = vpop.f32.mrf.mxu0
    %v1935 = vadd.f32 0.0, %v1934
    %1936 = vdwg.mxu0
    %v1938 = vsel %vm852, %v1803, 0
    %v1941 = vsel %vm852, %v1804, 0
    %v1944 = vsel %vm852, %v1805, 0
    %v1947 = vsel %vm852, %v1806, 0
    %v1950 = vsel %vm856, %v1848, 0
    %1952 = vmatpush.msra.mxu0 0.0
    %1953 = vmatpush.msra.mxu0 0.0
    %1954 = vmatpush.msra.mxu0 0.0
    %1955 = vmatpush.msra.mxu0 0.0
    %1956 = vmatpush.msra.mxu0 0.0
    %1957 = vmatpush.msra.mxu0 0.0
    %1958 = vmatpush.msra.mxu0 0.0
    %1959 = vmatpush.msra.mxu0 0.0
    %1960 = vmatpush.msra.mxu0 0.0
    %1961 = vmatpush.msra.mxu0 0.0
    %1962 = vmatpush.msra.mxu0 0.0
    %1963 = vmatpush.msra.mxu0 0.0
    %1964 = vmatpush.msra.mxu0 0.0
    %1965 = vmatpush.msra.mxu0 0.0
    %1966 = vmatpush.msra.mxu0 %v1950
    %1967 = vmatpush.msra.mxu0 %v1845
    %1968 = vmatmul.f32.gmra.mxu0 %v1938
    %v1969 = vpop.f32.mrf.mxu0
    %v1970 = vadd.f32 %v1926, %v1969
    %1971 = vmatmul.f32.gmra.mxu0 %v1941
    %v1972 = vpop.f32.mrf.mxu0
    %v1973 = vadd.f32 %v1929, %v1972
    %1974 = vmatmul.f32.gmra.mxu0 %v1944
    %v1975 = vpop.f32.mrf.mxu0
    %v1976 = vadd.f32 %v1932, %v1975
    %1977 = vmatmul.f32.gmra.mxu0 %v1947
    %v1978 = vpop.f32.mrf.mxu0
    %v1979 = vadd.f32 %v1935, %v1978
    %1980 = vdwg.mxu0
    %s1981 = scalar_lea.vmem %s53, 64
    %v1982 = vld [vmem:[%s1981] sm:$0xff]
    %v1983 = vld [vmem:[%s1981 + $0x8] sm:$0xff]
    %v1984 = vld [vmem:[%s1981 + $0x10] sm:$0xff]
    %v1985 = vld [vmem:[%s1981 + $0x18] sm:$0xf]
    %s1986 = scalar_lea.vmem %s55, 224
    %v1987 = vld [vmem:[%s1986] sm:$0xff]
    %v1988 = vld [vmem:[%s1986 + $0x8] sm:$0xff]
    %v1989 = vld [vmem:[%s1986 + $0x10] sm:$0xff]
    %v1990 = vld [vmem:[%s1986 + $0x18] sm:$0xff]
    %v1991 = vld [vmem:[%s1986 + $0x20] sm:$0xff]
    %v1992 = vld [vmem:[%s1986 + $0x28] sm:$0xff]
    %v1993 = vld [vmem:[%s1986 + $0x30] sm:$0xff]
    %v1994 = vld [vmem:[%s1986 + $0x38] sm:$0xff]
    %v1995 = vld [vmem:[%s1986 + $0x40] sm:$0xff]
    %v1996 = vld [vmem:[%s1986 + $0x48] sm:$0xff]
    %v1997 = vld [vmem:[%s1986 + $0x50] sm:$0xff]
    %v1998 = vld [vmem:[%s1986 + $0x58] sm:$0xff]
    %v1999 = vld [vmem:[%s1986 + $0x60] sm:$0xff]
    %v2000 = vld [vmem:[%s1986 + $0x68] sm:$0xff]
    %2001 = vmatpush.msra.mxu0 0.0
    %2002 = vmatpush.msra.mxu0 0.0
    %2003 = vmatpush.msra.mxu0 %v2000
    %2004 = vmatpush.msra.mxu0 %v1999
    %2005 = vmatpush.msra.mxu0 %v1998
    %2006 = vmatpush.msra.mxu0 %v1997
    %2007 = vmatpush.msra.mxu0 %v1996
    %2008 = vmatpush.msra.mxu0 %v1995
    %2009 = vmatpush.msra.mxu0 %v1994
    %2010 = vmatpush.msra.mxu0 %v1993
    %2011 = vmatpush.msra.mxu0 %v1992
    %2012 = vmatpush.msra.mxu0 %v1991
    %2013 = vmatpush.msra.mxu0 %v1990
    %2014 = vmatpush.msra.mxu0 %v1989
    %2015 = vmatpush.msra.mxu0 %v1988
    %2016 = vmatpush.msra.mxu0 %v1987
    %2017 = vmatmul.f32.gmra.mxu0 %v1822
    %v2018 = vpop.f32.mrf.mxu0
    %v2019 = vadd.f32 0.0, %v2018
    %2020 = vmatmul.f32.gmra.mxu0 %v1825
    %v2021 = vpop.f32.mrf.mxu0
    %v2022 = vadd.f32 0.0, %v2021
    %2023 = vdwg.mxu0
    %v2025 = vsel %vm852, %v1982, 0
    %v2028 = vsel %vm852, %v1983, 0
    %v2031 = vsel %vm852, %v1984, 0
    %v2034 = vsel %vm852, %v1985, 0
    %v2037 = vsel %vm856, %v2022, 0
    %2039 = vmatpush.msra.mxu0 0.0
    %2040 = vmatpush.msra.mxu0 0.0
    %2041 = vmatpush.msra.mxu0 0.0
    %2042 = vmatpush.msra.mxu0 0.0
    %2043 = vmatpush.msra.mxu0 0.0
    %2044 = vmatpush.msra.mxu0 0.0
    %2045 = vmatpush.msra.mxu0 0.0
    %2046 = vmatpush.msra.mxu0 0.0
    %2047 = vmatpush.msra.mxu0 0.0
    %2048 = vmatpush.msra.mxu0 0.0
    %2049 = vmatpush.msra.mxu0 0.0
    %2050 = vmatpush.msra.mxu0 0.0
    %2051 = vmatpush.msra.mxu0 0.0
    %2052 = vmatpush.msra.mxu0 0.0
    %2053 = vmatpush.msra.mxu0 %v2037
    %2054 = vmatpush.msra.mxu0 %v2019
    %2055 = vmatmul.f32.gmra.mxu0 %v2025
    %v2056 = vpop.f32.mrf.mxu0
    %v2057 = vadd.f32 0.0, %v2056
    %2058 = vmatmul.f32.gmra.mxu0 %v2028
    %v2059 = vpop.f32.mrf.mxu0
    %v2060 = vadd.f32 0.0, %v2059
    %2061 = vmatmul.f32.gmra.mxu0 %v2031
    %v2062 = vpop.f32.mrf.mxu0
    %v2063 = vadd.f32 0.0, %v2062
    %2064 = vmatmul.f32.gmra.mxu0 %v2034
    %v2065 = vpop.f32.mrf.mxu0
    %v2066 = vadd.f32 0.0, %v2065
    %2067 = vdwg.mxu0
    %v2068 = vadd.f32 %v1970, %v2057
    %v2069 = vadd.f32 %v1973, %v2060
    %v2070 = vadd.f32 %v1976, %v2063
    %v2071 = vadd.f32 %v1979, %v2066
    %v2072 = vld [vmem:[%s57] sm:$0x1]
    %v2073 = vld [vmem:[%s59] sm:$0x1]
    %v2074 = vld [vmem:[%s61] sm:$0xff]
    %v2075 = vld [vmem:[%s61 + $0x8] sm:$0xff]
    %v2076 = vld [vmem:[%s61 + $0x10] sm:$0xff]
    %v2077 = vld [vmem:[%s61 + $0x18] sm:$0xff]
    %v2078 = vld [vmem:[%s61 + $0x20] sm:$0xff]
    %v2079 = vld [vmem:[%s61 + $0x28] sm:$0xff]
    %v2080 = vld [vmem:[%s61 + $0x30] sm:$0xff]
    %v2081 = vld [vmem:[%s61 + $0x38] sm:$0xff]
    %v2082 = vld [vmem:[%s61 + $0x40] sm:$0xff]
    %v2083 = vld [vmem:[%s61 + $0x48] sm:$0xff]
    %v2084 = vld [vmem:[%s61 + $0x50] sm:$0xff]
    %v2085 = vld [vmem:[%s61 + $0x58] sm:$0xff]
    %v2086 = vld [vmem:[%s61 + $0x60] sm:$0xff]
    %v2087 = vld [vmem:[%s61 + $0x68] sm:$0xff]
    %v2088 = vld [vmem:[%s63] sm:$0xff]
    %v2089 = vsel %vm555, %v2068, 0.0
    %v2090 = vsel %vm555, %v2069, 0.0
    %v2091 = vadd.f32 %v2089, %v2090
    %v2092 = vsel %vm555, %v2070, 0.0
    %v2093 = vadd.f32 %v2091, %v2092
    %vm2094 = vcmask 912384
    %v2095 = vsel %vm2094, %v2071, 0.0
    %v2096 = vadd.f32 %v2093, %v2095
    %v2097 = vrot.slane %v2096, 4
    %v2098 = vadd.f32 %v2096, %v2097
    %v2099 = vrot.slane %v2098, 2
    %v2100 = vadd.f32 %v2098, %v2099
    %v2101 = vrot.slane %v2100, 1
    %v2102 = vadd.f32 %v2100, %v2101
    %v2104 = vsel %vm555, %v2102, 0
    %2106 = vmatpush.msra.mxu0 0.0
    %2107 = vmatpush.msra.mxu0 0.0
    %2108 = vmatpush.msra.mxu0 %v2087
    %2109 = vmatpush.msra.mxu0 %v2086
    %2110 = vmatpush.msra.mxu0 %v2085
    %2111 = vmatpush.msra.mxu0 %v2084
    %2112 = vmatpush.msra.mxu0 %v2083
    %2113 = vmatpush.msra.mxu0 %v2082
    %2114 = vmatpush.msra.mxu0 %v2081
    %2115 = vmatpush.msra.mxu0 %v2080
    %2116 = vmatpush.msra.mxu0 %v2079
    %2117 = vmatpush.msra.mxu0 %v2078
    %2118 = vmatpush.msra.mxu0 %v2077
    %2119 = vmatpush.msra.mxu0 %v2076
    %2120 = vmatpush.msra.mxu0 %v2075
    %2121 = vmatpush.msra.mxu0 %v2074
    %2122 = vmatmul.f32.gmra.mxu0 %v2104
    %v2123 = vpop.f32.mrf.mxu0
    %v2124 = vadd.f32 0.0, %v2123
    %2125 = vdwg.mxu0
    %v2126 = vmul.f32 %v2124, 0.0025510204
    %v2128 = vsel %vm1275, %v2126, 0
    %2130 = vmatpush.msra.mxu0 0.0
    %2131 = vmatpush.msra.mxu0 0.0
    %2132 = vmatpush.msra.mxu0 0.0
    %2133 = vmatpush.msra.mxu0 0.0
    %2134 = vmatpush.msra.mxu0 0.0
    %2135 = vmatpush.msra.mxu0 0.0
    %2136 = vmatpush.msra.mxu0 0.0
    %2137 = vmatpush.msra.mxu0 0.0
    %2138 = vmatpush.msra.mxu0 0.0
    %2139 = vmatpush.msra.mxu0 0.0
    %2140 = vmatpush.msra.mxu0 0.0
    %2141 = vmatpush.msra.mxu0 0.0
    %2142 = vmatpush.msra.mxu0 0.0
    %2143 = vmatpush.msra.mxu0 0.0
    %2144 = vmatpush.msra.mxu0 0.0
    %2145 = vmatpush.msra.mxu0 %v2088
    %2146 = vmatmul.f32.gmra.mxu0 %v2128
    %v2147 = vpop.f32.mrf.mxu0
    %v2148 = vadd.f32 0.0, %v2147
    %2149 = vdwg.mxu0
    %v2150 = vperm.slane %v2148, 0
    %v2151 = vsub.f32 %v2068, %v2150
    %v2152 = vsub.f32 %v2069, %v2150
    %v2153 = vsub.f32 %v2070, %v2150
    %v2154 = vsub.f32 %v2071, %v2150
    %v2155 = vmul.f32 %v2151, %v2151
    %v2156 = vmul.f32 %v2152, %v2152
    %v2157 = vmul.f32 %v2153, %v2153
    %v2158 = vmul.f32 %v2154, %v2154
    %v2159 = vsel %vm555, %v2155, 0.0
    %v2160 = vsel %vm555, %v2156, 0.0
    %v2161 = vadd.f32 %v2159, %v2160
    %v2162 = vsel %vm555, %v2157, 0.0
    %v2163 = vadd.f32 %v2161, %v2162
    %v2164 = vsel %vm2094, %v2158, 0.0
    %v2165 = vadd.f32 %v2163, %v2164
    %v2166 = vrot.slane %v2165, 4
    %v2167 = vadd.f32 %v2165, %v2166
    %v2168 = vrot.slane %v2167, 2
    %v2169 = vadd.f32 %v2167, %v2168
    %v2170 = vrot.slane %v2169, 1
    %v2171 = vadd.f32 %v2169, %v2170
    %v2173 = vsel %vm555, %v2171, 0
    %2175 = vmatpush.msra.mxu0 0.0
    %2176 = vmatpush.msra.mxu0 0.0
    %2177 = vmatpush.msra.mxu0 %v2087
    %2178 = vmatpush.msra.mxu0 %v2086
    %2179 = vmatpush.msra.mxu0 %v2085
    %2180 = vmatpush.msra.mxu0 %v2084
    %2181 = vmatpush.msra.mxu0 %v2083
    %2182 = vmatpush.msra.mxu0 %v2082
    %2183 = vmatpush.msra.mxu0 %v2081
    %2184 = vmatpush.msra.mxu0 %v2080
    %2185 = vmatpush.msra.mxu0 %v2079
    %2186 = vmatpush.msra.mxu0 %v2078
    %2187 = vmatpush.msra.mxu0 %v2077
    %2188 = vmatpush.msra.mxu0 %v2076
    %2189 = vmatpush.msra.mxu0 %v2075
    %2190 = vmatpush.msra.mxu0 %v2074
    %2191 = vmatmul.f32.gmra.mxu0 %v2173
    %v2192 = vpop.f32.mrf.mxu0
    %v2193 = vadd.f32 0.0, %v2192
    %2194 = vdwg.mxu0
    %v2195 = vmul.f32 %v2193, 0.0025510204
    %v2196 = vadd.f32 %v2195, 1e-05
    %v2197 = vrsqrt.pop %v2196
    %v2198 = vmul.f32 %v2197, %v2196
    %v2199 = vmul.f32 %v2198, %v2197
    %v2200 = vmul.f32 0.5, %v2199
    %v2201 = vsub.f32 1.5, %v2200
    %v2202 = vmul.f32 %v2197, %v2201
    %vm2203 = vweird.f32 %v2196
    %vm2204 = vweird.f32 %v2197
    %vm2205 = vmor %vm2203, %vm2204
    %v2206 = vsel %vm2205, %v2197, %v2202
    %v2207 = vmul.f32 %v2072, %v2206
    %v2209 = vsel %vm1275, %v2207, 0
    %2211 = vmatpush.msra.mxu0 0.0
    %2212 = vmatpush.msra.mxu0 0.0
    %2213 = vmatpush.msra.mxu0 0.0
    %2214 = vmatpush.msra.mxu0 0.0
    %2215 = vmatpush.msra.mxu0 0.0
    %2216 = vmatpush.msra.mxu0 0.0
    %2217 = vmatpush.msra.mxu0 0.0
    %2218 = vmatpush.msra.mxu0 0.0
    %2219 = vmatpush.msra.mxu0 0.0
    %2220 = vmatpush.msra.mxu0 0.0
    %2221 = vmatpush.msra.mxu0 0.0
    %2222 = vmatpush.msra.mxu0 0.0
    %2223 = vmatpush.msra.mxu0 0.0
    %2224 = vmatpush.msra.mxu0 0.0
    %2225 = vmatpush.msra.mxu0 0.0
    %2226 = vmatpush.msra.mxu0 %v2088
    %2227 = vmatmul.f32.gmra.mxu0 %v2209
    %v2228 = vpop.f32.mrf.mxu0
    %v2229 = vadd.f32 0.0, %v2228
    %2230 = vdwg.mxu0
    %v2231 = vperm.slane %v2229, 0
    %v2232 = vmul.f32 %v2151, %v2231
    %v2233 = vmul.f32 %v2152, %v2231
    %v2234 = vmul.f32 %v2153, %v2231
    %v2235 = vmul.f32 %v2154, %v2231
    %v2237 = vperm.slane %v2073, 0
    %v2239 = vadd.f32 %v2232, %v2237
    %v2240 = vadd.f32 %v2233, %v2237
    %v2241 = vadd.f32 %v2234, %v2237
    %v2242 = vadd.f32 %v2235, %v2237
    %v2243 = vmax.f32 %v2239, 0.0
    %v2244 = vmax.f32 %v2240, 0.0
    %v2245 = vmax.f32 %v2241, 0.0
    %v2246 = vmax.f32 %v2242, 0.0
    %v2247 = vld [vmem:[%s65] sm:$0xff]
    %v2248 = vld [vmem:[%s65 + $0x8] sm:$0xff]
    %v2249 = vld [vmem:[%s65 + $0x10] sm:$0xff]
    %v2250 = vld [vmem:[%s65 + $0x18] sm:$0xff]
    %v2251 = vld [vmem:[%s65 + $0x20] sm:$0xff]
    %v2252 = vld [vmem:[%s65 + $0x28] sm:$0xff]
    %v2253 = vld [vmem:[%s65 + $0x30] sm:$0xff]
    %v2254 = vld [vmem:[%s67] sm:$0xff]
    %v2255 = vld [vmem:[%s67 + $0x8] sm:$0xff]
    %v2256 = vld [vmem:[%s67 + $0x10] sm:$0xff]
    %v2257 = vld [vmem:[%s67 + $0x18] sm:$0xff]
    %v2258 = vld [vmem:[%s67 + $0x20] sm:$0xff]
    %v2259 = vld [vmem:[%s67 + $0x28] sm:$0xff]
    %v2260 = vld [vmem:[%s67 + $0x30] sm:$0xff]
    %v2261 = vld [vmem:[%s67 + $0x38] sm:$0xff]
    %v2262 = vld [vmem:[%s67 + $0x40] sm:$0xff]
    %v2263 = vld [vmem:[%s67 + $0x48] sm:$0xff]
    %v2264 = vld [vmem:[%s67 + $0x50] sm:$0xff]
    %v2265 = vld [vmem:[%s67 + $0x58] sm:$0xff]
    %v2266 = vld [vmem:[%s67 + $0x60] sm:$0xff]
    %v2267 = vld [vmem:[%s67 + $0x68] sm:$0xff]
    %v2269 = vsel %vm555, %v2243, 0
    %v2272 = vsel %vm555, %v2244, 0
    %v2275 = vsel %vm555, %v2245, 0
    %v2278 = vsel %vm555, %v2246, 0
    %2280 = vmatpush.msra.mxu0 0.0
    %2281 = vmatpush.msra.mxu0 0.0
    %2282 = vmatpush.msra.mxu0 %v2267
    %2283 = vmatpush.msra.mxu0 %v2266
    %2284 = vmatpush.msra.mxu0 %v2265
    %2285 = vmatpush.msra.mxu0 %v2264
    %2286 = vmatpush.msra.mxu0 %v2263
    %2287 = vmatpush.msra.mxu0 %v2262
    %2288 = vmatpush.msra.mxu0 %v2261
    %2289 = vmatpush.msra.mxu0 %v2260
    %2290 = vmatpush.msra.mxu0 %v2259
    %2291 = vmatpush.msra.mxu0 %v2258
    %2292 = vmatpush.msra.mxu0 %v2257
    %2293 = vmatpush.msra.mxu0 %v2256
    %2294 = vmatpush.msra.mxu0 %v2255
    %2295 = vmatpush.msra.mxu0 %v2254
    %2296 = vmatmul.f32.gmra.mxu0 %v2269
    %v2297 = vpop.f32.mrf.mxu0
    %v2298 = vadd.f32 0.0, %v2297
    %2299 = vmatmul.f32.gmra.mxu0 %v2272
    %v2300 = vpop.f32.mrf.mxu0
    %v2301 = vadd.f32 0.0, %v2300
    %2302 = vmatmul.f32.gmra.mxu0 %v2275
    %v2303 = vpop.f32.mrf.mxu0
    %v2304 = vadd.f32 0.0, %v2303
    %2305 = vmatmul.f32.gmra.mxu0 %v2278
    %v2306 = vpop.f32.mrf.mxu0
    %v2307 = vadd.f32 0.0, %v2306
    %2308 = vdwg.mxu0
    %s2309 = scalar_lea.vmem %s65, 56
    %v2310 = vld [vmem:[%s2309] sm:$0xff]
    %v2311 = vld [vmem:[%s2309 + $0x8] sm:$0xff]
    %v2312 = vld [vmem:[%s2309 + $0x10] sm:$0xff]
    %v2313 = vld [vmem:[%s2309 + $0x18] sm:$0xff]
    %v2314 = vld [vmem:[%s2309 + $0x20] sm:$0xff]
    %v2315 = vld [vmem:[%s2309 + $0x28] sm:$0xff]
    %v2316 = vld [vmem:[%s2309 + $0x30] sm:$0xff]
    %s2317 = scalar_lea.vmem %s67, 112
    %v2318 = vld [vmem:[%s2317] sm:$0xff]
    %v2319 = vld [vmem:[%s2317 + $0x8] sm:$0xff]
    %v2320 = vld [vmem:[%s2317 + $0x10] sm:$0xff]
    %v2321 = vld [vmem:[%s2317 + $0x18] sm:$0xff]
    %v2322 = vld [vmem:[%s2317 + $0x20] sm:$0xff]
    %v2323 = vld [vmem:[%s2317 + $0x28] sm:$0xff]
    %v2324 = vld [vmem:[%s2317 + $0x30] sm:$0xff]
    %v2325 = vld [vmem:[%s2317 + $0x38] sm:$0xff]
    %v2326 = vld [vmem:[%s2317 + $0x40] sm:$0xff]
    %v2327 = vld [vmem:[%s2317 + $0x48] sm:$0xff]
    %v2328 = vld [vmem:[%s2317 + $0x50] sm:$0xff]
    %v2329 = vld [vmem:[%s2317 + $0x58] sm:$0xff]
    %v2330 = vld [vmem:[%s2317 + $0x60] sm:$0xff]
    %v2331 = vld [vmem:[%s2317 + $0x68] sm:$0xff]
    %2332 = vmatpush.msra.mxu0 0.0
    %2333 = vmatpush.msra.mxu0 0.0
    %2334 = vmatpush.msra.mxu0 %v2331
    %2335 = vmatpush.msra.mxu0 %v2330
    %2336 = vmatpush.msra.mxu0 %v2329
    %2337 = vmatpush.msra.mxu0 %v2328
    %2338 = vmatpush.msra.mxu0 %v2327
    %2339 = vmatpush.msra.mxu0 %v2326
    %2340 = vmatpush.msra.mxu0 %v2325
    %2341 = vmatpush.msra.mxu0 %v2324
    %2342 = vmatpush.msra.mxu0 %v2323
    %2343 = vmatpush.msra.mxu0 %v2322
    %2344 = vmatpush.msra.mxu0 %v2321
    %2345 = vmatpush.msra.mxu0 %v2320
    %2346 = vmatpush.msra.mxu0 %v2319
    %2347 = vmatpush.msra.mxu0 %v2318
    %2348 = vmatmul.f32.gmra.mxu0 %v2269
    %v2349 = vpop.f32.mrf.mxu0
    %v2350 = vadd.f32 0.0, %v2349
    %2351 = vmatmul.f32.gmra.mxu0 %v2272
    %v2352 = vpop.f32.mrf.mxu0
    %v2353 = vadd.f32 0.0, %v2352
    %2354 = vmatmul.f32.gmra.mxu0 %v2275
    %v2355 = vpop.f32.mrf.mxu0
    %v2356 = vadd.f32 0.0, %v2355
    %2357 = vmatmul.f32.gmra.mxu0 %v2278
    %v2358 = vpop.f32.mrf.mxu0
    %v2359 = vadd.f32 0.0, %v2358
    %2360 = vdwg.mxu0
    %v2362 = vsel %vm259, %v2310, 0
    %v2365 = vsel %vm259, %v2311, 0
    %v2368 = vsel %vm259, %v2312, 0
    %v2371 = vsel %vm259, %v2313, 0
    %v2374 = vsel %vm259, %v2314, 0
    %v2377 = vsel %vm259, %v2315, 0
    %v2380 = vsel %vm259, %v2316, 0
    %v2383 = vsel %vm272, %v2359, 0
    %2385 = vmatpush.msra.mxu0 0.0
    %2386 = vmatpush.msra.mxu0 0.0
    %2387 = vmatpush.msra.mxu0 0.0
    %2388 = vmatpush.msra.mxu0 0.0
    %2389 = vmatpush.msra.mxu0 0.0
    %2390 = vmatpush.msra.mxu0 0.0
    %2391 = vmatpush.msra.mxu0 0.0
    %2392 = vmatpush.msra.mxu0 0.0
    %2393 = vmatpush.msra.mxu0 0.0
    %2394 = vmatpush.msra.mxu0 0.0
    %2395 = vmatpush.msra.mxu0 0.0
    %2396 = vmatpush.msra.mxu0 0.0
    %2397 = vmatpush.msra.mxu0 %v2383
    %2398 = vmatpush.msra.mxu0 %v2356
    %2399 = vmatpush.msra.mxu0 %v2353
    %2400 = vmatpush.msra.mxu0 %v2350
    %2401 = vmatmul.f32.gmra.mxu0 %v2362
    %v2402 = vpop.f32.mrf.mxu0
    %v2403 = vadd.f32 0.0, %v2402
    %2404 = vmatmul.f32.gmra.mxu0 %v2365
    %v2405 = vpop.f32.mrf.mxu0
    %v2406 = vadd.f32 0.0, %v2405
    %2407 = vmatmul.f32.gmra.mxu0 %v2368
    %v2408 = vpop.f32.mrf.mxu0
    %v2409 = vadd.f32 0.0, %v2408
    %2410 = vmatmul.f32.gmra.mxu0 %v2371
    %v2411 = vpop.f32.mrf.mxu0
    %v2412 = vadd.f32 0.0, %v2411
    %2413 = vmatmul.f32.gmra.mxu0 %v2374
    %v2414 = vpop.f32.mrf.mxu0
    %v2415 = vadd.f32 0.0, %v2414
    %2416 = vmatmul.f32.gmra.mxu0 %v2377
    %v2417 = vpop.f32.mrf.mxu0
    %v2418 = vadd.f32 0.0, %v2417
    %2419 = vmatmul.f32.gmra.mxu0 %v2380
    %v2420 = vpop.f32.mrf.mxu0
    %v2421 = vadd.f32 0.0, %v2420
    %2422 = vdwg.mxu0
    %v2424 = vsel %vm259, %v2247, 0
    %v2427 = vsel %vm259, %v2248, 0
    %v2430 = vsel %vm259, %v2249, 0
    %v2433 = vsel %vm259, %v2250, 0
    %v2436 = vsel %vm259, %v2251, 0
    %v2439 = vsel %vm259, %v2252, 0
    %v2442 = vsel %vm259, %v2253, 0
    %v2445 = vsel %vm272, %v2307, 0
    %2447 = vmatpush.msra.mxu0 0.0
    %2448 = vmatpush.msra.mxu0 0.0
    %2449 = vmatpush.msra.mxu0 0.0
    %2450 = vmatpush.msra.mxu0 0.0
    %2451 = vmatpush.msra.mxu0 0.0
    %2452 = vmatpush.msra.mxu0 0.0
    %2453 = vmatpush.msra.mxu0 0.0
    %2454 = vmatpush.msra.mxu0 0.0
    %2455 = vmatpush.msra.mxu0 0.0
    %2456 = vmatpush.msra.mxu0 0.0
    %2457 = vmatpush.msra.mxu0 0.0
    %2458 = vmatpush.msra.mxu0 0.0
    %2459 = vmatpush.msra.mxu0 %v2445
    %2460 = vmatpush.msra.mxu0 %v2304
    %2461 = vmatpush.msra.mxu0 %v2301
    %2462 = vmatpush.msra.mxu0 %v2298
    %2463 = vmatmul.f32.gmra.mxu0 %v2424
    %v2464 = vpop.f32.mrf.mxu0
    %v2465 = vadd.f32 %v2403, %v2464
    %2466 = vmatmul.f32.gmra.mxu0 %v2427
    %v2467 = vpop.f32.mrf.mxu0
    %v2468 = vadd.f32 %v2406, %v2467
    %2469 = vmatmul.f32.gmra.mxu0 %v2430
    %v2470 = vpop.f32.mrf.mxu0
    %v2471 = vadd.f32 %v2409, %v2470
    %2472 = vmatmul.f32.gmra.mxu0 %v2433
    %v2473 = vpop.f32.mrf.mxu0
    %v2474 = vadd.f32 %v2412, %v2473
    %2475 = vmatmul.f32.gmra.mxu0 %v2436
    %v2476 = vpop.f32.mrf.mxu0
    %v2477 = vadd.f32 %v2415, %v2476
    %2478 = vmatmul.f32.gmra.mxu0 %v2439
    %v2479 = vpop.f32.mrf.mxu0
    %v2480 = vadd.f32 %v2418, %v2479
    %2481 = vmatmul.f32.gmra.mxu0 %v2442
    %v2482 = vpop.f32.mrf.mxu0
    %v2483 = vadd.f32 %v2421, %v2482
    %2484 = vdwg.mxu0
    %s2485 = scalar_lea.vmem %s65, 112
    %v2486 = vld [vmem:[%s2485] sm:$0xff]
    %v2487 = vld [vmem:[%s2485 + $0x8] sm:$0xff]
    %v2488 = vld [vmem:[%s2485 + $0x10] sm:$0xff]
    %v2489 = vld [vmem:[%s2485 + $0x18] sm:$0xff]
    %v2490 = vld [vmem:[%s2485 + $0x20] sm:$0xff]
    %v2491 = vld [vmem:[%s2485 + $0x28] sm:$0xff]
    %v2492 = vld [vmem:[%s2485 + $0x30] sm:$0xff]
    %s2493 = scalar_lea.vmem %s67, 224
    %v2494 = vld [vmem:[%s2493] sm:$0xff]
    %v2495 = vld [vmem:[%s2493 + $0x8] sm:$0xff]
    %v2496 = vld [vmem:[%s2493 + $0x10] sm:$0xff]
    %v2497 = vld [vmem:[%s2493 + $0x18] sm:$0xff]
    %v2498 = vld [vmem:[%s2493 + $0x20] sm:$0xff]
    %v2499 = vld [vmem:[%s2493 + $0x28] sm:$0xff]
    %v2500 = vld [vmem:[%s2493 + $0x30] sm:$0xff]
    %v2501 = vld [vmem:[%s2493 + $0x38] sm:$0xff]
    %v2502 = vld [vmem:[%s2493 + $0x40] sm:$0xff]
    %v2503 = vld [vmem:[%s2493 + $0x48] sm:$0xff]
    %v2504 = vld [vmem:[%s2493 + $0x50] sm:$0xff]
    %v2505 = vld [vmem:[%s2493 + $0x58] sm:$0xff]
    %v2506 = vld [vmem:[%s2493 + $0x60] sm:$0xff]
    %v2507 = vld [vmem:[%s2493 + $0x68] sm:$0xff]
    %2508 = vmatpush.msra.mxu0 0.0
    %2509 = vmatpush.msra.mxu0 0.0
    %2510 = vmatpush.msra.mxu0 %v2507
    %2511 = vmatpush.msra.mxu0 %v2506
    %2512 = vmatpush.msra.mxu0 %v2505
    %2513 = vmatpush.msra.mxu0 %v2504
    %2514 = vmatpush.msra.mxu0 %v2503
    %2515 = vmatpush.msra.mxu0 %v2502
    %2516 = vmatpush.msra.mxu0 %v2501
    %2517 = vmatpush.msra.mxu0 %v2500
    %2518 = vmatpush.msra.mxu0 %v2499
    %2519 = vmatpush.msra.mxu0 %v2498
    %2520 = vmatpush.msra.mxu0 %v2497
    %2521 = vmatpush.msra.mxu0 %v2496
    %2522 = vmatpush.msra.mxu0 %v2495
    %2523 = vmatpush.msra.mxu0 %v2494
    %2524 = vmatmul.f32.gmra.mxu0 %v2269
    %v2525 = vpop.f32.mrf.mxu0
    %v2526 = vadd.f32 0.0, %v2525
    %2527 = vmatmul.f32.gmra.mxu0 %v2272
    %v2528 = vpop.f32.mrf.mxu0
    %v2529 = vadd.f32 0.0, %v2528
    %2530 = vmatmul.f32.gmra.mxu0 %v2275
    %v2531 = vpop.f32.mrf.mxu0
    %v2532 = vadd.f32 0.0, %v2531
    %2533 = vmatmul.f32.gmra.mxu0 %v2278
    %v2534 = vpop.f32.mrf.mxu0
    %v2535 = vadd.f32 0.0, %v2534
    %2536 = vdwg.mxu0
    %v2538 = vsel %vm259, %v2486, 0
    %v2541 = vsel %vm259, %v2487, 0
    %v2544 = vsel %vm259, %v2488, 0
    %v2547 = vsel %vm259, %v2489, 0
    %v2550 = vsel %vm259, %v2490, 0
    %v2553 = vsel %vm259, %v2491, 0
    %v2556 = vsel %vm259, %v2492, 0
    %v2559 = vsel %vm272, %v2535, 0
    %2561 = vmatpush.msra.mxu0 0.0
    %2562 = vmatpush.msra.mxu0 0.0
    %2563 = vmatpush.msra.mxu0 0.0
    %2564 = vmatpush.msra.mxu0 0.0
    %2565 = vmatpush.msra.mxu0 0.0
    %2566 = vmatpush.msra.mxu0 0.0
    %2567 = vmatpush.msra.mxu0 0.0
    %2568 = vmatpush.msra.mxu0 0.0
    %2569 = vmatpush.msra.mxu0 0.0
    %2570 = vmatpush.msra.mxu0 0.0
    %2571 = vmatpush.msra.mxu0 0.0
    %2572 = vmatpush.msra.mxu0 0.0
    %2573 = vmatpush.msra.mxu0 %v2559
    %2574 = vmatpush.msra.mxu0 %v2532
    %2575 = vmatpush.msra.mxu0 %v2529
    %2576 = vmatpush.msra.mxu0 %v2526
    %2577 = vmatmul.f32.gmra.mxu0 %v2538
    %v2578 = vpop.f32.mrf.mxu0
    %v2579 = vadd.f32 0.0, %v2578
    %2580 = vmatmul.f32.gmra.mxu0 %v2541
    %v2581 = vpop.f32.mrf.mxu0
    %v2582 = vadd.f32 0.0, %v2581
    %2583 = vmatmul.f32.gmra.mxu0 %v2544
    %v2584 = vpop.f32.mrf.mxu0
    %v2585 = vadd.f32 0.0, %v2584
    %2586 = vmatmul.f32.gmra.mxu0 %v2547
    %v2587 = vpop.f32.mrf.mxu0
    %v2588 = vadd.f32 0.0, %v2587
    %2589 = vmatmul.f32.gmra.mxu0 %v2550
    %v2590 = vpop.f32.mrf.mxu0
    %v2591 = vadd.f32 0.0, %v2590
    %2592 = vmatmul.f32.gmra.mxu0 %v2553
    %v2593 = vpop.f32.mrf.mxu0
    %v2594 = vadd.f32 0.0, %v2593
    %2595 = vmatmul.f32.gmra.mxu0 %v2556
    %v2596 = vpop.f32.mrf.mxu0
    %v2597 = vadd.f32 0.0, %v2596
    %2598 = vdwg.mxu0
    %v2599 = vadd.f32 %v2465, %v2579
    %v2600 = vadd.f32 %v2468, %v2582
    %v2601 = vadd.f32 %v2471, %v2585
    %v2602 = vadd.f32 %v2474, %v2588
    %v2603 = vadd.f32 %v2477, %v2591
    %v2604 = vadd.f32 %v2480, %v2594
    %v2605 = vadd.f32 %v2483, %v2597
    %v2606 = vld [vmem:[%s69] sm:$0x1]
    %v2608 = vperm.slane %v2606, 0
    %v2610 = vadd.f32 %v2599, %v2608
    %v2611 = vadd.f32 %v2600, %v2608
    %v2612 = vadd.f32 %v2601, %v2608
    %v2613 = vadd.f32 %v2602, %v2608
    %v2614 = vadd.f32 %v2603, %v2608
    %v2615 = vadd.f32 %v2604, %v2608
    %v2616 = vadd.f32 %v2605, %v2608
    %v2617 = vxor.u32 %v2610, 2147483648
    %v2618 = vxor.u32 %v2611, 2147483648
    %v2619 = vxor.u32 %v2612, 2147483648
    %v2620 = vxor.u32 %v2613, 2147483648
    %v2621 = vxor.u32 %v2614, 2147483648
    %v2622 = vxor.u32 %v2615, 2147483648
    %v2623 = vxor.u32 %v2616, 2147483648
    %v2624 = vmul.f32 %v2617, 1.442695
    %v2625 = vpow.pop %v2624
    %v2626 = vmul.f32 %v2618, 1.442695
    %v2627 = vpow.pop %v2626
    %v2628 = vmul.f32 %v2619, 1.442695
    %v2629 = vpow.pop %v2628
    %v2630 = vmul.f32 %v2620, 1.442695
    %v2631 = vpow.pop %v2630
    %v2632 = vmul.f32 %v2621, 1.442695
    %v2633 = vpow.pop %v2632
    %v2634 = vmul.f32 %v2622, 1.442695
    %v2635 = vpow.pop %v2634
    %v2636 = vmul.f32 %v2623, 1.442695
    %v2637 = vpow.pop %v2636
    %v2638 = vadd.f32 %v2625, 1.0
    %v2639 = vadd.f32 %v2627, 1.0
    %v2640 = vadd.f32 %v2629, 1.0
    %v2641 = vadd.f32 %v2631, 1.0
    %v2642 = vadd.f32 %v2633, 1.0
    %v2643 = vadd.f32 %v2635, 1.0
    %v2644 = vadd.f32 %v2637, 1.0
    %v2645 = vrcp.pop %v2638
    %v2646 = vmul.f32 %v2638, %v2645
    %v2647 = vsub.f32 1.0, %v2646
    %v2648 = vmul.f32 %v2645, %v2647
    %v2649 = vadd.f32 %v2645, %v2648
    %vm2650 = vweird.f32 %v2638
    %vm2651 = vweird.f32 %v2645
    %vm2652 = vmor %vm2650, %vm2651
    %v2653 = vsel %vm2652, %v2645, %v2649
    %v2654 = vand.u32 2147483647, %v2638
    %vm2655 = vcmp.eq.f32.partialorder %v2654, 8.507059e+37
    %v2656 = vand.u32 %v2638, 2147483648
    %v2657 = vor.u32 1.1754944e-38, %v2656
    %v2658 = vsel %vm2655, %v2657, %v2653
    %v2659 = vmul.f32 1.0, %v2658
    %v2660 = vrcp.pop %v2639
    %v2661 = vmul.f32 %v2639, %v2660
    %v2662 = vsub.f32 1.0, %v2661
    %v2663 = vmul.f32 %v2660, %v2662
    %v2664 = vadd.f32 %v2660, %v2663
    %vm2665 = vweird.f32 %v2639
    %vm2666 = vweird.f32 %v2660
    %vm2667 = vmor %vm2665, %vm2666
    %v2668 = vsel %vm2667, %v2660, %v2664
    %v2669 = vand.u32 2147483647, %v2639
    %vm2670 = vcmp.eq.f32.partialorder %v2669, 8.507059e+37
    %v2671 = vand.u32 %v2639, 2147483648
    %v2672 = vor.u32 1.1754944e-38, %v2671
    %v2673 = vsel %vm2670, %v2672, %v2668
    %v2674 = vmul.f32 1.0, %v2673
    %v2675 = vrcp.pop %v2640
    %v2676 = vmul.f32 %v2640, %v2675
    %v2677 = vsub.f32 1.0, %v2676
    %v2678 = vmul.f32 %v2675, %v2677
    %v2679 = vadd.f32 %v2675, %v2678
    %vm2680 = vweird.f32 %v2640
    %vm2681 = vweird.f32 %v2675
    %vm2682 = vmor %vm2680, %vm2681
    %v2683 = vsel %vm2682, %v2675, %v2679
    %v2684 = vand.u32 2147483647, %v2640
    %vm2685 = vcmp.eq.f32.partialorder %v2684, 8.507059e+37
    %v2686 = vand.u32 %v2640, 2147483648
    %v2687 = vor.u32 1.1754944e-38, %v2686
    %v2688 = vsel %vm2685, %v2687, %v2683
    %v2689 = vmul.f32 1.0, %v2688
    %v2690 = vrcp.pop %v2641
    %v2691 = vmul.f32 %v2641, %v2690
    %v2692 = vsub.f32 1.0, %v2691
    %v2693 = vmul.f32 %v2690, %v2692
    %v2694 = vadd.f32 %v2690, %v2693
    %vm2695 = vweird.f32 %v2641
    %vm2696 = vweird.f32 %v2690
    %vm2697 = vmor %vm2695, %vm2696
    %v2698 = vsel %vm2697, %v2690, %v2694
    %v2699 = vand.u32 2147483647, %v2641
    %vm2700 = vcmp.eq.f32.partialorder %v2699, 8.507059e+37
    %v2701 = vand.u32 %v2641, 2147483648
    %v2702 = vor.u32 1.1754944e-38, %v2701
    %v2703 = vsel %vm2700, %v2702, %v2698
    %v2704 = vmul.f32 1.0, %v2703
    %v2705 = vrcp.pop %v2642
    %v2706 = vmul.f32 %v2642, %v2705
    %v2707 = vsub.f32 1.0, %v2706
    %v2708 = vmul.f32 %v2705, %v2707
    %v2709 = vadd.f32 %v2705, %v2708
    %vm2710 = vweird.f32 %v2642
    %vm2711 = vweird.f32 %v2705
    %vm2712 = vmor %vm2710, %vm2711
    %v2713 = vsel %vm2712, %v2705, %v2709
    %v2714 = vand.u32 2147483647, %v2642
    %vm2715 = vcmp.eq.f32.partialorder %v2714, 8.507059e+37
    %v2716 = vand.u32 %v2642, 2147483648
    %v2717 = vor.u32 1.1754944e-38, %v2716
    %v2718 = vsel %vm2715, %v2717, %v2713
    %v2719 = vmul.f32 1.0, %v2718
    %v2720 = vrcp.pop %v2643
    %v2721 = vmul.f32 %v2643, %v2720
    %v2722 = vsub.f32 1.0, %v2721
    %v2723 = vmul.f32 %v2720, %v2722
    %v2724 = vadd.f32 %v2720, %v2723
    %vm2725 = vweird.f32 %v2643
    %vm2726 = vweird.f32 %v2720
    %vm2727 = vmor %vm2725, %vm2726
    %v2728 = vsel %vm2727, %v2720, %v2724
    %v2729 = vand.u32 2147483647, %v2643
    %vm2730 = vcmp.eq.f32.partialorder %v2729, 8.507059e+37
    %v2731 = vand.u32 %v2643, 2147483648
    %v2732 = vor.u32 1.1754944e-38, %v2731
    %v2733 = vsel %vm2730, %v2732, %v2728
    %v2734 = vmul.f32 1.0, %v2733
    %v2735 = vrcp.pop %v2644
    %v2736 = vmul.f32 %v2644, %v2735
    %v2737 = vsub.f32 1.0, %v2736
    %v2738 = vmul.f32 %v2735, %v2737
    %v2739 = vadd.f32 %v2735, %v2738
    %vm2740 = vweird.f32 %v2644
    %vm2741 = vweird.f32 %v2735
    %vm2742 = vmor %vm2740, %vm2741
    %v2743 = vsel %vm2742, %v2735, %v2739
    %v2744 = vand.u32 2147483647, %v2644
    %vm2745 = vcmp.eq.f32.partialorder %v2744, 8.507059e+37
    %v2746 = vand.u32 %v2644, 2147483648
    %v2747 = vor.u32 1.1754944e-38, %v2746
    %v2748 = vsel %vm2745, %v2747, %v2743
    %v2749 = vmul.f32 1.0, %v2748
    %2750 = vst.msk [vmem:[#allocation4] sm:$0xff] %vm259, %v2659
    %2751 = vst.msk [vmem:[#allocation4 + $0x8] sm:$0xff] %vm259, %v2674
    %2752 = vst.msk [vmem:[#allocation4 + $0x10] sm:$0xff] %vm259, %v2689
    %2753 = vst.msk [vmem:[#allocation4 + $0x18] sm:$0xff] %vm259, %v2704
    %2754 = vst.msk [vmem:[#allocation4 + $0x20] sm:$0xff] %vm259, %v2719
    %2755 = vst.msk [vmem:[#allocation4 + $0x28] sm:$0xff] %vm259, %v2734
    %2756 = vst.msk [vmem:[#allocation4 + $0x30] sm:$0xff] %vm259, %v2749
    // Predicated region
    $region142: #{vae_forward.1} parent=1 // pred_check
      _
    $region143: #{vae_forward.1} parent=1 // pred_check_branch
      %2758 = sbr.rel (0) target = $region145
    $region144: #{vae_forward.1} parent=1 // pred_region
      %2760 = vsyncadd [#allocation5], 0
      %s2761 = sshll.u32 [#allocation4], 4
      %s2762 = int_to_ptr.vmem [resolvable:$true] %s2761
      %s2763 = sshll.u32 %s71, 4
      %s2764 = int_to_ptr.hbm [resolvable:$true] %s2763
      %2769 = dma.vmem_to_hbm [thread:$0]  %s2762, 896, %s2764, [#allocation5], 128, 128, 8
    $region145: #{vae_forward.1} parent=1 // pred_fallthru
      _
    // Predicated region
    $region146: #{vae_forward.1} parent=1 // pred_check
      _
    $region147: #{vae_forward.1} parent=1 // pred_check_branch
      %2771 = sbr.rel (0) target = $region149
    $region148: #{vae_forward.1} parent=1 // pred_region
      %2773 = vsyncadd [#allocation6], 0
      %s2775 = sshll.u32 %s73, 4
      %s2776 = int_to_ptr.hbm [resolvable:$true] %s2775
      %2778 = dma.smem_to_hbm [#allocation7], 16, %s2776, [#allocation6]
    $region149: #{vae_forward.1} parent=1 // pred_fallthru
      _
    // Predicated region
    $region150: #{vae_forward.1} parent=1 // pred_check
      _
    $region151: #{vae_forward.1} parent=1 // pred_check_branch
      %2780 = sbr.rel (0) target = $region153
    $region152: #{vae_forward.1} parent=1 // pred_region
      %2782 = dma.done [#allocation5], 896
    $region153: #{vae_forward.1} parent=1 // pred_fallthru
      _
    // Predicated region
    $region154: #{vae_forward.1} parent=1 // pred_check
      _
    $region155: #{vae_forward.1} parent=1 // pred_check_branch
      %2784 = sbr.rel (0) target = $region157
    $region156: #{vae_forward.1} parent=1 // pred_region
      %2786 = dma.done [#allocation6], 16
    $region157: #{vae_forward.1} parent=1 // pred_fallthru
      _
    %2787 = sfence
    %2788 = vsyncpa [#allocation5], 1
    %2789 = vsyncpa [#allocation6], 1

</llo_original>
